<compile_context>
chip_gen: v6e
topology: v6e:2x2x1
jax: 0.10.0
libtpu: 0.0.40
codegen_flags: <defaults>
</compile_context>

<pallas_src>
import numpy as np
import jax
import jax.numpy as jnp
from jax.experimental import pallas as pl
from jax.experimental.pallas import tpu as pltpu


# --------------------------------------------------------------------------- #
# Geometry (architecture only works for 84x84 frames).
#   Folded input : 11x11 spatial grid per element, flattened with row stride 11,
#                  121 valid columns, padded to a 128-lane per-element stripe.
#   F1 (conv1, x2-folded): valid 10x10 grid (max col 108), 128 channels.
#   F2 (conv2)           : valid 9x9  grid (max col  96),  64 channels.
#   A3 (conv3)           : valid 7x7  grid (max col  72),  64 channels.
# Rows (sublanes) carry channels; columns (lanes) carry flattened spatial positions,
# batch elements packed as consecutive 128-lane stripes -> big, lane-dense dots/stores.
# --------------------------------------------------------------------------- #
_SW = 11            # flattened storage row stride shared by all layers
_STRIPE = 128       # lanes per batch element in every buffer
_OFF2 = tuple(qi * _SW + qj for qi in range(2) for qj in range(2))   # 2x2 window offsets
_OFF3 = tuple(kh * _SW + kw for kh in range(3) for kw in range(3))   # 3x3 window offsets
_VALID7 = np.array([oh * _SW + ow for oh in range(7) for ow in range(7)])  # final 7x7 cols


# ------------------------------- Pallas kernel ------------------------------ #

def _nature_cnn_kernel(x_ref, w1_ref, w2_ref, w3_ref, b1_ref, b2_ref, b3_ref,
                       out_ref, f1_ref, f2_ref):
    """Fused NatureCNN trunk for one batch tile of TB elements (lane-striped).

    x_ref : (1, 64*C, TB*128 + 128) bf16  stride-folded input, 128-lane stripe / element
    w1_ref: (128, 4*64*C)           bf16  conv1 weights fused over the 2x2 offsets
    w2_ref: (64, 512)               bf16  conv2 weights fused over the 2x2 offsets
    w3_ref: (64, 576)               bf16  conv3 weights fused over the 3x3 offsets
    b*_ref: (Cout, 1)               f32   biases (conv1 bias tiled over the x2 fold)
    out_ref: (1, 64, TB*128)        f32   conv3 activation in striped storage layout
    f1_ref : VMEM (128, TB*128+128) bf16  conv1 activation (x2-folded layout)
    f2_ref : VMEM (64,  TB*128+128) bf16  conv2 activation
    """
    wn = out_ref.shape[-1]                       # TB * 128 computed lanes per layer

    # ---- conv1: 8x8 stride-4  ==  2x2 stride-1 conv over the x8-folded input ----
    # One MXU dot: K = 4 * 64 * C (offsets sublane-concatenated), N = TB * 128.
    p1 = jnp.concatenate([x_ref[0, :, pl.ds(off, wn)] for off in _OFF2], axis=0)
    a1 = jnp.dot(w1_ref[...], p1, preferred_element_type=jnp.float32)
    f1_ref[:, :wn] = jnp.maximum(a1 + b1_ref[...], 0.0).astype(jnp.bfloat16)
    # Keep the trailing slack stripe finite/zero (read by conv2's shifted slices).
    f1_ref[:, pl.ds(wn, _STRIPE)] = jnp.zeros((128, _STRIPE), jnp.bfloat16)

    # ---- conv2: 4x4 stride-2  ==  2x2 stride-1 conv over the x2-folded conv1 out ----
    p2 = jnp.concatenate([f1_ref[:, pl.ds(off, wn)] for off in _OFF2], axis=0)
    a2 = jnp.dot(w2_ref[...], p2, preferred_element_type=jnp.float32)
    f2_ref[:, :wn] = jnp.maximum(a2 + b2_ref[...], 0.0).astype(jnp.bfloat16)
    f2_ref[:, pl.ds(wn, _STRIPE)] = jnp.zeros((64, _STRIPE), jnp.bfloat16)

    # ---- conv3: 3x3 stride-1 (K = 9*64 = 576) ----
    p3 = jnp.concatenate([f2_ref[:, pl.ds(off, wn)] for off in _OFF3], axis=0)
    a3 = jnp.dot(w3_ref[...], p3, preferred_element_type=jnp.float32)
    # Lane-dense (TB*128-wide) unmasked store; valid-column extraction done in the wrapper.
    out_ref[0] = jnp.maximum(a3 + b3_ref[...], 0.0)


# ----------------------- wrapper-side layout plumbing ----------------------- #

def _fold_input(x_nchw, tb):
    """(B, C, 84, 84) f32 -> (G, 64*C, tb*128 + 128) bf16.

    x8 space-to-depth (stride folding), channel-major, flat spatial; each batch element
    gets a 128-lane stripe (121 valid cols + zero pad); one extra zero slack stripe at
    the end so shifted window slices of width tb*128 stay in-bounds.
    """
    B, C, H, W = x_nchw.shape
    g = -(-B // tb)
    bp = g * tb
    xp = jnp.pad(x_nchw, ((0, bp - B), (0, 0), (0, 4), (0, 4)))     # (bp, C, 88, 88)
    xf = xp.reshape(bp, C, 11, 8, 11, 8)                             # (b, c, A, u, Bb, v)
    xf = jnp.transpose(xf, (0, 3, 5, 1, 2, 4))                       # (b, u, v, c, A, Bb)
    xf = xf.reshape(bp, 64 * C, 121)                                 # chan = u*8C + v*C + c
    xf = jnp.pad(xf, ((0, 0), (0, 0), (0, _STRIPE - 121)))           # (bp, 64C, 128)
    xf = xf.reshape(g, tb, 64 * C, _STRIPE)
    xf = jnp.transpose(xf, (0, 2, 1, 3)).reshape(g, 64 * C, tb * _STRIPE)
    xf = jnp.pad(xf, ((0, 0), (0, 0), (0, _STRIPE)))                 # trailing slack stripe
    return xf.astype(jnp.bfloat16)


def _fold_range(q, r):
    """Valid u-range for kh = 8*q + u - 4*r with u in [0,8), kh in [0,8)."""
    u_lo = max(0, 4 * r - 8 * q)
    u_hi = min(8, 4 * r - 8 * q + 8)
    if u_lo >= u_hi:
        return None
    return u_lo, u_hi, 8 * q + u_lo - 4 * r, 8 * q + u_hi - 4 * r


def _fold_conv1_weight(w1):
    """(32, C, 8, 8) -> (128, 4*64*C): offset-fused 2x2 stride-1 weights, x2-fold out order."""
    C = w1.shape[1]
    w1p = jnp.transpose(w1, (2, 3, 1, 0))                            # (kh, kw, c, n)
    mats = []
    for qi in range(2):
        for qj in range(2):
            sub = jnp.zeros((8, 8, C, 2, 2, 32), w1.dtype)           # (u, v, c, ri, rj, n)
            for ri in range(2):
                ru = _fold_range(qi, ri)
                if ru is None:
                    continue
                for rj in range(2):
                    rv = _fold_range(qj, rj)
                    if rv is None:
                        continue
                    sub = sub.at[ru[0]:ru[1], rv[0]:rv[1], :, ri, rj, :].set(
                        w1p[ru[2]:ru[3], rv[2]:rv[3]])
            mats.append(sub.reshape(64 * C, 128))                    # row = u*8C + v*C + c
    # fused: column block q holds offset q's (128, 64C) matrix (output chan = ri*64+rj*32+n)
    return jnp.concatenate([m.T for m in mats], axis=1)              # (128, 4*64C)


def _fold_conv2_weight(w2):
    """(64, 32, 4, 4) -> (64, 512): offset-fused 2x2 stride-1 weights over x2-folded channels."""
    w2p = jnp.transpose(w2, (2, 3, 1, 0))                            # (kh, kw, c, n)
    mats = [w2p[2 * qi:2 * qi + 2, 2 * qj:2 * qj + 2].reshape(128, 64)
            for qi in range(2) for qj in range(2)]                   # row = ri*64 + rj*32 + c
    return jnp.concatenate([m.T for m in mats], axis=1)              # (64, 4*128)


def _fold_conv3_weight(w3):
    """(64, 64, 3, 3) -> (64, 576): offset-fused per-offset (n, c) matrices."""
    w3p = jnp.transpose(w3, (2, 3, 1, 0)).reshape(9, 64, 64)         # (kh*3+kw, c, n)
    return jnp.concatenate([w3p[q].T for q in range(9)], axis=1)     # (64, 9*64)


# --------------------------------- forward ---------------------------------- #

def nature_cnn_forward(params, x_nchw, *, tb_max=8):
    """x_nchw: (B, depth, 84, 84) float32 -> (B, 3136) float32 (torch NCHW flatten order)."""
    B, C, H, W = x_nchw.shape
    assert (H, W) == (84, 84), "NatureCNN only works with 84x84 frames"

    TB = min(tb_max, B)                 # batch elements per grid step (lane-packed)
    G = -(-B // TB)                     # grid length (batch tiles)
    Bp = G * TB
    WN = TB * _STRIPE                   # computed lanes per layer per step
    WX = WN + _STRIPE                   # buffer width incl. trailing slack stripe
    K1 = 64 * C

    fi = _fold_input(x_nchw, TB)                                     # (G, 64C, WX) bf16
    w1f = _fold_conv1_weight(params["w1"]).astype(jnp.bfloat16)      # (128, 4*64C)
    w2f = _fold_conv2_weight(params["w2"]).astype(jnp.bfloat16)      # (64, 512)
    w3f = _fold_conv3_weight(params["w3"]).astype(jnp.bfloat16)      # (64, 576)
    b1f = jnp.tile(params["b1"], 4).reshape(128, 1).astype(jnp.float32)
    b2f = params["b2"].reshape(64, 1).astype(jnp.float32)
    b3f = params["b3"].reshape(64, 1).astype(jnp.float32)

    out = pl.pallas_call(
        _nature_cnn_kernel,
        out_shape=jax.ShapeDtypeStruct((G, 64, WN), jnp.float32),
        grid_spec=pltpu.PrefetchScalarGridSpec(
            num_scalar_prefetch=0,
            grid=(G,),
            in_specs=[
                pl.BlockSpec((1, K1, WX), lambda g: (g, 0, 0)),      # folded input tile
                pl.BlockSpec((128, 4 * K1), lambda g: (0, 0)),       # conv1 fused weights
                pl.BlockSpec((64, 512), lambda g: (0, 0)),           # conv2 fused weights
                pl.BlockSpec((64, 576), lambda g: (0, 0)),           # conv3 fused weights
                pl.BlockSpec((128, 1), lambda g: (0, 0)),            # bias 1 (x2-fold tiled)
                pl.BlockSpec((64, 1), lambda g: (0, 0)),             # bias 2
                pl.BlockSpec((64, 1), lambda g: (0, 0)),             # bias 3
            ],
            out_specs=pl.BlockSpec((1, 64, WN), lambda g: (g, 0, 0)),
            scratch_shapes=[
                pltpu.VMEM((128, WX), jnp.bfloat16),                 # F1 activation
                pltpu.VMEM((64, WX), jnp.bfloat16),                  # F2 activation
            ],
        ),
        compiler_params=pltpu.CompilerParams(
            dimension_semantics=("parallel",),                       # v7x: 2 TCs split tiles
            vmem_limit_bytes=32 * 1024 * 1024,
        ),
    )(fi, w1f, w2f, w3f, b1f, b2f, b3f)

    # Wrapper-side layout plumbing (free on the tiny output slab):
    # un-stripe the batch, keep the valid 7x7 columns, NCHW flatten.
    out = out.reshape(G, 64, TB, _STRIPE)
    out = jnp.transpose(out, (0, 2, 1, 3)).reshape(Bp, 64, _STRIPE)[:B]
    out = out[:, :, _VALID7]                                         # (B, 64, 49)
    return out.reshape(B, 64 * 49)                                   # (B, 3136)


# ------------------------------ parameters ---------------------------------- #

def _orthogonal(key, shape, gain):
    """Orthogonal init matching nn.init.orthogonal_ semantics (gain * Q)."""
    rows = shape[0]
    cols = int(np.prod(shape[1:]))
    flat = (max(rows, cols), min(rows, cols))
    a = jax.random.normal(key, flat, dtype=jnp.float32)
    q, r = jnp.linalg.qr(a)
    q = q * jnp.where(jnp.diagonal(r) >= 0.0, 1.0, -1.0)
    if rows < cols:
        q = q.T
    return (gain * q[:rows, :cols]).reshape(shape).astype(jnp.float32)


def init_nature_cnn_params(key, depth):
    gain = float(np.sqrt(2.0))
    k1, k2, k3 = jax.random.split(key, 3)
    return {
        "w1": _orthogonal(k1, (32, depth, 8, 8), gain),
        "b1": jnp.zeros((32,), jnp.float32),
        "w2": _orthogonal(k2, (64, 32, 4, 4), gain),
        "b2": jnp.zeros((64,), jnp.float32),
        "w3": _orthogonal(k3, (64, 64, 3, 3), gain),
        "b3": jnp.zeros((64,), jnp.float32),
    }


# --------------------------- pure-JAX reference ------------------------------ #

def _reference_forward(params, x):
    y = x
    for w, b, s in ((params["w1"], params["b1"], 4),
                    (params["w2"], params["b2"], 2),
                    (params["w3"], params["b3"], 1)):
        y = jax.lax.conv_general_dilated(
            y, w, window_strides=(s, s), padding="VALID",
            dimension_numbers=("NCHW", "OIHW", "NCHW"),
            precision=jax.lax.Precision.HIGHEST)
        y = jnp.maximum(y + b[None, :, None, None], 0.0)
    return y.reshape(y.shape[0], -1)                                  # torch Flatten on NCHW


# ----------------------------------- main ------------------------------------ #

if __name__ == "__main__":
    B, depth = 2, 4
    key = jax.random.PRNGKey(0)
    k_params, k_x = jax.random.split(key)

    params = init_nature_cnn_params(k_params, depth)
    x = jax.random.normal(k_x, (B, depth, 84, 84), dtype=jnp.float32)

    out = jax.block_until_ready(jax.jit(nature_cnn_forward)(params, x))

    assert out.shape == (B, 3136), out.shape
    assert out.dtype == jnp.float32
    assert bool(jnp.all(jnp.isfinite(out)))
    assert bool(jnp.all(out >= 0.0))  # final op is ReLU

    # Correctness vs. XLA conv reference (loose tolerance: MXU operands are bf16).
    ref = jax.block_until_ready(jax.jit(_reference_forward)(params, x))
    scale = float(jnp.max(jnp.abs(ref))) + 1e-6
    err = float(jnp.max(jnp.abs(out - ref))) / scale
    assert err < 5e-2, f"mismatch vs reference: normalized max err = {err}"

    print("KERNEL_OK")
</pallas_src>

<mosaic_0001>
module attributes {stable_mosaic.version = 11 : i64} {
  func.func @_nature_cnn_kernel(%arg0: i32, %arg1: memref<1x256x384xbf16, #tpu.memory_space<vmem>>, %arg2: memref<128x1024xbf16, #tpu.memory_space<vmem>>, %arg3: memref<64x512xbf16, #tpu.memory_space<vmem>>, %arg4: memref<64x576xbf16, #tpu.memory_space<vmem>>, %arg5: memref<128x1xf32, #tpu.memory_space<vmem>>, %arg6: memref<64x1xf32, #tpu.memory_space<vmem>>, %arg7: memref<64x1xf32, #tpu.memory_space<vmem>>, %arg8: memref<1x64x256xf32, #tpu.memory_space<vmem>>, %arg9: memref<128x384xbf16, #tpu.memory_space<vmem>>, %arg10: memref<64x384xbf16, #tpu.memory_space<vmem>>) attributes {dimension_semantics = [#tpu.dimension_semantics<parallel>], iteration_bounds = array<i64: 1>, scalar_prefetch = 0 : i64, scratch_operands = 2 : i64, tpu.core_type = #tpu.core_type<tc>, window_params = [{transform_indices = @transform_0, window_bounds = array<i64: 1, 256, 384>}, {pipeline_mode = #tpu.pipeline_mode<synchronous>, transform_indices = @transform_1, window_bounds = array<i64: 128, 1024>}, {pipeline_mode = #tpu.pipeline_mode<synchronous>, transform_indices = @transform_2, window_bounds = array<i64: 64, 512>}, {pipeline_mode = #tpu.pipeline_mode<synchronous>, transform_indices = @transform_3, window_bounds = array<i64: 64, 576>}, {pipeline_mode = #tpu.pipeline_mode<synchronous>, transform_indices = @transform_4, window_bounds = array<i64: 128, 1>}, {pipeline_mode = #tpu.pipeline_mode<synchronous>, transform_indices = @transform_5, window_bounds = array<i64: 64, 1>}, {pipeline_mode = #tpu.pipeline_mode<synchronous>, transform_indices = @transform_6, window_bounds = array<i64: 64, 1>}, {transform_indices = @transform_7, window_bounds = array<i64: 1, 64, 256>}]} {
    %c0 = arith.constant 0 : index
    %c0_0 = arith.constant 0 : index
    %c0_1 = arith.constant 0 : index
    %0 = vector.load %arg1[%c0, %c0_0, %c0_1] : memref<1x256x384xbf16, #tpu.memory_space<vmem>>, vector<1x256x256xbf16>
    %1 = vector.shape_cast %0 : vector<1x256x256xbf16> to vector<256x256xbf16>
    %c0_2 = arith.constant 0 : index
    %c0_3 = arith.constant 0 : index
    %c1 = arith.constant 1 : index
    %2 = vector.load %arg1[%c0_2, %c0_3, %c1] : memref<1x256x384xbf16, #tpu.memory_space<vmem>>, vector<1x256x256xbf16>
    %3 = vector.shape_cast %2 : vector<1x256x256xbf16> to vector<256x256xbf16>
    %c0_4 = arith.constant 0 : index
    %c0_5 = arith.constant 0 : index
    %c11 = arith.constant 11 : index
    %4 = vector.load %arg1[%c0_4, %c0_5, %c11] : memref<1x256x384xbf16, #tpu.memory_space<vmem>>, vector<1x256x256xbf16>
    %5 = vector.shape_cast %4 : vector<1x256x256xbf16> to vector<256x256xbf16>
    %c0_6 = arith.constant 0 : index
    %c0_7 = arith.constant 0 : index
    %c12 = arith.constant 12 : index
    %6 = vector.load %arg1[%c0_6, %c0_7, %c12] : memref<1x256x384xbf16, #tpu.memory_space<vmem>>, vector<1x256x256xbf16>
    %7 = vector.shape_cast %6 : vector<1x256x256xbf16> to vector<256x256xbf16>
    %8 = tpu.concatenate %1, %3, %5, %7 in 0 : vector<256x256xbf16>, vector<256x256xbf16>, vector<256x256xbf16>, vector<256x256xbf16> -> vector<1024x256xbf16>
    %c0_8 = arith.constant 0 : index
    %c0_9 = arith.constant 0 : index
    %9 = vector.load %arg2[%c0_8, %c0_9] : memref<128x1024xbf16, #tpu.memory_space<vmem>>, vector<128x1024xbf16>
    %cst = arith.constant dense<0.000000e+00> : vector<128x256xf32>
    %10 = tpu.matmul %9, %8, %cst {dimension_numbers = #tpu.dot_dimension_numbers<[1], [0], [0], [1], [0, 0, 1, 1], [], []>} : vector<128x1024xbf16>, vector<1024x256xbf16>, vector<128x256xf32> -> vector<128x256xf32>
    %c0_10 = arith.constant 0 : index
    %c0_11 = arith.constant 0 : index
    %11 = vector.load %arg5[%c0_10, %c0_11] : memref<128x1xf32, #tpu.memory_space<vmem>>, vector<128x1xf32>
    %12 = vector.broadcast %11 : vector<128x1xf32> to vector<128x256xf32>
    %13 = arith.addf %10, %12 : vector<128x256xf32>
    %cst_12 = arith.constant 0.000000e+00 : f32
    %14 = vector.broadcast %cst_12 : f32 to vector<128x256xf32>
    %15 = arith.maximumf %13, %14 : vector<128x256xf32>
    %16 = arith.truncf %15 : vector<128x256xf32> to vector<128x256xbf16>
    %c0_13 = arith.constant 0 : index
    %c0_14 = arith.constant 0 : index
    %17 = vector.load %arg9[%c0_13, %c0_14] : memref<128x384xbf16, #tpu.memory_space<vmem>>, vector<128x256xbf16>
    tpu.vector_store %arg9[%c0_13, %c0_14], %16 {strides = array<i32>} : memref<128x384xbf16, #tpu.memory_space<vmem>>, vector<128x256xbf16>,
    %cst_15 = arith.constant 0.000000e+00 : bf16
    %18 = vector.broadcast %cst_15 : bf16 to vector<128x128xbf16>
    %c0_16 = arith.constant 0 : index
    %c256 = arith.constant 256 : index
    %19 = vector.load %arg9[%c0_16, %c256] : memref<128x384xbf16, #tpu.memory_space<vmem>>, vector<128x128xbf16>
    tpu.vector_store %arg9[%c0_16, %c256], %18 {strides = array<i32>} : memref<128x384xbf16, #tpu.memory_space<vmem>>, vector<128x128xbf16>,
    %c0_17 = arith.constant 0 : index
    %c0_18 = arith.constant 0 : index
    %20 = vector.load %arg9[%c0_17, %c0_18] : memref<128x384xbf16, #tpu.memory_space<vmem>>, vector<128x256xbf16>
    %c0_19 = arith.constant 0 : index
    %c1_20 = arith.constant 1 : index
    %21 = vector.load %arg9[%c0_19, %c1_20] : memref<128x384xbf16, #tpu.memory_space<vmem>>, vector<128x256xbf16>
    %c0_21 = arith.constant 0 : index
    %c11_22 = arith.constant 11 : index
    %22 = vector.load %arg9[%c0_21, %c11_22] : memref<128x384xbf16, #tpu.memory_space<vmem>>, vector<128x256xbf16>
    %c0_23 = arith.constant 0 : index
    %c12_24 = arith.constant 12 : index
    %23 = vector.load %arg9[%c0_23, %c12_24] : memref<128x384xbf16, #tpu.memory_space<vmem>>, vector<128x256xbf16>
    %24 = tpu.concatenate %20, %21, %22, %23 in 0 : vector<128x256xbf16>, vector<128x256xbf16>, vector<128x256xbf16>, vector<128x256xbf16> -> vector<512x256xbf16>
    %c0_25 = arith.constant 0 : index
    %c0_26 = arith.constant 0 : index
    %25 = vector.load %arg3[%c0_25, %c0_26] : memref<64x512xbf16, #tpu.memory_space<vmem>>, vector<64x512xbf16>
    %cst_27 = arith.constant dense<0.000000e+00> : vector<64x256xf32>
    %26 = tpu.matmul %25, %24, %cst_27 {dimension_numbers = #tpu.dot_dimension_numbers<[1], [0], [0], [1], [0, 0, 1, 1], [], []>} : vector<64x512xbf16>, vector<512x256xbf16>, vector<64x256xf32> -> vector<64x256xf32>
    %c0_28 = arith.constant 0 : index
    %c0_29 = arith.constant 0 : index
    %27 = vector.load %arg6[%c0_28, %c0_29] : memref<64x1xf32, #tpu.memory_space<vmem>>, vector<64x1xf32>
    %28 = vector.broadcast %27 : vector<64x1xf32> to vector<64x256xf32>
    %29 = arith.addf %26, %28 : vector<64x256xf32>
    %cst_30 = arith.constant 0.000000e+00 : f32
    %30 = vector.broadcast %cst_30 : f32 to vector<64x256xf32>
    %31 = arith.maximumf %29, %30 : vector<64x256xf32>
    %32 = arith.truncf %31 : vector<64x256xf32> to vector<64x256xbf16>
    %c0_31 = arith.constant 0 : index
    %c0_32 = arith.constant 0 : index
    %33 = vector.load %arg10[%c0_31, %c0_32] : memref<64x384xbf16, #tpu.memory_space<vmem>>, vector<64x256xbf16>
    tpu.vector_store %arg10[%c0_31, %c0_32], %32 {strides = array<i32>} : memref<64x384xbf16, #tpu.memory_space<vmem>>, vector<64x256xbf16>,
    %cst_33 = arith.constant 0.000000e+00 : bf16
    %34 = vector.broadcast %cst_33 : bf16 to vector<64x128xbf16>
    %c0_34 = arith.constant 0 : index
    %c256_35 = arith.constant 256 : index
    %35 = vector.load %arg10[%c0_34, %c256_35] : memref<64x384xbf16, #tpu.memory_space<vmem>>, vector<64x128xbf16>
    tpu.vector_store %arg10[%c0_34, %c256_35], %34 {strides = array<i32>} : memref<64x384xbf16, #tpu.memory_space<vmem>>, vector<64x128xbf16>,
    %c0_36 = arith.constant 0 : index
    %c0_37 = arith.constant 0 : index
    %36 = vector.load %arg10[%c0_36, %c0_37] : memref<64x384xbf16, #tpu.memory_space<vmem>>, vector<64x256xbf16>
    %c0_38 = arith.constant 0 : index
    %c1_39 = arith.constant 1 : index
    %37 = vector.load %arg10[%c0_38, %c1_39] : memref<64x384xbf16, #tpu.memory_space<vmem>>, vector<64x256xbf16>
    %c0_40 = arith.constant 0 : index
    %c2 = arith.constant 2 : index
    %38 = vector.load %arg10[%c0_40, %c2] : memref<64x384xbf16, #tpu.memory_space<vmem>>, vector<64x256xbf16>
    %c0_41 = arith.constant 0 : index
    %c11_42 = arith.constant 11 : index
    %39 = vector.load %arg10[%c0_41, %c11_42] : memref<64x384xbf16, #tpu.memory_space<vmem>>, vector<64x256xbf16>
    %c0_43 = arith.constant 0 : index
    %c12_44 = arith.constant 12 : index
    %40 = vector.load %arg10[%c0_43, %c12_44] : memref<64x384xbf16, #tpu.memory_space<vmem>>, vector<64x256xbf16>
    %c0_45 = arith.constant 0 : index
    %c13 = arith.constant 13 : index
    %41 = vector.load %arg10[%c0_45, %c13] : memref<64x384xbf16, #tpu.memory_space<vmem>>, vector<64x256xbf16>
    %c0_46 = arith.constant 0 : index
    %c22 = arith.constant 22 : index
    %42 = vector.load %arg10[%c0_46, %c22] : memref<64x384xbf16, #tpu.memory_space<vmem>>, vector<64x256xbf16>
    %c0_47 = arith.constant 0 : index
    %c23 = arith.constant 23 : index
    %43 = vector.load %arg10[%c0_47, %c23] : memref<64x384xbf16, #tpu.memory_space<vmem>>, vector<64x256xbf16>
    %c0_48 = arith.constant 0 : index
    %c24 = arith.constant 24 : index
    %44 = vector.load %arg10[%c0_48, %c24] : memref<64x384xbf16, #tpu.memory_space<vmem>>, vector<64x256xbf16>
    %45 = tpu.concatenate %36, %37, %38, %39, %40, %41, %42, %43, %44 in 0 : vector<64x256xbf16>, vector<64x256xbf16>, vector<64x256xbf16>, vector<64x256xbf16>, vector<64x256xbf16>, vector<64x256xbf16>, vector<64x256xbf16>, vector<64x256xbf16>, vector<64x256xbf16> -> vector<576x256xbf16>
    %c0_49 = arith.constant 0 : index
    %c0_50 = arith.constant 0 : index
    %46 = vector.load %arg4[%c0_49, %c0_50] : memref<64x576xbf16, #tpu.memory_space<vmem>>, vector<64x576xbf16>
    %cst_51 = arith.constant dense<0.000000e+00> : vector<64x256xf32>
    %47 = tpu.matmul %46, %45, %cst_51 {dimension_numbers = #tpu.dot_dimension_numbers<[1], [0], [0], [1], [0, 0, 1, 1], [], []>} : vector<64x576xbf16>, vector<576x256xbf16>, vector<64x256xf32> -> vector<64x256xf32>
    %c0_52 = arith.constant 0 : index
    %c0_53 = arith.constant 0 : index
    %48 = vector.load %arg7[%c0_52, %c0_53] : memref<64x1xf32, #tpu.memory_space<vmem>>, vector<64x1xf32>
    %49 = vector.broadcast %48 : vector<64x1xf32> to vector<64x256xf32>
    %50 = arith.addf %47, %49 : vector<64x256xf32>
    %cst_54 = arith.constant 0.000000e+00 : f32
    %51 = vector.broadcast %cst_54 : f32 to vector<64x256xf32>
    %52 = arith.maximumf %50, %51 : vector<64x256xf32>
    %c0_55 = arith.constant 0 : index
    %c0_56 = arith.constant 0 : index
    %c0_57 = arith.constant 0 : index
    %53 = vector.load %arg8[%c0_55, %c0_56, %c0_57] : memref<1x64x256xf32, #tpu.memory_space<vmem>>, vector<1x64x256xf32>
    %54 = vector.shape_cast %53 : vector<1x64x256xf32> to vector<64x256xf32>
    %55 = vector.shape_cast %52 : vector<64x256xf32> to vector<1x64x256xf32>
    tpu.vector_store %arg8[%c0_55, %c0_56, %c0_57], %55 {strides = array<i32>} : memref<1x64x256xf32, #tpu.memory_space<vmem>>, vector<1x64x256xf32>,
    return
  }
  func.func @transform_0(%arg0: i32) -> (i32, i32, i32) {
    %c0_i32 = arith.constant 0 : i32
    %c0_i32_0 = arith.constant 0 : i32
    %c0_i32_1 = arith.constant 0 : i32
    return %arg0, %c0_i32, %c0_i32_0 : i32, i32, i32
  }
  func.func @transform_1(%arg0: i32) -> (i32, i32) {
    %c0_i32 = arith.constant 0 : i32
    %c0_i32_0 = arith.constant 0 : i32
    %c0_i32_1 = arith.constant 0 : i32
    return %c0_i32, %c0_i32_0 : i32, i32
  }
  func.func @transform_2(%arg0: i32) -> (i32, i32) {
    %c0_i32 = arith.constant 0 : i32
    %c0_i32_0 = arith.constant 0 : i32
    %c0_i32_1 = arith.constant 0 : i32
    return %c0_i32, %c0_i32_0 : i32, i32
  }
  func.func @transform_3(%arg0: i32) -> (i32, i32) {
    %c0_i32 = arith.constant 0 : i32
    %c0_i32_0 = arith.constant 0 : i32
    %c0_i32_1 = arith.constant 0 : i32
    return %c0_i32, %c0_i32_0 : i32, i32
  }
  func.func @transform_4(%arg0: i32) -> (i32, i32) {
    %c0_i32 = arith.constant 0 : i32
    %c0_i32_0 = arith.constant 0 : i32
    %c0_i32_1 = arith.constant 0 : i32
    return %c0_i32, %c0_i32_0 : i32, i32
  }
  func.func @transform_5(%arg0: i32) -> (i32, i32) {
    %c0_i32 = arith.constant 0 : i32
    %c0_i32_0 = arith.constant 0 : i32
    %c0_i32_1 = arith.constant 0 : i32
    return %c0_i32, %c0_i32_0 : i32, i32
  }
  func.func @transform_6(%arg0: i32) -> (i32, i32) {
    %c0_i32 = arith.constant 0 : i32
    %c0_i32_0 = arith.constant 0 : i32
    %c0_i32_1 = arith.constant 0 : i32
    return %c0_i32, %c0_i32_0 : i32, i32
  }
  func.func @transform_7(%arg0: i32) -> (i32, i32, i32) {
    %c0_i32 = arith.constant 0 : i32
    %c0_i32_0 = arith.constant 0 : i32
    %c0_i32_1 = arith.constant 0 : i32
    return %arg0, %c0_i32, %c0_i32_0 : i32, i32, i32
  }
}

</mosaic_0001>

<llo_original>
// kernel: tile.8
$region0: #{tile.8}
  #allocation0 [shape = 's32[1]{0}', space=sflag, size = 0x4, scoped, tag = 'scoped memory for tile.8']
  %s0 = inlined_call_operand.vmem [shape: f32[32], index: 0, kind: input, shape index: {}]
  %s1 = inlined_call_operand.vmem [shape: f32[4,32], index: 1, kind: output, shape index: {}]
  // Predicated region
  $region2: #{tile.8} parent=0 // pred_check
    _
  $region3: #{tile.8} parent=0 // pred_check_branch
    %3 = sbr.rel (0) target = $region5
  $region4: #{tile.8} parent=0 // pred_region
    _
  $region5: #{tile.8} parent=0 // pred_fallthru
    _
  %v4 = vld [vmem:[%s0] ss:$0 sm:$0xff]
  %5 = vst [vmem:[%s1] sm:$0xf] %v4

// kernel: tile.0
$region0: #{tile.0}
  %s0 = inlined_call_operand.vmem [shape: f32[4,32], index: 0, kind: input, shape index: {}]
  %s1 = inlined_call_operand.vmem [shape: f32[128,1], index: 1, kind: output, shape index: {}]
  $region1: #{tile.0} parent=0
    #allocation0 [shape = 'u8[4096]{0}', space=vmem, size = 0x1000, scoped, tag = 'scoped mem for input reshape']
    %s3 = sshll.u32 1, 4
    %s4 = ssub.s32 %s3, 1
    %v5 = vld [vmem:[%s0] sm:%s4]
    %6 = vst [vmem:[#allocation0] sm:%s4] %v5
    %v7 = vld [vmem:[#allocation0] sm:$0xf]
    %vm8 = vcmask 7168
    %9 = vst.msk [vmem:[%s1] sm:$0x1] %vm8, %v7
    %s10 = scalar_lea.vmem %s1, 31
    %11 = vst.msk [vmem:[%s10] sm:$0x2] %vm8, %v7
    %s12 = scalar_lea.vmem %s1, 62
    %13 = vst.msk [vmem:[%s12] sm:$0x4] %vm8, %v7
    %s14 = scalar_lea.vmem %s1, 93
    %15 = vst.msk [vmem:[%s14] sm:$0x8] %vm8, %v7
    %v16 = vld [vmem:[#allocation0] sm:$0xf]
    %17 = vrot.lane.b32.xlu0 %v16, 127
    %v18 = vpop.permute.xlu0 %17
    %vm19 = vcmask 7168
    %s20 = scalar_lea.vmem %s1, 1
    %21 = vst.msk [vmem:[%s20] sm:$0x1] %vm19, %v18
    %s22 = scalar_lea.vmem %s1, 32
    %23 = vst.msk [vmem:[%s22] sm:$0x2] %vm19, %v18
    %s24 = scalar_lea.vmem %s1, 63
    %25 = vst.msk [vmem:[%s24] sm:$0x4] %vm19, %v18
    %s26 = scalar_lea.vmem %s1, 94
    %27 = vst.msk [vmem:[%s26] sm:$0x8] %vm19, %v18
    %v28 = vld [vmem:[#allocation0] sm:$0xf]
    %29 = vrot.lane.b32.xlu0 %v28, 126
    %v30 = vpop.permute.xlu0 %29
    %vm31 = vcmask 7168
    %s32 = scalar_lea.vmem %s1, 2
    %33 = vst.msk [vmem:[%s32] sm:$0x1] %vm31, %v30
    %s34 = scalar_lea.vmem %s1, 33
    %35 = vst.msk [vmem:[%s34] sm:$0x2] %vm31, %v30
    %s36 = scalar_lea.vmem %s1, 64
    %37 = vst.msk [vmem:[%s36] sm:$0x4] %vm31, %v30
    %s38 = scalar_lea.vmem %s1, 95
    %39 = vst.msk [vmem:[%s38] sm:$0x8] %vm31, %v30
    %v40 = vld [vmem:[#allocation0] sm:$0xf]
    %41 = vrot.lane.b32.xlu0 %v40, 125
    %v42 = vpop.permute.xlu0 %41
    %vm43 = vcmask 7168
    %s44 = scalar_lea.vmem %s1, 3
    %45 = vst.msk [vmem:[%s44] sm:$0x1] %vm43, %v42
    %s46 = scalar_lea.vmem %s1, 34
    %47 = vst.msk [vmem:[%s46] sm:$0x2] %vm43, %v42
    %s48 = scalar_lea.vmem %s1, 65
    %49 = vst.msk [vmem:[%s48] sm:$0x4] %vm43, %v42
    %s50 = scalar_lea.vmem %s1, 96
    %51 = vst.msk [vmem:[%s50] sm:$0x8] %vm43, %v42
    %v52 = vld [vmem:[#allocation0] sm:$0xf]
    %53 = vrot.lane.b32.xlu0 %v52, 124
    %v54 = vpop.permute.xlu0 %53
    %vm55 = vcmask 7168
    %s56 = scalar_lea.vmem %s1, 4
    %57 = vst.msk [vmem:[%s56] sm:$0x1] %vm55, %v54
    %s58 = scalar_lea.vmem %s1, 35
    %59 = vst.msk [vmem:[%s58] sm:$0x2] %vm55, %v54
    %s60 = scalar_lea.vmem %s1, 66
    %61 = vst.msk [vmem:[%s60] sm:$0x4] %vm55, %v54
    %s62 = scalar_lea.vmem %s1, 97
    %63 = vst.msk [vmem:[%s62] sm:$0x8] %vm55, %v54
    %v64 = vld [vmem:[#allocation0] sm:$0xf]
    %65 = vrot.lane.b32.xlu0 %v64, 123
    %v66 = vpop.permute.xlu0 %65
    %vm67 = vcmask 7168
    %s68 = scalar_lea.vmem %s1, 5
    %69 = vst.msk [vmem:[%s68] sm:$0x1] %vm67, %v66
    %s70 = scalar_lea.vmem %s1, 36
    %71 = vst.msk [vmem:[%s70] sm:$0x2] %vm67, %v66
    %s72 = scalar_lea.vmem %s1, 67
    %73 = vst.msk [vmem:[%s72] sm:$0x4] %vm67, %v66
    %s74 = scalar_lea.vmem %s1, 98
    %75 = vst.msk [vmem:[%s74] sm:$0x8] %vm67, %v66
    %v76 = vld [vmem:[#allocation0] sm:$0xf]
    %77 = vrot.lane.b32.xlu0 %v76, 122
    %v78 = vpop.permute.xlu0 %77
    %vm79 = vcmask 7168
    %s80 = scalar_lea.vmem %s1, 6
    %81 = vst.msk [vmem:[%s80] sm:$0x1] %vm79, %v78
    %s82 = scalar_lea.vmem %s1, 37
    %83 = vst.msk [vmem:[%s82] sm:$0x2] %vm79, %v78
    %s84 = scalar_lea.vmem %s1, 68
    %85 = vst.msk [vmem:[%s84] sm:$0x4] %vm79, %v78
    %s86 = scalar_lea.vmem %s1, 99
    %87 = vst.msk [vmem:[%s86] sm:$0x8] %vm79, %v78
    %v88 = vld [vmem:[#allocation0] sm:$0xf]
    %89 = vrot.lane.b32.xlu0 %v88, 121
    %v90 = vpop.permute.xlu0 %89
    %vm91 = vcmask 7168
    %s92 = scalar_lea.vmem %s1, 7
    %93 = vst.msk [vmem:[%s92] sm:$0x1] %vm91, %v90
    %s94 = scalar_lea.vmem %s1, 38
    %95 = vst.msk [vmem:[%s94] sm:$0x2] %vm91, %v90
    %s96 = scalar_lea.vmem %s1, 69
    %97 = vst.msk [vmem:[%s96] sm:$0x4] %vm91, %v90
    %s98 = scalar_lea.vmem %s1, 100
    %99 = vst.msk [vmem:[%s98] sm:$0x8] %vm91, %v90
    %v100 = vld [vmem:[#allocation0] sm:$0xf]
    %101 = vrot.lane.b32.xlu0 %v100, 120
    %v102 = vpop.permute.xlu0 %101
    %vm103 = vcmask 7168
    %s104 = scalar_lea.vmem %s1, 8
    %105 = vst.msk [vmem:[%s104] sm:$0x1] %vm103, %v102
    %s106 = scalar_lea.vmem %s1, 39
    %107 = vst.msk [vmem:[%s106] sm:$0x2] %vm103, %v102
    %s108 = scalar_lea.vmem %s1, 70
    %109 = vst.msk [vmem:[%s108] sm:$0x4] %vm103, %v102
    %s110 = scalar_lea.vmem %s1, 101
    %111 = vst.msk [vmem:[%s110] sm:$0x8] %vm103, %v102
    %v112 = vld [vmem:[#allocation0] sm:$0xf]
    %113 = vrot.lane.b32.xlu0 %v112, 119
    %v114 = vpop.permute.xlu0 %113
    %vm115 = vcmask 7168
    %s116 = scalar_lea.vmem %s1, 9
    %117 = vst.msk [vmem:[%s116] sm:$0x1] %vm115, %v114
    %s118 = scalar_lea.vmem %s1, 40
    %119 = vst.msk [vmem:[%s118] sm:$0x2] %vm115, %v114
    %s120 = scalar_lea.vmem %s1, 71
    %121 = vst.msk [vmem:[%s120] sm:$0x4] %vm115, %v114
    %s122 = scalar_lea.vmem %s1, 102
    %123 = vst.msk [vmem:[%s122] sm:$0x8] %vm115, %v114
    %v124 = vld [vmem:[#allocation0] sm:$0xf]
    %125 = vrot.lane.b32.xlu0 %v124, 118
    %v126 = vpop.permute.xlu0 %125
    %vm127 = vcmask 7168
    %s128 = scalar_lea.vmem %s1, 10
    %129 = vst.msk [vmem:[%s128] sm:$0x1] %vm127, %v126
    %s130 = scalar_lea.vmem %s1, 41
    %131 = vst.msk [vmem:[%s130] sm:$0x2] %vm127, %v126
    %s132 = scalar_lea.vmem %s1, 72
    %133 = vst.msk [vmem:[%s132] sm:$0x4] %vm127, %v126
    %s134 = scalar_lea.vmem %s1, 103
    %135 = vst.msk [vmem:[%s134] sm:$0x8] %vm127, %v126
    %v136 = vld [vmem:[#allocation0] sm:$0xf]
    %137 = vrot.lane.b32.xlu0 %v136, 117
    %v138 = vpop.permute.xlu0 %137
    %vm139 = vcmask 7168
    %s140 = scalar_lea.vmem %s1, 11
    %141 = vst.msk [vmem:[%s140] sm:$0x1] %vm139, %v138
    %s142 = scalar_lea.vmem %s1, 42
    %143 = vst.msk [vmem:[%s142] sm:$0x2] %vm139, %v138
    %s144 = scalar_lea.vmem %s1, 73
    %145 = vst.msk [vmem:[%s144] sm:$0x4] %vm139, %v138
    %s146 = scalar_lea.vmem %s1, 104
    %147 = vst.msk [vmem:[%s146] sm:$0x8] %vm139, %v138
    %v148 = vld [vmem:[#allocation0] sm:$0xf]
    %149 = vrot.lane.b32.xlu0 %v148, 116
    %v150 = vpop.permute.xlu0 %149
    %vm151 = vcmask 7168
    %s152 = scalar_lea.vmem %s1, 12
    %153 = vst.msk [vmem:[%s152] sm:$0x1] %vm151, %v150
    %s154 = scalar_lea.vmem %s1, 43
    %155 = vst.msk [vmem:[%s154] sm:$0x2] %vm151, %v150
    %s156 = scalar_lea.vmem %s1, 74
    %157 = vst.msk [vmem:[%s156] sm:$0x4] %vm151, %v150
    %s158 = scalar_lea.vmem %s1, 105
    %159 = vst.msk [vmem:[%s158] sm:$0x8] %vm151, %v150
    %v160 = vld [vmem:[#allocation0] sm:$0xf]
    %161 = vrot.lane.b32.xlu0 %v160, 115
    %v162 = vpop.permute.xlu0 %161
    %vm163 = vcmask 7168
    %s164 = scalar_lea.vmem %s1, 13
    %165 = vst.msk [vmem:[%s164] sm:$0x1] %vm163, %v162
    %s166 = scalar_lea.vmem %s1, 44
    %167 = vst.msk [vmem:[%s166] sm:$0x2] %vm163, %v162
    %s168 = scalar_lea.vmem %s1, 75
    %169 = vst.msk [vmem:[%s168] sm:$0x4] %vm163, %v162
    %s170 = scalar_lea.vmem %s1, 106
    %171 = vst.msk [vmem:[%s170] sm:$0x8] %vm163, %v162
    %v172 = vld [vmem:[#allocation0] sm:$0xf]
    %173 = vrot.lane.b32.xlu0 %v172, 114
    %v174 = vpop.permute.xlu0 %173
    %vm175 = vcmask 7168
    %s176 = scalar_lea.vmem %s1, 14
    %177 = vst.msk [vmem:[%s176] sm:$0x1] %vm175, %v174
    %s178 = scalar_lea.vmem %s1, 45
    %179 = vst.msk [vmem:[%s178] sm:$0x2] %vm175, %v174
    %s180 = scalar_lea.vmem %s1, 76
    %181 = vst.msk [vmem:[%s180] sm:$0x4] %vm175, %v174
    %s182 = scalar_lea.vmem %s1, 107
    %183 = vst.msk [vmem:[%s182] sm:$0x8] %vm175, %v174
    %v184 = vld [vmem:[#allocation0] sm:$0xf]
    %185 = vrot.lane.b32.xlu0 %v184, 113
    %v186 = vpop.permute.xlu0 %185
    %vm187 = vcmask 7168
    %s188 = scalar_lea.vmem %s1, 15
    %189 = vst.msk [vmem:[%s188] sm:$0x1] %vm187, %v186
    %s190 = scalar_lea.vmem %s1, 46
    %191 = vst.msk [vmem:[%s190] sm:$0x2] %vm187, %v186
    %s192 = scalar_lea.vmem %s1, 77
    %193 = vst.msk [vmem:[%s192] sm:$0x4] %vm187, %v186
    %s194 = scalar_lea.vmem %s1, 108
    %195 = vst.msk [vmem:[%s194] sm:$0x8] %vm187, %v186
    %v196 = vld [vmem:[#allocation0] sm:$0xf]
    %197 = vrot.lane.b32.xlu0 %v196, 112
    %v198 = vpop.permute.xlu0 %197
    %vm199 = vcmask 7168
    %s200 = scalar_lea.vmem %s1, 16
    %201 = vst.msk [vmem:[%s200] sm:$0x1] %vm199, %v198
    %s202 = scalar_lea.vmem %s1, 47
    %203 = vst.msk [vmem:[%s202] sm:$0x2] %vm199, %v198
    %s204 = scalar_lea.vmem %s1, 78
    %205 = vst.msk [vmem:[%s204] sm:$0x4] %vm199, %v198
    %s206 = scalar_lea.vmem %s1, 109
    %207 = vst.msk [vmem:[%s206] sm:$0x8] %vm199, %v198
    %v208 = vld [vmem:[#allocation0] sm:$0xf]
    %209 = vrot.lane.b32.xlu0 %v208, 111
    %v210 = vpop.permute.xlu0 %209
    %vm211 = vcmask 7168
    %s212 = scalar_lea.vmem %s1, 17
    %213 = vst.msk [vmem:[%s212] sm:$0x1] %vm211, %v210
    %s214 = scalar_lea.vmem %s1, 48
    %215 = vst.msk [vmem:[%s214] sm:$0x2] %vm211, %v210
    %s216 = scalar_lea.vmem %s1, 79
    %217 = vst.msk [vmem:[%s216] sm:$0x4] %vm211, %v210
    %s218 = scalar_lea.vmem %s1, 110
    %219 = vst.msk [vmem:[%s218] sm:$0x8] %vm211, %v210
    %v220 = vld [vmem:[#allocation0] sm:$0xf]
    %221 = vrot.lane.b32.xlu0 %v220, 110
    %v222 = vpop.permute.xlu0 %221
    %vm223 = vcmask 7168
    %s224 = scalar_lea.vmem %s1, 18
    %225 = vst.msk [vmem:[%s224] sm:$0x1] %vm223, %v222
    %s226 = scalar_lea.vmem %s1, 49
    %227 = vst.msk [vmem:[%s226] sm:$0x2] %vm223, %v222
    %s228 = scalar_lea.vmem %s1, 80
    %229 = vst.msk [vmem:[%s228] sm:$0x4] %vm223, %v222
    %s230 = scalar_lea.vmem %s1, 111
    %231 = vst.msk [vmem:[%s230] sm:$0x8] %vm223, %v222
    %v232 = vld [vmem:[#allocation0] sm:$0xf]
    %233 = vrot.lane.b32.xlu0 %v232, 109
    %v234 = vpop.permute.xlu0 %233
    %vm235 = vcmask 7168
    %s236 = scalar_lea.vmem %s1, 19
    %237 = vst.msk [vmem:[%s236] sm:$0x1] %vm235, %v234
    %s238 = scalar_lea.vmem %s1, 50
    %239 = vst.msk [vmem:[%s238] sm:$0x2] %vm235, %v234
    %s240 = scalar_lea.vmem %s1, 81
    %241 = vst.msk [vmem:[%s240] sm:$0x4] %vm235, %v234
    %s242 = scalar_lea.vmem %s1, 112
    %243 = vst.msk [vmem:[%s242] sm:$0x8] %vm235, %v234
    %v244 = vld [vmem:[#allocation0] sm:$0xf]
    %245 = vrot.lane.b32.xlu0 %v244, 108
    %v246 = vpop.permute.xlu0 %245
    %vm247 = vcmask 7168
    %s248 = scalar_lea.vmem %s1, 20
    %249 = vst.msk [vmem:[%s248] sm:$0x1] %vm247, %v246
    %s250 = scalar_lea.vmem %s1, 51
    %251 = vst.msk [vmem:[%s250] sm:$0x2] %vm247, %v246
    %s252 = scalar_lea.vmem %s1, 82
    %253 = vst.msk [vmem:[%s252] sm:$0x4] %vm247, %v246
    %s254 = scalar_lea.vmem %s1, 113
    %255 = vst.msk [vmem:[%s254] sm:$0x8] %vm247, %v246
    %v256 = vld [vmem:[#allocation0] sm:$0xf]
    %257 = vrot.lane.b32.xlu0 %v256, 107
    %v258 = vpop.permute.xlu0 %257
    %vm259 = vcmask 7168
    %s260 = scalar_lea.vmem %s1, 21
    %261 = vst.msk [vmem:[%s260] sm:$0x1] %vm259, %v258
    %s262 = scalar_lea.vmem %s1, 52
    %263 = vst.msk [vmem:[%s262] sm:$0x2] %vm259, %v258
    %s264 = scalar_lea.vmem %s1, 83
    %265 = vst.msk [vmem:[%s264] sm:$0x4] %vm259, %v258
    %s266 = scalar_lea.vmem %s1, 114
    %267 = vst.msk [vmem:[%s266] sm:$0x8] %vm259, %v258
    %v268 = vld [vmem:[#allocation0] sm:$0xf]
    %269 = vrot.lane.b32.xlu0 %v268, 106
    %v270 = vpop.permute.xlu0 %269
    %vm271 = vcmask 7168
    %s272 = scalar_lea.vmem %s1, 22
    %273 = vst.msk [vmem:[%s272] sm:$0x1] %vm271, %v270
    %s274 = scalar_lea.vmem %s1, 53
    %275 = vst.msk [vmem:[%s274] sm:$0x2] %vm271, %v270
    %s276 = scalar_lea.vmem %s1, 84
    %277 = vst.msk [vmem:[%s276] sm:$0x4] %vm271, %v270
    %s278 = scalar_lea.vmem %s1, 115
    %279 = vst.msk [vmem:[%s278] sm:$0x8] %vm271, %v270
    %v280 = vld [vmem:[#allocation0] sm:$0xf]
    %281 = vrot.lane.b32.xlu0 %v280, 105
    %v282 = vpop.permute.xlu0 %281
    %vm283 = vcmask 7168
    %s284 = scalar_lea.vmem %s1, 23
    %285 = vst.msk [vmem:[%s284] sm:$0x1] %vm283, %v282
    %s286 = scalar_lea.vmem %s1, 54
    %287 = vst.msk [vmem:[%s286] sm:$0x2] %vm283, %v282
    %s288 = scalar_lea.vmem %s1, 85
    %289 = vst.msk [vmem:[%s288] sm:$0x4] %vm283, %v282
    %s290 = scalar_lea.vmem %s1, 116
    %291 = vst.msk [vmem:[%s290] sm:$0x8] %vm283, %v282
    %v292 = vld [vmem:[#allocation0] sm:$0xf]
    %293 = vrot.lane.b32.xlu0 %v292, 104
    %v294 = vpop.permute.xlu0 %293
    %vm295 = vcmask 7168
    %s296 = scalar_lea.vmem %s1, 24
    %297 = vst.msk [vmem:[%s296] sm:$0x1] %vm295, %v294
    %s298 = scalar_lea.vmem %s1, 55
    %299 = vst.msk [vmem:[%s298] sm:$0x2] %vm295, %v294
    %s300 = scalar_lea.vmem %s1, 86
    %301 = vst.msk [vmem:[%s300] sm:$0x4] %vm295, %v294
    %s302 = scalar_lea.vmem %s1, 117
    %303 = vst.msk [vmem:[%s302] sm:$0x8] %vm295, %v294
    %v304 = vld [vmem:[#allocation0] sm:$0xf]
    %305 = vrot.lane.b32.xlu0 %v304, 103
    %v306 = vpop.permute.xlu0 %305
    %vm307 = vcmask 7168
    %s308 = scalar_lea.vmem %s1, 25
    %309 = vst.msk [vmem:[%s308] sm:$0x1] %vm307, %v306
    %s310 = scalar_lea.vmem %s1, 56
    %311 = vst.msk [vmem:[%s310] sm:$0x2] %vm307, %v306
    %s312 = scalar_lea.vmem %s1, 87
    %313 = vst.msk [vmem:[%s312] sm:$0x4] %vm307, %v306
    %s314 = scalar_lea.vmem %s1, 118
    %315 = vst.msk [vmem:[%s314] sm:$0x8] %vm307, %v306
    %v316 = vld [vmem:[#allocation0] sm:$0xf]
    %317 = vrot.lane.b32.xlu0 %v316, 102
    %v318 = vpop.permute.xlu0 %317
    %vm319 = vcmask 7168
    %s320 = scalar_lea.vmem %s1, 26
    %321 = vst.msk [vmem:[%s320] sm:$0x1] %vm319, %v318
    %s322 = scalar_lea.vmem %s1, 57
    %323 = vst.msk [vmem:[%s322] sm:$0x2] %vm319, %v318
    %s324 = scalar_lea.vmem %s1, 88
    %325 = vst.msk [vmem:[%s324] sm:$0x4] %vm319, %v318
    %s326 = scalar_lea.vmem %s1, 119
    %327 = vst.msk [vmem:[%s326] sm:$0x8] %vm319, %v318
    %v328 = vld [vmem:[#allocation0] sm:$0xf]
    %329 = vrot.lane.b32.xlu0 %v328, 101
    %v330 = vpop.permute.xlu0 %329
    %vm331 = vcmask 7168
    %s332 = scalar_lea.vmem %s1, 27
    %333 = vst.msk [vmem:[%s332] sm:$0x1] %vm331, %v330
    %s334 = scalar_lea.vmem %s1, 58
    %335 = vst.msk [vmem:[%s334] sm:$0x2] %vm331, %v330
    %s336 = scalar_lea.vmem %s1, 89
    %337 = vst.msk [vmem:[%s336] sm:$0x4] %vm331, %v330
    %s338 = scalar_lea.vmem %s1, 120
    %339 = vst.msk [vmem:[%s338] sm:$0x8] %vm331, %v330
    %v340 = vld [vmem:[#allocation0] sm:$0xf]
    %341 = vrot.lane.b32.xlu0 %v340, 100
    %v342 = vpop.permute.xlu0 %341
    %vm343 = vcmask 7168
    %s344 = scalar_lea.vmem %s1, 28
    %345 = vst.msk [vmem:[%s344] sm:$0x1] %vm343, %v342
    %s346 = scalar_lea.vmem %s1, 59
    %347 = vst.msk [vmem:[%s346] sm:$0x2] %vm343, %v342
    %s348 = scalar_lea.vmem %s1, 90
    %349 = vst.msk [vmem:[%s348] sm:$0x4] %vm343, %v342
    %s350 = scalar_lea.vmem %s1, 121
    %351 = vst.msk [vmem:[%s350] sm:$0x8] %vm343, %v342
    %v352 = vld [vmem:[#allocation0] sm:$0xf]
    %353 = vrot.lane.b32.xlu0 %v352, 99
    %v354 = vpop.permute.xlu0 %353
    %vm355 = vcmask 7168
    %s356 = scalar_lea.vmem %s1, 29
    %357 = vst.msk [vmem:[%s356] sm:$0x1] %vm355, %v354
    %s358 = scalar_lea.vmem %s1, 60
    %359 = vst.msk [vmem:[%s358] sm:$0x2] %vm355, %v354
    %s360 = scalar_lea.vmem %s1, 91
    %361 = vst.msk [vmem:[%s360] sm:$0x4] %vm355, %v354
    %s362 = scalar_lea.vmem %s1, 122
    %363 = vst.msk [vmem:[%s362] sm:$0x8] %vm355, %v354
    %v364 = vld [vmem:[#allocation0] sm:$0xf]
    %365 = vrot.lane.b32.xlu0 %v364, 98
    %v366 = vpop.permute.xlu0 %365
    %vm367 = vcmask 7168
    %s368 = scalar_lea.vmem %s1, 30
    %369 = vst.msk [vmem:[%s368] sm:$0x1] %vm367, %v366
    %s370 = scalar_lea.vmem %s1, 61
    %371 = vst.msk [vmem:[%s370] sm:$0x2] %vm367, %v366
    %s372 = scalar_lea.vmem %s1, 92
    %373 = vst.msk [vmem:[%s372] sm:$0x4] %vm367, %v366
    %s374 = scalar_lea.vmem %s1, 123
    %375 = vst.msk [vmem:[%s374] sm:$0x8] %vm367, %v366
    %v376 = vld [vmem:[#allocation0] sm:$0xf]
    %377 = vrot.lane.b32.xlu0 %v376, 97
    %v378 = vpop.permute.xlu0 %377
    %vm379 = vcmask 7168
    %s380 = scalar_lea.vmem %s1, 31
    %381 = vst.msk [vmem:[%s380] sm:$0x1] %vm379, %v378
    %s382 = scalar_lea.vmem %s1, 62
    %383 = vst.msk [vmem:[%s382] sm:$0x2] %vm379, %v378
    %s384 = scalar_lea.vmem %s1, 93
    %385 = vst.msk [vmem:[%s384] sm:$0x4] %vm379, %v378
    %s386 = scalar_lea.vmem %s1, 124
    %387 = vst.msk [vmem:[%s386] sm:$0x8] %vm379, %v378

// kernel: nature_cnn_forward.1
$region0: #{nature_cnn_forward.1}
  #allocation0 [shape = 'u32[]', space=smem, size = 0x4, offset = 0x4, fixed_abs, tag = 'smem constant byte address 0x4 - core index']
  #allocation1 [shape = 'u32[144,128]{1,0:T(1,128)}', space=vmem, size = 0x12000, scoped, tag = 'internal scratch']
  #allocation2 [shape = 'bf16[128,384]{1,0:T(8,128)(2,1)}', space=vmem, size = 0x18000, scoped, tag = 'scratch operand']
  #allocation3 [shape = 'bf16[64,384]{1,0:T(8,128)(2,1)}', space=vmem, size = 0xc000, scoped, tag = 'scratch operand']
  %s0 = inlined_call_operand.vmem [shape: bf16[1,256,384], index: 0, kind: input, shape index: {}]
  %s1 = inlined_call_operand.vmem [shape: bf16[128,1024], index: 1, kind: input, shape index: {}]
  %s2 = inlined_call_operand.vmem [shape: bf16[64,512], index: 2, kind: input, shape index: {}]
  %s3 = inlined_call_operand.vmem [shape: bf16[64,576], index: 3, kind: input, shape index: {}]
  %s4 = inlined_call_operand.vmem [shape: f32[128,1], index: 4, kind: input, shape index: {}]
  %s5 = inlined_call_operand.vmem [shape: f32[64,1], index: 5, kind: input, shape index: {}]
  %s6 = inlined_call_operand.vmem [shape: f32[64,1], index: 6, kind: input, shape index: {}]
  %s7 = inlined_call_operand.vmem [shape: f32[1,64,256], index: 7, kind: output, shape index: {}]
  %s8 = sld [smem:[#allocation0]]
  $region38: #{nature_cnn_forward.1} parent=0
    _
  %s10 = ssub.s32 1, %s8
  %s11 = scalar_select 0, %s10, %s8
  // Predicated region
  $region2: #{nature_cnn_forward.1} parent=0 // pred_check
    _
  $region3: #{nature_cnn_forward.1} parent=0 // pred_check_branch
    %13 = sbr.rel (0) target = $region5
  $region4: #{nature_cnn_forward.1} parent=0 // pred_region
    _
  $region5: #{nature_cnn_forward.1} parent=0 // pred_fallthru
    _
  // Predicated region
  $region6: #{nature_cnn_forward.1} parent=0 // pred_check
    _
  $region7: #{nature_cnn_forward.1} parent=0 // pred_check_branch
    %15 = sbr.rel (0) target = $region9
  $region8: #{nature_cnn_forward.1} parent=0 // pred_region
    _
  $region9: #{nature_cnn_forward.1} parent=0 // pred_fallthru
    _
  // Predicated region
  $region10: #{nature_cnn_forward.1} parent=0 // pred_check
    _
  $region11: #{nature_cnn_forward.1} parent=0 // pred_check_branch
    %17 = sbr.rel (0) target = $region13
  $region12: #{nature_cnn_forward.1} parent=0 // pred_region
    _
  $region13: #{nature_cnn_forward.1} parent=0 // pred_fallthru
    _
  // Predicated region
  $region14: #{nature_cnn_forward.1} parent=0 // pred_check
    _
  $region15: #{nature_cnn_forward.1} parent=0 // pred_check_branch
    %19 = sbr.rel (0) target = $region17
  $region16: #{nature_cnn_forward.1} parent=0 // pred_region
    _
  $region17: #{nature_cnn_forward.1} parent=0 // pred_fallthru
    _
  // Predicated region
  $region18: #{nature_cnn_forward.1} parent=0 // pred_check
    _
  $region19: #{nature_cnn_forward.1} parent=0 // pred_check_branch
    %21 = sbr.rel (0) target = $region21
  $region20: #{nature_cnn_forward.1} parent=0 // pred_region
    _
  $region21: #{nature_cnn_forward.1} parent=0 // pred_fallthru
    _
  // Predicated region
  $region22: #{nature_cnn_forward.1} parent=0 // pred_check
    _
  $region23: #{nature_cnn_forward.1} parent=0 // pred_check_branch
    %23 = sbr.rel (0) target = $region25
  $region24: #{nature_cnn_forward.1} parent=0 // pred_region
    _
  $region25: #{nature_cnn_forward.1} parent=0 // pred_fallthru
    _
  // Predicated region
  $region26: #{nature_cnn_forward.1} parent=0 // pred_check
    _
  $region27: #{nature_cnn_forward.1} parent=0 // pred_check_branch
    %25 = sbr.rel (0) target = $region29
  $region28: #{nature_cnn_forward.1} parent=0 // pred_region
    _
  $region29: #{nature_cnn_forward.1} parent=0 // pred_fallthru
    _
  %v27 = vld [vmem:[%s0] sm:$0xff]
  %v28 = vld [vmem:[%s0 + $0xc] sm:$0xff]
  %v29 = vld [vmem:[%s0 + $0x18] sm:$0xff]
  %v30 = vld [vmem:[%s0 + $0x24] sm:$0xff]
  %v31 = vld [vmem:[%s0 + $0x30] sm:$0xff]
  %v32 = vld [vmem:[%s0 + $0x3c] sm:$0xff]
  %v33 = vld [vmem:[%s0 + $0x48] sm:$0xff]
  %v34 = vld [vmem:[%s0 + $0x54] sm:$0xff]
  %v35 = vld [vmem:[%s0 + $0x60] sm:$0xff]
  %v36 = vld [vmem:[%s0 + $0x6c] sm:$0xff]
  %v37 = vld [vmem:[%s0 + $0x78] sm:$0xff]
  %v38 = vld [vmem:[%s0 + $0x84] sm:$0xff]
  %v39 = vld [vmem:[%s0 + $0x90] sm:$0xff]
  %v40 = vld [vmem:[%s0 + $0x9c] sm:$0xff]
  %v41 = vld [vmem:[%s0 + $0xa8] sm:$0xff]
  %v42 = vld [vmem:[%s0 + $0xb4] sm:$0xff]
  %v43 = vld [vmem:[%s0 + $0xc0] sm:$0xff]
  %v44 = vld [vmem:[%s0 + $0xcc] sm:$0xff]
  %v45 = vld [vmem:[%s0 + $0xd8] sm:$0xff]
  %v46 = vld [vmem:[%s0 + $0xe4] sm:$0xff]
  %v47 = vld [vmem:[%s0 + $0xf0] sm:$0xff]
  %v48 = vld [vmem:[%s0 + $0xfc] sm:$0xff]
  %v49 = vld [vmem:[%s0 + $0x108] sm:$0xff]
  %v50 = vld [vmem:[%s0 + $0x114] sm:$0xff]
  %v51 = vld [vmem:[%s0 + $0x120] sm:$0xff]
  %v52 = vld [vmem:[%s0 + $0x12c] sm:$0xff]
  %v53 = vld [vmem:[%s0 + $0x138] sm:$0xff]
  %v54 = vld [vmem:[%s0 + $0x144] sm:$0xff]
  %v55 = vld [vmem:[%s0 + $0x150] sm:$0xff]
  %v56 = vld [vmem:[%s0 + $0x15c] sm:$0xff]
  %v57 = vld [vmem:[%s0 + $0x168] sm:$0xff]
  %v58 = vld [vmem:[%s0 + $0x174] sm:$0xff]
  %v59 = vld [vmem:[%s0] sm:$0xff]
  %v60 = vld [vmem:[%s0 + $0x8] sm:$0xf]
  %v61 = vld [vmem:[%s0 + $0xc] sm:$0xff]
  %v62 = vld [vmem:[%s0 + $0x14] sm:$0xf]
  %v63 = vld [vmem:[%s0 + $0x18] sm:$0xff]
  %v64 = vld [vmem:[%s0 + $0x20] sm:$0xf]
  %v65 = vld [vmem:[%s0 + $0x24] sm:$0xff]
  %v66 = vld [vmem:[%s0 + $0x2c] sm:$0xf]
  %v67 = vld [vmem:[%s0 + $0x30] sm:$0xff]
  %v68 = vld [vmem:[%s0 + $0x38] sm:$0xf]
  %v69 = vld [vmem:[%s0 + $0x3c] sm:$0xff]
  %v70 = vld [vmem:[%s0 + $0x44] sm:$0xf]
  %v71 = vld [vmem:[%s0 + $0x48] sm:$0xff]
  %v72 = vld [vmem:[%s0 + $0x50] sm:$0xf]
  %v73 = vld [vmem:[%s0 + $0x54] sm:$0xff]
  %v74 = vld [vmem:[%s0 + $0x5c] sm:$0xf]
  %v75 = vld [vmem:[%s0 + $0x60] sm:$0xff]
  %v76 = vld [vmem:[%s0 + $0x68] sm:$0xf]
  %v77 = vld [vmem:[%s0 + $0x6c] sm:$0xff]
  %v78 = vld [vmem:[%s0 + $0x74] sm:$0xf]
  %v79 = vld [vmem:[%s0 + $0x78] sm:$0xff]
  %v80 = vld [vmem:[%s0 + $0x80] sm:$0xf]
  %v81 = vld [vmem:[%s0 + $0x84] sm:$0xff]
  %v82 = vld [vmem:[%s0 + $0x8c] sm:$0xf]
  %v83 = vld [vmem:[%s0 + $0x90] sm:$0xff]
  %v84 = vld [vmem:[%s0 + $0x98] sm:$0xf]
  %v85 = vld [vmem:[%s0 + $0x9c] sm:$0xff]
  %v86 = vld [vmem:[%s0 + $0xa4] sm:$0xf]
  %v87 = vld [vmem:[%s0 + $0xa8] sm:$0xff]
  %v88 = vld [vmem:[%s0 + $0xb0] sm:$0xf]
  %v89 = vld [vmem:[%s0 + $0xb4] sm:$0xff]
  %v90 = vld [vmem:[%s0 + $0xbc] sm:$0xf]
  %v91 = vld [vmem:[%s0 + $0xc0] sm:$0xff]
  %v92 = vld [vmem:[%s0 + $0xc8] sm:$0xf]
  %v93 = vld [vmem:[%s0 + $0xcc] sm:$0xff]
  %v94 = vld [vmem:[%s0 + $0xd4] sm:$0xf]
  %v95 = vld [vmem:[%s0 + $0xd8] sm:$0xff]
  %v96 = vld [vmem:[%s0 + $0xe0] sm:$0xf]
  %v97 = vld [vmem:[%s0 + $0xe4] sm:$0xff]
  %v98 = vld [vmem:[%s0 + $0xec] sm:$0xf]
  %v99 = vld [vmem:[%s0 + $0xf0] sm:$0xff]
  %v100 = vld [vmem:[%s0 + $0xf8] sm:$0xf]
  %v101 = vld [vmem:[%s0 + $0xfc] sm:$0xff]
  %v102 = vld [vmem:[%s0 + $0x104] sm:$0xf]
  %v103 = vld [vmem:[%s0 + $0x108] sm:$0xff]
  %v104 = vld [vmem:[%s0 + $0x110] sm:$0xf]
  %v105 = vld [vmem:[%s0 + $0x114] sm:$0xff]
  %v106 = vld [vmem:[%s0 + $0x11c] sm:$0xf]
  %v107 = vld [vmem:[%s0 + $0x120] sm:$0xff]
  %v108 = vld [vmem:[%s0 + $0x128] sm:$0xf]
  %v109 = vld [vmem:[%s0 + $0x12c] sm:$0xff]
  %v110 = vld [vmem:[%s0 + $0x134] sm:$0xf]
  %v111 = vld [vmem:[%s0 + $0x138] sm:$0xff]
  %v112 = vld [vmem:[%s0 + $0x140] sm:$0xf]
  %v113 = vld [vmem:[%s0 + $0x144] sm:$0xff]
  %v114 = vld [vmem:[%s0 + $0x14c] sm:$0xf]
  %v115 = vld [vmem:[%s0 + $0x150] sm:$0xff]
  %v116 = vld [vmem:[%s0 + $0x158] sm:$0xf]
  %v117 = vld [vmem:[%s0 + $0x15c] sm:$0xff]
  %v118 = vld [vmem:[%s0 + $0x164] sm:$0xf]
  %v119 = vld [vmem:[%s0 + $0x168] sm:$0xff]
  %v120 = vld [vmem:[%s0 + $0x170] sm:$0xf]
  %v121 = vld [vmem:[%s0 + $0x174] sm:$0xff]
  %v122 = vld [vmem:[%s0 + $0x17c] sm:$0xf]
  %v155 = vunpack.c.l.b16 %v27
  %v156 = vunpack.c.h.b16 %v27
  %v157 = vunpack.c.l.b16 %v28
  %v158 = vunpack.c.h.b16 %v28
  %v159 = vunpack.c.l.b16 %v29
  %v160 = vunpack.c.h.b16 %v29
  %v161 = vunpack.c.l.b16 %v30
  %v162 = vunpack.c.h.b16 %v30
  %v163 = vunpack.c.l.b16 %v31
  %v164 = vunpack.c.h.b16 %v31
  %v165 = vunpack.c.l.b16 %v32
  %v166 = vunpack.c.h.b16 %v32
  %v167 = vunpack.c.l.b16 %v33
  %v168 = vunpack.c.h.b16 %v33
  %v169 = vunpack.c.l.b16 %v34
  %v170 = vunpack.c.h.b16 %v34
  %v171 = vunpack.c.l.b16 %v35
  %v172 = vunpack.c.h.b16 %v35
  %v173 = vunpack.c.l.b16 %v36
  %v174 = vunpack.c.h.b16 %v36
  %v175 = vunpack.c.l.b16 %v37
  %v176 = vunpack.c.h.b16 %v37
  %v177 = vunpack.c.l.b16 %v38
  %v178 = vunpack.c.h.b16 %v38
  %v179 = vunpack.c.l.b16 %v39
  %v180 = vunpack.c.h.b16 %v39
  %v181 = vunpack.c.l.b16 %v40
  %v182 = vunpack.c.h.b16 %v40
  %v183 = vunpack.c.l.b16 %v41
  %v184 = vunpack.c.h.b16 %v41
  %v185 = vunpack.c.l.b16 %v42
  %v186 = vunpack.c.h.b16 %v42
  %v187 = vunpack.c.l.b16 %v43
  %v188 = vunpack.c.h.b16 %v43
  %v189 = vunpack.c.l.b16 %v44
  %v190 = vunpack.c.h.b16 %v44
  %v191 = vunpack.c.l.b16 %v45
  %v192 = vunpack.c.h.b16 %v45
  %v193 = vunpack.c.l.b16 %v46
  %v194 = vunpack.c.h.b16 %v46
  %v195 = vunpack.c.l.b16 %v47
  %v196 = vunpack.c.h.b16 %v47
  %v197 = vunpack.c.l.b16 %v48
  %v198 = vunpack.c.h.b16 %v48
  %v199 = vunpack.c.l.b16 %v49
  %v200 = vunpack.c.h.b16 %v49
  %v201 = vunpack.c.l.b16 %v50
  %v202 = vunpack.c.h.b16 %v50
  %v203 = vunpack.c.l.b16 %v51
  %v204 = vunpack.c.h.b16 %v51
  %v205 = vunpack.c.l.b16 %v52
  %v206 = vunpack.c.h.b16 %v52
  %v207 = vunpack.c.l.b16 %v53
  %v208 = vunpack.c.h.b16 %v53
  %v209 = vunpack.c.l.b16 %v54
  %v210 = vunpack.c.h.b16 %v54
  %v211 = vunpack.c.l.b16 %v55
  %v212 = vunpack.c.h.b16 %v55
  %v213 = vunpack.c.l.b16 %v56
  %v214 = vunpack.c.h.b16 %v56
  %v215 = vunpack.c.l.b16 %v57
  %v216 = vunpack.c.h.b16 %v57
  %v217 = vunpack.c.l.b16 %v58
  %v218 = vunpack.c.h.b16 %v58
  %v219 = vpack.c.b16 %v157, %v155
  %v220 = vpack.c.b16 %v158, %v156
  %v221 = vpack.c.b16 %v161, %v159
  %v222 = vpack.c.b16 %v162, %v160
  %v223 = vpack.c.b16 %v165, %v163
  %v224 = vpack.c.b16 %v166, %v164
  %v225 = vpack.c.b16 %v169, %v167
  %v226 = vpack.c.b16 %v170, %v168
  %v227 = vpack.c.b16 %v173, %v171
  %v228 = vpack.c.b16 %v174, %v172
  %v229 = vpack.c.b16 %v177, %v175
  %v230 = vpack.c.b16 %v178, %v176
  %v231 = vpack.c.b16 %v181, %v179
  %v232 = vpack.c.b16 %v182, %v180
  %v233 = vpack.c.b16 %v185, %v183
  %v234 = vpack.c.b16 %v186, %v184
  %v235 = vpack.c.b16 %v189, %v187
  %v236 = vpack.c.b16 %v190, %v188
  %v237 = vpack.c.b16 %v193, %v191
  %v238 = vpack.c.b16 %v194, %v192
  %v239 = vpack.c.b16 %v197, %v195
  %v240 = vpack.c.b16 %v198, %v196
  %v241 = vpack.c.b16 %v201, %v199
  %v242 = vpack.c.b16 %v202, %v200
  %v243 = vpack.c.b16 %v205, %v203
  %v244 = vpack.c.b16 %v206, %v204
  %v245 = vpack.c.b16 %v209, %v207
  %v246 = vpack.c.b16 %v210, %v208
  %v247 = vpack.c.b16 %v213, %v211
  %v248 = vpack.c.b16 %v214, %v212
  %v249 = vpack.c.b16 %v217, %v215
  %v250 = vpack.c.b16 %v218, %v216
  %v347 = vunpack.c.l.b16 %v59
  %v348 = vunpack.c.h.b16 %v59
  %v349 = vunpack.c.l.b16 %v60
  %v350 = vunpack.c.l.b16 %v61
  %v351 = vunpack.c.h.b16 %v61
  %v352 = vunpack.c.l.b16 %v62
  %v353 = vunpack.c.l.b16 %v63
  %v354 = vunpack.c.h.b16 %v63
  %v355 = vunpack.c.l.b16 %v64
  %v356 = vunpack.c.l.b16 %v65
  %v357 = vunpack.c.h.b16 %v65
  %v358 = vunpack.c.l.b16 %v66
  %v359 = vunpack.c.l.b16 %v67
  %v360 = vunpack.c.h.b16 %v67
  %v361 = vunpack.c.l.b16 %v68
  %v362 = vunpack.c.l.b16 %v69
  %v363 = vunpack.c.h.b16 %v69
  %v364 = vunpack.c.l.b16 %v70
  %v365 = vunpack.c.l.b16 %v71
  %v366 = vunpack.c.h.b16 %v71
  %v367 = vunpack.c.l.b16 %v72
  %v368 = vunpack.c.l.b16 %v73
  %v369 = vunpack.c.h.b16 %v73
  %v370 = vunpack.c.l.b16 %v74
  %v371 = vunpack.c.l.b16 %v75
  %v372 = vunpack.c.h.b16 %v75
  %v373 = vunpack.c.l.b16 %v76
  %v374 = vunpack.c.l.b16 %v77
  %v375 = vunpack.c.h.b16 %v77
  %v376 = vunpack.c.l.b16 %v78
  %v377 = vunpack.c.l.b16 %v79
  %v378 = vunpack.c.h.b16 %v79
  %v379 = vunpack.c.l.b16 %v80
  %v380 = vunpack.c.l.b16 %v81
  %v381 = vunpack.c.h.b16 %v81
  %v382 = vunpack.c.l.b16 %v82
  %v383 = vunpack.c.l.b16 %v83
  %v384 = vunpack.c.h.b16 %v83
  %v385 = vunpack.c.l.b16 %v84
  %v386 = vunpack.c.l.b16 %v85
  %v387 = vunpack.c.h.b16 %v85
  %v388 = vunpack.c.l.b16 %v86
  %v389 = vunpack.c.l.b16 %v87
  %v390 = vunpack.c.h.b16 %v87
  %v391 = vunpack.c.l.b16 %v88
  %v392 = vunpack.c.l.b16 %v89
  %v393 = vunpack.c.h.b16 %v89
  %v394 = vunpack.c.l.b16 %v90
  %v395 = vunpack.c.l.b16 %v91
  %v396 = vunpack.c.h.b16 %v91
  %v397 = vunpack.c.l.b16 %v92
  %v398 = vunpack.c.l.b16 %v93
  %v399 = vunpack.c.h.b16 %v93
  %v400 = vunpack.c.l.b16 %v94
  %v401 = vunpack.c.l.b16 %v95
  %v402 = vunpack.c.h.b16 %v95
  %v403 = vunpack.c.l.b16 %v96
  %v404 = vunpack.c.l.b16 %v97
  %v405 = vunpack.c.h.b16 %v97
  %v406 = vunpack.c.l.b16 %v98
  %v407 = vunpack.c.l.b16 %v99
  %v408 = vunpack.c.h.b16 %v99
  %v409 = vunpack.c.l.b16 %v100
  %v410 = vunpack.c.l.b16 %v101
  %v411 = vunpack.c.h.b16 %v101
  %v412 = vunpack.c.l.b16 %v102
  %v413 = vunpack.c.l.b16 %v103
  %v414 = vunpack.c.h.b16 %v103
  %v415 = vunpack.c.l.b16 %v104
  %v416 = vunpack.c.l.b16 %v105
  %v417 = vunpack.c.h.b16 %v105
  %v418 = vunpack.c.l.b16 %v106
  %v419 = vunpack.c.l.b16 %v107
  %v420 = vunpack.c.h.b16 %v107
  %v421 = vunpack.c.l.b16 %v108
  %v422 = vunpack.c.l.b16 %v109
  %v423 = vunpack.c.h.b16 %v109
  %v424 = vunpack.c.l.b16 %v110
  %v425 = vunpack.c.l.b16 %v111
  %v426 = vunpack.c.h.b16 %v111
  %v427 = vunpack.c.l.b16 %v112
  %v428 = vunpack.c.l.b16 %v113
  %v429 = vunpack.c.h.b16 %v113
  %v430 = vunpack.c.l.b16 %v114
  %v431 = vunpack.c.l.b16 %v115
  %v432 = vunpack.c.h.b16 %v115
  %v433 = vunpack.c.l.b16 %v116
  %v434 = vunpack.c.l.b16 %v117
  %v435 = vunpack.c.h.b16 %v117
  %v436 = vunpack.c.l.b16 %v118
  %v437 = vunpack.c.l.b16 %v119
  %v438 = vunpack.c.h.b16 %v119
  %v439 = vunpack.c.l.b16 %v120
  %v440 = vunpack.c.l.b16 %v121
  %v441 = vunpack.c.h.b16 %v121
  %v442 = vunpack.c.l.b16 %v122
  %v443 = vpack.c.b16 %v350, %v347
  %v444 = vpack.c.b16 %v351, %v348
  %v445 = vpack.c.b16 %v352, %v349
  %v446 = vpack.c.b16 %v356, %v353
  %v447 = vpack.c.b16 %v357, %v354
  %v448 = vpack.c.b16 %v358, %v355
  %v449 = vpack.c.b16 %v362, %v359
  %v450 = vpack.c.b16 %v363, %v360
  %v451 = vpack.c.b16 %v364, %v361
  %v452 = vpack.c.b16 %v368, %v365
  %v453 = vpack.c.b16 %v369, %v366
  %v454 = vpack.c.b16 %v370, %v367
  %v455 = vpack.c.b16 %v374, %v371
  %v456 = vpack.c.b16 %v375, %v372
  %v457 = vpack.c.b16 %v376, %v373
  %v458 = vpack.c.b16 %v380, %v377
  %v459 = vpack.c.b16 %v381, %v378
  %v460 = vpack.c.b16 %v382, %v379
  %v461 = vpack.c.b16 %v386, %v383
  %v462 = vpack.c.b16 %v387, %v384
  %v463 = vpack.c.b16 %v388, %v385
  %v464 = vpack.c.b16 %v392, %v389
  %v465 = vpack.c.b16 %v393, %v390
  %v466 = vpack.c.b16 %v394, %v391
  %v467 = vpack.c.b16 %v398, %v395
  %v468 = vpack.c.b16 %v399, %v396
  %v469 = vpack.c.b16 %v400, %v397
  %v470 = vpack.c.b16 %v404, %v401
  %v471 = vpack.c.b16 %v405, %v402
  %v472 = vpack.c.b16 %v406, %v403
  %v473 = vpack.c.b16 %v410, %v407
  %v474 = vpack.c.b16 %v411, %v408
  %v475 = vpack.c.b16 %v412, %v409
  %v476 = vpack.c.b16 %v416, %v413
  %v477 = vpack.c.b16 %v417, %v414
  %v478 = vpack.c.b16 %v418, %v415
  %v479 = vpack.c.b16 %v422, %v419
  %v480 = vpack.c.b16 %v423, %v420
  %v481 = vpack.c.b16 %v424, %v421
  %v482 = vpack.c.b16 %v428, %v425
  %v483 = vpack.c.b16 %v429, %v426
  %v484 = vpack.c.b16 %v430, %v427
  %v485 = vpack.c.b16 %v434, %v431
  %v486 = vpack.c.b16 %v435, %v432
  %v487 = vpack.c.b16 %v436, %v433
  %v488 = vpack.c.b16 %v440, %v437
  %v489 = vpack.c.b16 %v441, %v438
  %v490 = vpack.c.b16 %v442, %v439
  %491 = vrot.lane.b32.xlu0 %v443, 127
  %v492 = vpop.permute.xlu0 %491
  %493 = vrot.lane.b32.xlu0 %v444, 127
  %v494 = vpop.permute.xlu0 %493
  %495 = vrot.lane.b32.xlu0 %v445, 127
  %v496 = vpop.permute.xlu0 %495
  %497 = vrot.lane.b32.xlu0 %v446, 127
  %v498 = vpop.permute.xlu0 %497
  %499 = vrot.lane.b32.xlu0 %v447, 127
  %v500 = vpop.permute.xlu0 %499
  %501 = vrot.lane.b32.xlu0 %v448, 127
  %v502 = vpop.permute.xlu0 %501
  %503 = vrot.lane.b32.xlu0 %v449, 127
  %v504 = vpop.permute.xlu0 %503
  %505 = vrot.lane.b32.xlu0 %v450, 127
  %v506 = vpop.permute.xlu0 %505
  %507 = vrot.lane.b32.xlu0 %v451, 127
  %v508 = vpop.permute.xlu0 %507
  %509 = vrot.lane.b32.xlu0 %v452, 127
  %v510 = vpop.permute.xlu0 %509
  %511 = vrot.lane.b32.xlu0 %v453, 127
  %v512 = vpop.permute.xlu0 %511
  %513 = vrot.lane.b32.xlu0 %v454, 127
  %v514 = vpop.permute.xlu0 %513
  %515 = vrot.lane.b32.xlu0 %v455, 127
  %v516 = vpop.permute.xlu0 %515
  %517 = vrot.lane.b32.xlu0 %v456, 127
  %v518 = vpop.permute.xlu0 %517
  %519 = vrot.lane.b32.xlu0 %v457, 127
  %v520 = vpop.permute.xlu0 %519
  %521 = vrot.lane.b32.xlu0 %v458, 127
  %v522 = vpop.permute.xlu0 %521
  %523 = vrot.lane.b32.xlu0 %v459, 127
  %v524 = vpop.permute.xlu0 %523
  %525 = vrot.lane.b32.xlu0 %v460, 127
  %v526 = vpop.permute.xlu0 %525
  %527 = vrot.lane.b32.xlu0 %v461, 127
  %v528 = vpop.permute.xlu0 %527
  %529 = vrot.lane.b32.xlu0 %v462, 127
  %v530 = vpop.permute.xlu0 %529
  %531 = vrot.lane.b32.xlu0 %v463, 127
  %v532 = vpop.permute.xlu0 %531
  %533 = vrot.lane.b32.xlu0 %v464, 127
  %v534 = vpop.permute.xlu0 %533
  %535 = vrot.lane.b32.xlu0 %v465, 127
  %v536 = vpop.permute.xlu0 %535
  %537 = vrot.lane.b32.xlu0 %v466, 127
  %v538 = vpop.permute.xlu0 %537
  %539 = vrot.lane.b32.xlu0 %v467, 127
  %v540 = vpop.permute.xlu0 %539
  %541 = vrot.lane.b32.xlu0 %v468, 127
  %v542 = vpop.permute.xlu0 %541
  %543 = vrot.lane.b32.xlu0 %v469, 127
  %v544 = vpop.permute.xlu0 %543
  %545 = vrot.lane.b32.xlu0 %v470, 127
  %v546 = vpop.permute.xlu0 %545
  %547 = vrot.lane.b32.xlu0 %v471, 127
  %v548 = vpop.permute.xlu0 %547
  %549 = vrot.lane.b32.xlu0 %v472, 127
  %v550 = vpop.permute.xlu0 %549
  %551 = vrot.lane.b32.xlu0 %v473, 127
  %v552 = vpop.permute.xlu0 %551
  %553 = vrot.lane.b32.xlu0 %v474, 127
  %v554 = vpop.permute.xlu0 %553
  %555 = vrot.lane.b32.xlu0 %v475, 127
  %v556 = vpop.permute.xlu0 %555
  %557 = vrot.lane.b32.xlu0 %v476, 127
  %v558 = vpop.permute.xlu0 %557
  %559 = vrot.lane.b32.xlu0 %v477, 127
  %v560 = vpop.permute.xlu0 %559
  %561 = vrot.lane.b32.xlu0 %v478, 127
  %v562 = vpop.permute.xlu0 %561
  %563 = vrot.lane.b32.xlu0 %v479, 127
  %v564 = vpop.permute.xlu0 %563
  %565 = vrot.lane.b32.xlu0 %v480, 127
  %v566 = vpop.permute.xlu0 %565
  %567 = vrot.lane.b32.xlu0 %v481, 127
  %v568 = vpop.permute.xlu0 %567
  %569 = vrot.lane.b32.xlu0 %v482, 127
  %v570 = vpop.permute.xlu0 %569
  %571 = vrot.lane.b32.xlu0 %v483, 127
  %v572 = vpop.permute.xlu0 %571
  %573 = vrot.lane.b32.xlu0 %v484, 127
  %v574 = vpop.permute.xlu0 %573
  %575 = vrot.lane.b32.xlu0 %v485, 127
  %v576 = vpop.permute.xlu0 %575
  %577 = vrot.lane.b32.xlu0 %v486, 127
  %v578 = vpop.permute.xlu0 %577
  %579 = vrot.lane.b32.xlu0 %v487, 127
  %v580 = vpop.permute.xlu0 %579
  %581 = vrot.lane.b32.xlu0 %v488, 127
  %v582 = vpop.permute.xlu0 %581
  %583 = vrot.lane.b32.xlu0 %v489, 127
  %v584 = vpop.permute.xlu0 %583
  %585 = vrot.lane.b32.xlu0 %v490, 127
  %v586 = vpop.permute.xlu0 %585
  %vm587 = vcmask 1039360
  %v588 = vsel %vm587, %v492, %v494
  %v589 = vsel %vm587, %v494, %v496
  %v590 = vsel %vm587, %v498, %v500
  %v591 = vsel %vm587, %v500, %v502
  %v592 = vsel %vm587, %v504, %v506
  %v593 = vsel %vm587, %v506, %v508
  %v594 = vsel %vm587, %v510, %v512
  %v595 = vsel %vm587, %v512, %v514
  %v596 = vsel %vm587, %v516, %v518
  %v597 = vsel %vm587, %v518, %v520
  %v598 = vsel %vm587, %v522, %v524
  %v599 = vsel %vm587, %v524, %v526
  %v600 = vsel %vm587, %v528, %v530
  %v601 = vsel %vm587, %v530, %v532
  %v602 = vsel %vm587, %v534, %v536
  %v603 = vsel %vm587, %v536, %v538
  %v604 = vsel %vm587, %v540, %v542
  %v605 = vsel %vm587, %v542, %v544
  %v606 = vsel %vm587, %v546, %v548
  %v607 = vsel %vm587, %v548, %v550
  %v608 = vsel %vm587, %v552, %v554
  %v609 = vsel %vm587, %v554, %v556
  %v610 = vsel %vm587, %v558, %v560
  %v611 = vsel %vm587, %v560, %v562
  %v612 = vsel %vm587, %v564, %v566
  %v613 = vsel %vm587, %v566, %v568
  %v614 = vsel %vm587, %v570, %v572
  %v615 = vsel %vm587, %v572, %v574
  %v616 = vsel %vm587, %v576, %v578
  %v617 = vsel %vm587, %v578, %v580
  %v618 = vsel %vm587, %v582, %v584
  %v619 = vsel %vm587, %v584, %v586
  %652 = vrot.lane.b32.xlu0 %v443, 117
  %v653 = vpop.permute.xlu0 %652
  %654 = vrot.lane.b32.xlu0 %v444, 117
  %v655 = vpop.permute.xlu0 %654
  %656 = vrot.lane.b32.xlu0 %v445, 117
  %v657 = vpop.permute.xlu0 %656
  %658 = vrot.lane.b32.xlu0 %v446, 117
  %v659 = vpop.permute.xlu0 %658
  %660 = vrot.lane.b32.xlu0 %v447, 117
  %v661 = vpop.permute.xlu0 %660
  %662 = vrot.lane.b32.xlu0 %v448, 117
  %v663 = vpop.permute.xlu0 %662
  %664 = vrot.lane.b32.xlu0 %v449, 117
  %v665 = vpop.permute.xlu0 %664
  %666 = vrot.lane.b32.xlu0 %v450, 117
  %v667 = vpop.permute.xlu0 %666
  %668 = vrot.lane.b32.xlu0 %v451, 117
  %v669 = vpop.permute.xlu0 %668
  %670 = vrot.lane.b32.xlu0 %v452, 117
  %v671 = vpop.permute.xlu0 %670
  %672 = vrot.lane.b32.xlu0 %v453, 117
  %v673 = vpop.permute.xlu0 %672
  %674 = vrot.lane.b32.xlu0 %v454, 117
  %v675 = vpop.permute.xlu0 %674
  %676 = vrot.lane.b32.xlu0 %v455, 117
  %v677 = vpop.permute.xlu0 %676
  %678 = vrot.lane.b32.xlu0 %v456, 117
  %v679 = vpop.permute.xlu0 %678
  %680 = vrot.lane.b32.xlu0 %v457, 117
  %v681 = vpop.permute.xlu0 %680
  %682 = vrot.lane.b32.xlu0 %v458, 117
  %v683 = vpop.permute.xlu0 %682
  %684 = vrot.lane.b32.xlu0 %v459, 117
  %v685 = vpop.permute.xlu0 %684
  %686 = vrot.lane.b32.xlu0 %v460, 117
  %v687 = vpop.permute.xlu0 %686
  %688 = vrot.lane.b32.xlu0 %v461, 117
  %v689 = vpop.permute.xlu0 %688
  %690 = vrot.lane.b32.xlu0 %v462, 117
  %v691 = vpop.permute.xlu0 %690
  %692 = vrot.lane.b32.xlu0 %v463, 117
  %v693 = vpop.permute.xlu0 %692
  %694 = vrot.lane.b32.xlu0 %v464, 117
  %v695 = vpop.permute.xlu0 %694
  %696 = vrot.lane.b32.xlu0 %v465, 117
  %v697 = vpop.permute.xlu0 %696
  %698 = vrot.lane.b32.xlu0 %v466, 117
  %v699 = vpop.permute.xlu0 %698
  %700 = vrot.lane.b32.xlu0 %v467, 117
  %v701 = vpop.permute.xlu0 %700
  %702 = vrot.lane.b32.xlu0 %v468, 117
  %v703 = vpop.permute.xlu0 %702
  %704 = vrot.lane.b32.xlu0 %v469, 117
  %v705 = vpop.permute.xlu0 %704
  %706 = vrot.lane.b32.xlu0 %v470, 117
  %v707 = vpop.permute.xlu0 %706
  %708 = vrot.lane.b32.xlu0 %v471, 117
  %v709 = vpop.permute.xlu0 %708
  %710 = vrot.lane.b32.xlu0 %v472, 117
  %v711 = vpop.permute.xlu0 %710
  %712 = vrot.lane.b32.xlu0 %v473, 117
  %v713 = vpop.permute.xlu0 %712
  %714 = vrot.lane.b32.xlu0 %v474, 117
  %v715 = vpop.permute.xlu0 %714
  %716 = vrot.lane.b32.xlu0 %v475, 117
  %v717 = vpop.permute.xlu0 %716
  %718 = vrot.lane.b32.xlu0 %v476, 117
  %v719 = vpop.permute.xlu0 %718
  %720 = vrot.lane.b32.xlu0 %v477, 117
  %v721 = vpop.permute.xlu0 %720
  %722 = vrot.lane.b32.xlu0 %v478, 117
  %v723 = vpop.permute.xlu0 %722
  %724 = vrot.lane.b32.xlu0 %v479, 117
  %v725 = vpop.permute.xlu0 %724
  %726 = vrot.lane.b32.xlu0 %v480, 117
  %v727 = vpop.permute.xlu0 %726
  %728 = vrot.lane.b32.xlu0 %v481, 117
  %v729 = vpop.permute.xlu0 %728
  %730 = vrot.lane.b32.xlu0 %v482, 117
  %v731 = vpop.permute.xlu0 %730
  %732 = vrot.lane.b32.xlu0 %v483, 117
  %v733 = vpop.permute.xlu0 %732
  %734 = vrot.lane.b32.xlu0 %v484, 117
  %v735 = vpop.permute.xlu0 %734
  %736 = vrot.lane.b32.xlu0 %v485, 117
  %v737 = vpop.permute.xlu0 %736
  %738 = vrot.lane.b32.xlu0 %v486, 117
  %v739 = vpop.permute.xlu0 %738
  %740 = vrot.lane.b32.xlu0 %v487, 117
  %v741 = vpop.permute.xlu0 %740
  %742 = vrot.lane.b32.xlu0 %v488, 117
  %v743 = vpop.permute.xlu0 %742
  %744 = vrot.lane.b32.xlu0 %v489, 117
  %v745 = vpop.permute.xlu0 %744
  %746 = vrot.lane.b32.xlu0 %v490, 117
  %v747 = vpop.permute.xlu0 %746
  %vm748 = vcmask 957440
  %v749 = vsel %vm748, %v653, %v655
  %v750 = vsel %vm748, %v655, %v657
  %v751 = vsel %vm748, %v659, %v661
  %v752 = vsel %vm748, %v661, %v663
  %v753 = vsel %vm748, %v665, %v667
  %v754 = vsel %vm748, %v667, %v669
  %v755 = vsel %vm748, %v671, %v673
  %v756 = vsel %vm748, %v673, %v675
  %v757 = vsel %vm748, %v677, %v679
  %v758 = vsel %vm748, %v679, %v681
  %v759 = vsel %vm748, %v683, %v685
  %v760 = vsel %vm748, %v685, %v687
  %v761 = vsel %vm748, %v689, %v691
  %v762 = vsel %vm748, %v691, %v693
  %v763 = vsel %vm748, %v695, %v697
  %v764 = vsel %vm748, %v697, %v699
  %v765 = vsel %vm748, %v701, %v703
  %v766 = vsel %vm748, %v703, %v705
  %v767 = vsel %vm748, %v707, %v709
  %v768 = vsel %vm748, %v709, %v711
  %v769 = vsel %vm748, %v713, %v715
  %v770 = vsel %vm748, %v715, %v717
  %v771 = vsel %vm748, %v719, %v721
  %v772 = vsel %vm748, %v721, %v723
  %v773 = vsel %vm748, %v725, %v727
  %v774 = vsel %vm748, %v727, %v729
  %v775 = vsel %vm748, %v731, %v733
  %v776 = vsel %vm748, %v733, %v735
  %v777 = vsel %vm748, %v737, %v739
  %v778 = vsel %vm748, %v739, %v741
  %v779 = vsel %vm748, %v743, %v745
  %v780 = vsel %vm748, %v745, %v747
  %813 = vrot.lane.b32.xlu0 %v443, 116
  %v814 = vpop.permute.xlu0 %813
  %815 = vrot.lane.b32.xlu0 %v444, 116
  %v816 = vpop.permute.xlu0 %815
  %817 = vrot.lane.b32.xlu0 %v445, 116
  %v818 = vpop.permute.xlu0 %817
  %819 = vrot.lane.b32.xlu0 %v446, 116
  %v820 = vpop.permute.xlu0 %819
  %821 = vrot.lane.b32.xlu0 %v447, 116
  %v822 = vpop.permute.xlu0 %821
  %823 = vrot.lane.b32.xlu0 %v448, 116
  %v824 = vpop.permute.xlu0 %823
  %825 = vrot.lane.b32.xlu0 %v449, 116
  %v826 = vpop.permute.xlu0 %825
  %827 = vrot.lane.b32.xlu0 %v450, 116
  %v828 = vpop.permute.xlu0 %827
  %829 = vrot.lane.b32.xlu0 %v451, 116
  %v830 = vpop.permute.xlu0 %829
  %831 = vrot.lane.b32.xlu0 %v452, 116
  %v832 = vpop.permute.xlu0 %831
  %833 = vrot.lane.b32.xlu0 %v453, 116
  %v834 = vpop.permute.xlu0 %833
  %835 = vrot.lane.b32.xlu0 %v454, 116
  %v836 = vpop.permute.xlu0 %835
  %837 = vrot.lane.b32.xlu0 %v455, 116
  %v838 = vpop.permute.xlu0 %837
  %839 = vrot.lane.b32.xlu0 %v456, 116
  %v840 = vpop.permute.xlu0 %839
  %841 = vrot.lane.b32.xlu0 %v457, 116
  %v842 = vpop.permute.xlu0 %841
  %843 = vrot.lane.b32.xlu0 %v458, 116
  %v844 = vpop.permute.xlu0 %843
  %845 = vrot.lane.b32.xlu0 %v459, 116
  %v846 = vpop.permute.xlu0 %845
  %847 = vrot.lane.b32.xlu0 %v460, 116
  %v848 = vpop.permute.xlu0 %847
  %849 = vrot.lane.b32.xlu0 %v461, 116
  %v850 = vpop.permute.xlu0 %849
  %851 = vrot.lane.b32.xlu0 %v462, 116
  %v852 = vpop.permute.xlu0 %851
  %853 = vrot.lane.b32.xlu0 %v463, 116
  %v854 = vpop.permute.xlu0 %853
  %855 = vrot.lane.b32.xlu0 %v464, 116
  %v856 = vpop.permute.xlu0 %855
  %857 = vrot.lane.b32.xlu0 %v465, 116
  %v858 = vpop.permute.xlu0 %857
  %859 = vrot.lane.b32.xlu0 %v466, 116
  %v860 = vpop.permute.xlu0 %859
  %861 = vrot.lane.b32.xlu0 %v467, 116
  %v862 = vpop.permute.xlu0 %861
  %863 = vrot.lane.b32.xlu0 %v468, 116
  %v864 = vpop.permute.xlu0 %863
  %865 = vrot.lane.b32.xlu0 %v469, 116
  %v866 = vpop.permute.xlu0 %865
  %867 = vrot.lane.b32.xlu0 %v470, 116
  %v868 = vpop.permute.xlu0 %867
  %869 = vrot.lane.b32.xlu0 %v471, 116
  %v870 = vpop.permute.xlu0 %869
  %871 = vrot.lane.b32.xlu0 %v472, 116
  %v872 = vpop.permute.xlu0 %871
  %873 = vrot.lane.b32.xlu0 %v473, 116
  %v874 = vpop.permute.xlu0 %873
  %875 = vrot.lane.b32.xlu0 %v474, 116
  %v876 = vpop.permute.xlu0 %875
  %877 = vrot.lane.b32.xlu0 %v475, 116
  %v878 = vpop.permute.xlu0 %877
  %879 = vrot.lane.b32.xlu0 %v476, 116
  %v880 = vpop.permute.xlu0 %879
  %881 = vrot.lane.b32.xlu0 %v477, 116
  %v882 = vpop.permute.xlu0 %881
  %883 = vrot.lane.b32.xlu0 %v478, 116
  %v884 = vpop.permute.xlu0 %883
  %885 = vrot.lane.b32.xlu0 %v479, 116
  %v886 = vpop.permute.xlu0 %885
  %887 = vrot.lane.b32.xlu0 %v480, 116
  %v888 = vpop.permute.xlu0 %887
  %889 = vrot.lane.b32.xlu0 %v481, 116
  %v890 = vpop.permute.xlu0 %889
  %891 = vrot.lane.b32.xlu0 %v482, 116
  %v892 = vpop.permute.xlu0 %891
  %893 = vrot.lane.b32.xlu0 %v483, 116
  %v894 = vpop.permute.xlu0 %893
  %895 = vrot.lane.b32.xlu0 %v484, 116
  %v896 = vpop.permute.xlu0 %895
  %897 = vrot.lane.b32.xlu0 %v485, 116
  %v898 = vpop.permute.xlu0 %897
  %899 = vrot.lane.b32.xlu0 %v486, 116
  %v900 = vpop.permute.xlu0 %899
  %901 = vrot.lane.b32.xlu0 %v487, 116
  %v902 = vpop.permute.xlu0 %901
  %903 = vrot.lane.b32.xlu0 %v488, 116
  %v904 = vpop.permute.xlu0 %903
  %905 = vrot.lane.b32.xlu0 %v489, 116
  %v906 = vpop.permute.xlu0 %905
  %907 = vrot.lane.b32.xlu0 %v490, 116
  %v908 = vpop.permute.xlu0 %907
  %vm909 = vcmask 949248
  %v910 = vsel %vm909, %v814, %v816
  %v911 = vsel %vm909, %v816, %v818
  %v912 = vsel %vm909, %v820, %v822
  %v913 = vsel %vm909, %v822, %v824
  %v914 = vsel %vm909, %v826, %v828
  %v915 = vsel %vm909, %v828, %v830
  %v916 = vsel %vm909, %v832, %v834
  %v917 = vsel %vm909, %v834, %v836
  %v918 = vsel %vm909, %v838, %v840
  %v919 = vsel %vm909, %v840, %v842
  %v920 = vsel %vm909, %v844, %v846
  %v921 = vsel %vm909, %v846, %v848
  %v922 = vsel %vm909, %v850, %v852
  %v923 = vsel %vm909, %v852, %v854
  %v924 = vsel %vm909, %v856, %v858
  %v925 = vsel %vm909, %v858, %v860
  %v926 = vsel %vm909, %v862, %v864
  %v927 = vsel %vm909, %v864, %v866
  %v928 = vsel %vm909, %v868, %v870
  %v929 = vsel %vm909, %v870, %v872
  %v930 = vsel %vm909, %v874, %v876
  %v931 = vsel %vm909, %v876, %v878
  %v932 = vsel %vm909, %v880, %v882
  %v933 = vsel %vm909, %v882, %v884
  %v934 = vsel %vm909, %v886, %v888
  %v935 = vsel %vm909, %v888, %v890
  %v936 = vsel %vm909, %v892, %v894
  %v937 = vsel %vm909, %v894, %v896
  %v938 = vsel %vm909, %v898, %v900
  %v939 = vsel %vm909, %v900, %v902
  %v940 = vsel %vm909, %v904, %v906
  %v941 = vsel %vm909, %v906, %v908
  %v974 = vld [vmem:[%s1] sm:$0xff]
  %v975 = vld [vmem:[%s1 + $0x8] sm:$0xff]
  %v976 = vld [vmem:[%s1 + $0x10] sm:$0xff]
  %v977 = vld [vmem:[%s1 + $0x18] sm:$0xff]
  %v978 = vld [vmem:[%s1 + $0x20] sm:$0xff]
  %v979 = vld [vmem:[%s1 + $0x28] sm:$0xff]
  %v980 = vld [vmem:[%s1 + $0x30] sm:$0xff]
  %v981 = vld [vmem:[%s1 + $0x38] sm:$0xff]
  %v982 = vld [vmem:[%s1 + $0x40] sm:$0xff]
  %v983 = vld [vmem:[%s1 + $0x48] sm:$0xff]
  %v984 = vld [vmem:[%s1 + $0x50] sm:$0xff]
  %v985 = vld [vmem:[%s1 + $0x58] sm:$0xff]
  %v986 = vld [vmem:[%s1 + $0x60] sm:$0xff]
  %v987 = vld [vmem:[%s1 + $0x68] sm:$0xff]
  %v988 = vld [vmem:[%s1 + $0x70] sm:$0xff]
  %v989 = vld [vmem:[%s1 + $0x78] sm:$0xff]
  %v990 = vld [vmem:[%s1 + $0x80] sm:$0xff]
  %v991 = vld [vmem:[%s1 + $0x88] sm:$0xff]
  %v992 = vld [vmem:[%s1 + $0x90] sm:$0xff]
  %v993 = vld [vmem:[%s1 + $0x98] sm:$0xff]
  %v994 = vld [vmem:[%s1 + $0xa0] sm:$0xff]
  %v995 = vld [vmem:[%s1 + $0xa8] sm:$0xff]
  %v996 = vld [vmem:[%s1 + $0xb0] sm:$0xff]
  %v997 = vld [vmem:[%s1 + $0xb8] sm:$0xff]
  %v998 = vld [vmem:[%s1 + $0xc0] sm:$0xff]
  %v999 = vld [vmem:[%s1 + $0xc8] sm:$0xff]
  %v1000 = vld [vmem:[%s1 + $0xd0] sm:$0xff]
  %v1001 = vld [vmem:[%s1 + $0xd8] sm:$0xff]
  %v1002 = vld [vmem:[%s1 + $0xe0] sm:$0xff]
  %v1003 = vld [vmem:[%s1 + $0xe8] sm:$0xff]
  %v1004 = vld [vmem:[%s1 + $0xf0] sm:$0xff]
  %v1005 = vld [vmem:[%s1 + $0xf8] sm:$0xff]
  %v1006 = vld [vmem:[%s1 + $0x100] sm:$0xff]
  %v1007 = vld [vmem:[%s1 + $0x108] sm:$0xff]
  %v1008 = vld [vmem:[%s1 + $0x110] sm:$0xff]
  %v1009 = vld [vmem:[%s1 + $0x118] sm:$0xff]
  %v1010 = vld [vmem:[%s1 + $0x120] sm:$0xff]
  %v1011 = vld [vmem:[%s1 + $0x128] sm:$0xff]
  %v1012 = vld [vmem:[%s1 + $0x130] sm:$0xff]
  %v1013 = vld [vmem:[%s1 + $0x138] sm:$0xff]
  %v1014 = vld [vmem:[%s1 + $0x140] sm:$0xff]
  %v1015 = vld [vmem:[%s1 + $0x148] sm:$0xff]
  %v1016 = vld [vmem:[%s1 + $0x150] sm:$0xff]
  %v1017 = vld [vmem:[%s1 + $0x158] sm:$0xff]
  %v1018 = vld [vmem:[%s1 + $0x160] sm:$0xff]
  %v1019 = vld [vmem:[%s1 + $0x168] sm:$0xff]
  %v1020 = vld [vmem:[%s1 + $0x170] sm:$0xff]
  %v1021 = vld [vmem:[%s1 + $0x178] sm:$0xff]
  %v1022 = vld [vmem:[%s1 + $0x180] sm:$0xff]
  %v1023 = vld [vmem:[%s1 + $0x188] sm:$0xff]
  %v1024 = vld [vmem:[%s1 + $0x190] sm:$0xff]
  %v1025 = vld [vmem:[%s1 + $0x198] sm:$0xff]
  %v1026 = vld [vmem:[%s1 + $0x1a0] sm:$0xff]
  %v1027 = vld [vmem:[%s1 + $0x1a8] sm:$0xff]
  %v1028 = vld [vmem:[%s1 + $0x1b0] sm:$0xff]
  %v1029 = vld [vmem:[%s1 + $0x1b8] sm:$0xff]
  %v1030 = vld [vmem:[%s1 + $0x1c0] sm:$0xff]
  %v1031 = vld [vmem:[%s1 + $0x1c8] sm:$0xff]
  %v1032 = vld [vmem:[%s1 + $0x1d0] sm:$0xff]
  %v1033 = vld [vmem:[%s1 + $0x1d8] sm:$0xff]
  %v1034 = vld [vmem:[%s1 + $0x1e0] sm:$0xff]
  %v1035 = vld [vmem:[%s1 + $0x1e8] sm:$0xff]
  %v1036 = vld [vmem:[%s1 + $0x1f0] sm:$0xff]
  %v1037 = vld [vmem:[%s1 + $0x1f8] sm:$0xff]
  %v1038 = vld [vmem:[%s4] sm:$0xff]
  %v1039 = vld [vmem:[%s4 + $0x8] sm:$0xff]
  %v1040 = vld [vmem:[%s4 + $0x10] sm:$0xff]
  %v1041 = vld [vmem:[%s4 + $0x18] sm:$0xff]
  %v1042 = vld [vmem:[%s4 + $0x20] sm:$0xff]
  %v1043 = vld [vmem:[%s4 + $0x28] sm:$0xff]
  %v1044 = vld [vmem:[%s4 + $0x30] sm:$0xff]
  %v1045 = vld [vmem:[%s4 + $0x38] sm:$0xff]
  %v1046 = vld [vmem:[%s4 + $0x40] sm:$0xff]
  %v1047 = vld [vmem:[%s4 + $0x48] sm:$0xff]
  %v1048 = vld [vmem:[%s4 + $0x50] sm:$0xff]
  %v1049 = vld [vmem:[%s4 + $0x58] sm:$0xff]
  %v1050 = vld [vmem:[%s4 + $0x60] sm:$0xff]
  %v1051 = vld [vmem:[%s4 + $0x68] sm:$0xff]
  %v1052 = vld [vmem:[%s4 + $0x70] sm:$0xff]
  %v1053 = vld [vmem:[%s4 + $0x78] sm:$0xff]
  %1055 = vset.pattern.permute.xlu0 0
  %1056 = vperm.xlu0 %1055, %v1038
  %v1057 = vpop.permute.xlu0 %1056
  %1060 = vset.pattern.permute.xlu0 0
  %1061 = vperm.xlu0 %1060, %v1039
  %v1062 = vpop.permute.xlu0 %1061
  %1065 = vset.pattern.permute.xlu0 0
  %1066 = vperm.xlu0 %1065, %v1040
  %v1067 = vpop.permute.xlu0 %1066
  %1070 = vset.pattern.permute.xlu0 0
  %1071 = vperm.xlu0 %1070, %v1041
  %v1072 = vpop.permute.xlu0 %1071
  %1075 = vset.pattern.permute.xlu0 0
  %1076 = vperm.xlu0 %1075, %v1042
  %v1077 = vpop.permute.xlu0 %1076
  %1080 = vset.pattern.permute.xlu0 0
  %1081 = vperm.xlu0 %1080, %v1043
  %v1082 = vpop.permute.xlu0 %1081
  %1085 = vset.pattern.permute.xlu0 0
  %1086 = vperm.xlu0 %1085, %v1044
  %v1087 = vpop.permute.xlu0 %1086
  %1090 = vset.pattern.permute.xlu0 0
  %1091 = vperm.xlu0 %1090, %v1045
  %v1092 = vpop.permute.xlu0 %1091
  %1095 = vset.pattern.permute.xlu0 0
  %1096 = vperm.xlu0 %1095, %v1046
  %v1097 = vpop.permute.xlu0 %1096
  %1100 = vset.pattern.permute.xlu0 0
  %1101 = vperm.xlu0 %1100, %v1047
  %v1102 = vpop.permute.xlu0 %1101
  %1105 = vset.pattern.permute.xlu0 0
  %1106 = vperm.xlu0 %1105, %v1048
  %v1107 = vpop.permute.xlu0 %1106
  %1110 = vset.pattern.permute.xlu0 0
  %1111 = vperm.xlu0 %1110, %v1049
  %v1112 = vpop.permute.xlu0 %1111
  %1115 = vset.pattern.permute.xlu0 0
  %1116 = vperm.xlu0 %1115, %v1050
  %v1117 = vpop.permute.xlu0 %1116
  %1120 = vset.pattern.permute.xlu0 0
  %1121 = vperm.xlu0 %1120, %v1051
  %v1122 = vpop.permute.xlu0 %1121
  %1125 = vset.pattern.permute.xlu0 0
  %1126 = vperm.xlu0 %1125, %v1052
  %v1127 = vpop.permute.xlu0 %1126
  %1130 = vset.pattern.permute.xlu0 0
  %1131 = vperm.xlu0 %1130, %v1053
  %v1132 = vpop.permute.xlu0 %1131
  %v1198 = vunpack.c.l.b16 %v974
  %v1199 = vunpack.c.h.b16 %v974
  %v1200 = vunpack.c.l.b16 %v975
  %v1201 = vunpack.c.h.b16 %v975
  %v1202 = vunpack.c.l.b16 %v976
  %v1203 = vunpack.c.h.b16 %v976
  %v1204 = vunpack.c.l.b16 %v977
  %v1205 = vunpack.c.h.b16 %v977
  %v1206 = vunpack.c.l.b16 %v978
  %v1207 = vunpack.c.h.b16 %v978
  %v1208 = vunpack.c.l.b16 %v979
  %v1209 = vunpack.c.h.b16 %v979
  %v1210 = vunpack.c.l.b16 %v980
  %v1211 = vunpack.c.h.b16 %v980
  %v1212 = vunpack.c.l.b16 %v981
  %v1213 = vunpack.c.h.b16 %v981
  %v1214 = vunpack.c.l.b16 %v982
  %v1215 = vunpack.c.h.b16 %v982
  %v1216 = vunpack.c.l.b16 %v983
  %v1217 = vunpack.c.h.b16 %v983
  %v1218 = vunpack.c.l.b16 %v984
  %v1219 = vunpack.c.h.b16 %v984
  %v1220 = vunpack.c.l.b16 %v985
  %v1221 = vunpack.c.h.b16 %v985
  %v1222 = vunpack.c.l.b16 %v986
  %v1223 = vunpack.c.h.b16 %v986
  %v1224 = vunpack.c.l.b16 %v987
  %v1225 = vunpack.c.h.b16 %v987
  %v1226 = vunpack.c.l.b16 %v988
  %v1227 = vunpack.c.h.b16 %v988
  %v1228 = vunpack.c.l.b16 %v989
  %v1229 = vunpack.c.h.b16 %v989
  %v1230 = vunpack.c.l.b16 %v990
  %v1231 = vunpack.c.h.b16 %v990
  %v1232 = vunpack.c.l.b16 %v991
  %v1233 = vunpack.c.h.b16 %v991
  %v1234 = vunpack.c.l.b16 %v992
  %v1235 = vunpack.c.h.b16 %v992
  %v1236 = vunpack.c.l.b16 %v993
  %v1237 = vunpack.c.h.b16 %v993
  %v1238 = vunpack.c.l.b16 %v994
  %v1239 = vunpack.c.h.b16 %v994
  %v1240 = vunpack.c.l.b16 %v995
  %v1241 = vunpack.c.h.b16 %v995
  %v1242 = vunpack.c.l.b16 %v996
  %v1243 = vunpack.c.h.b16 %v996
  %v1244 = vunpack.c.l.b16 %v997
  %v1245 = vunpack.c.h.b16 %v997
  %v1246 = vunpack.c.l.b16 %v998
  %v1247 = vunpack.c.h.b16 %v998
  %v1248 = vunpack.c.l.b16 %v999
  %v1249 = vunpack.c.h.b16 %v999
  %v1250 = vunpack.c.l.b16 %v1000
  %v1251 = vunpack.c.h.b16 %v1000
  %v1252 = vunpack.c.l.b16 %v1001
  %v1253 = vunpack.c.h.b16 %v1001
  %v1254 = vunpack.c.l.b16 %v1002
  %v1255 = vunpack.c.h.b16 %v1002
  %v1256 = vunpack.c.l.b16 %v1003
  %v1257 = vunpack.c.h.b16 %v1003
  %v1258 = vunpack.c.l.b16 %v1004
  %v1259 = vunpack.c.h.b16 %v1004
  %v1260 = vunpack.c.l.b16 %v1005
  %v1261 = vunpack.c.h.b16 %v1005
  %v1262 = vunpack.c.l.b16 %v1006
  %v1263 = vunpack.c.h.b16 %v1006
  %v1264 = vunpack.c.l.b16 %v1007
  %v1265 = vunpack.c.h.b16 %v1007
  %v1266 = vunpack.c.l.b16 %v1008
  %v1267 = vunpack.c.h.b16 %v1008
  %v1268 = vunpack.c.l.b16 %v1009
  %v1269 = vunpack.c.h.b16 %v1009
  %v1270 = vunpack.c.l.b16 %v1010
  %v1271 = vunpack.c.h.b16 %v1010
  %v1272 = vunpack.c.l.b16 %v1011
  %v1273 = vunpack.c.h.b16 %v1011
  %v1274 = vunpack.c.l.b16 %v1012
  %v1275 = vunpack.c.h.b16 %v1012
  %v1276 = vunpack.c.l.b16 %v1013
  %v1277 = vunpack.c.h.b16 %v1013
  %v1278 = vunpack.c.l.b16 %v1014
  %v1279 = vunpack.c.h.b16 %v1014
  %v1280 = vunpack.c.l.b16 %v1015
  %v1281 = vunpack.c.h.b16 %v1015
  %v1282 = vunpack.c.l.b16 %v1016
  %v1283 = vunpack.c.h.b16 %v1016
  %v1284 = vunpack.c.l.b16 %v1017
  %v1285 = vunpack.c.h.b16 %v1017
  %v1286 = vunpack.c.l.b16 %v1018
  %v1287 = vunpack.c.h.b16 %v1018
  %v1288 = vunpack.c.l.b16 %v1019
  %v1289 = vunpack.c.h.b16 %v1019
  %v1290 = vunpack.c.l.b16 %v1020
  %v1291 = vunpack.c.h.b16 %v1020
  %v1292 = vunpack.c.l.b16 %v1021
  %v1293 = vunpack.c.h.b16 %v1021
  %v1294 = vunpack.c.l.b16 %v1022
  %v1295 = vunpack.c.h.b16 %v1022
  %v1296 = vunpack.c.l.b16 %v1023
  %v1297 = vunpack.c.h.b16 %v1023
  %v1298 = vunpack.c.l.b16 %v1024
  %v1299 = vunpack.c.h.b16 %v1024
  %v1300 = vunpack.c.l.b16 %v1025
  %v1301 = vunpack.c.h.b16 %v1025
  %v1302 = vunpack.c.l.b16 %v1026
  %v1303 = vunpack.c.h.b16 %v1026
  %v1304 = vunpack.c.l.b16 %v1027
  %v1305 = vunpack.c.h.b16 %v1027
  %v1306 = vunpack.c.l.b16 %v1028
  %v1307 = vunpack.c.h.b16 %v1028
  %v1308 = vunpack.c.l.b16 %v1029
  %v1309 = vunpack.c.h.b16 %v1029
  %v1310 = vunpack.c.l.b16 %v1030
  %v1311 = vunpack.c.h.b16 %v1030
  %v1312 = vunpack.c.l.b16 %v1031
  %v1313 = vunpack.c.h.b16 %v1031
  %v1314 = vunpack.c.l.b16 %v1032
  %v1315 = vunpack.c.h.b16 %v1032
  %v1316 = vunpack.c.l.b16 %v1033
  %v1317 = vunpack.c.h.b16 %v1033
  %v1318 = vunpack.c.l.b16 %v1034
  %v1319 = vunpack.c.h.b16 %v1034
  %v1320 = vunpack.c.l.b16 %v1035
  %v1321 = vunpack.c.h.b16 %v1035
  %v1322 = vunpack.c.l.b16 %v1036
  %v1323 = vunpack.c.h.b16 %v1036
  %v1324 = vunpack.c.l.b16 %v1037
  %v1325 = vunpack.c.h.b16 %v1037
  %v1326 = vpack.c.b16 %v1206, %v1198
  %v1327 = vpack.c.b16 %v1207, %v1199
  %v1328 = vpack.c.b16 %v1208, %v1200
  %v1329 = vpack.c.b16 %v1209, %v1201
  %v1330 = vpack.c.b16 %v1210, %v1202
  %v1331 = vpack.c.b16 %v1211, %v1203
  %v1332 = vpack.c.b16 %v1212, %v1204
  %v1333 = vpack.c.b16 %v1213, %v1205
  %v1334 = vpack.c.b16 %v1222, %v1214
  %v1335 = vpack.c.b16 %v1223, %v1215
  %v1336 = vpack.c.b16 %v1224, %v1216
  %v1337 = vpack.c.b16 %v1225, %v1217
  %v1338 = vpack.c.b16 %v1226, %v1218
  %v1339 = vpack.c.b16 %v1227, %v1219
  %v1340 = vpack.c.b16 %v1228, %v1220
  %v1341 = vpack.c.b16 %v1229, %v1221
  %v1342 = vpack.c.b16 %v1238, %v1230
  %v1343 = vpack.c.b16 %v1239, %v1231
  %v1344 = vpack.c.b16 %v1240, %v1232
  %v1345 = vpack.c.b16 %v1241, %v1233
  %v1346 = vpack.c.b16 %v1242, %v1234
  %v1347 = vpack.c.b16 %v1243, %v1235
  %v1348 = vpack.c.b16 %v1244, %v1236
  %v1349 = vpack.c.b16 %v1245, %v1237
  %v1350 = vpack.c.b16 %v1254, %v1246
  %v1351 = vpack.c.b16 %v1255, %v1247
  %v1352 = vpack.c.b16 %v1256, %v1248
  %v1353 = vpack.c.b16 %v1257, %v1249
  %v1354 = vpack.c.b16 %v1258, %v1250
  %v1355 = vpack.c.b16 %v1259, %v1251
  %v1356 = vpack.c.b16 %v1260, %v1252
  %v1357 = vpack.c.b16 %v1261, %v1253
  %v1358 = vpack.c.b16 %v1270, %v1262
  %v1359 = vpack.c.b16 %v1271, %v1263
  %v1360 = vpack.c.b16 %v1272, %v1264
  %v1361 = vpack.c.b16 %v1273, %v1265
  %v1362 = vpack.c.b16 %v1274, %v1266
  %v1363 = vpack.c.b16 %v1275, %v1267
  %v1364 = vpack.c.b16 %v1276, %v1268
  %v1365 = vpack.c.b16 %v1277, %v1269
  %v1366 = vpack.c.b16 %v1286, %v1278
  %v1367 = vpack.c.b16 %v1287, %v1279
  %v1368 = vpack.c.b16 %v1288, %v1280
  %v1369 = vpack.c.b16 %v1289, %v1281
  %v1370 = vpack.c.b16 %v1290, %v1282
  %v1371 = vpack.c.b16 %v1291, %v1283
  %v1372 = vpack.c.b16 %v1292, %v1284
  %v1373 = vpack.c.b16 %v1293, %v1285
  %v1374 = vpack.c.b16 %v1302, %v1294
  %v1375 = vpack.c.b16 %v1303, %v1295
  %v1376 = vpack.c.b16 %v1304, %v1296
  %v1377 = vpack.c.b16 %v1305, %v1297
  %v1378 = vpack.c.b16 %v1306, %v1298
  %v1379 = vpack.c.b16 %v1307, %v1299
  %v1380 = vpack.c.b16 %v1308, %v1300
  %v1381 = vpack.c.b16 %v1309, %v1301
  %v1382 = vpack.c.b16 %v1318, %v1310
  %v1383 = vpack.c.b16 %v1319, %v1311
  %v1384 = vpack.c.b16 %v1320, %v1312
  %v1385 = vpack.c.b16 %v1321, %v1313
  %v1386 = vpack.c.b16 %v1322, %v1314
  %v1387 = vpack.c.b16 %v1323, %v1315
  %v1388 = vpack.c.b16 %v1324, %v1316
  %v1389 = vpack.c.b16 %v1325, %v1317
  %1454 = vmatprep.subr.bf16.mxu0 %v234
  %1455 = vmatpush1.bf16.msra.mxu0 %v233
  %1456 = vmatprep.subr.bf16.mxu0 %v232
  %1457 = vmatpush1.bf16.msra.mxu0 %v231
  %1458 = vmatprep.subr.bf16.mxu0 %v230
  %1459 = vmatpush1.bf16.msra.mxu0 %v229
  %1460 = vmatprep.subr.bf16.mxu0 %v228
  %1461 = vmatpush1.bf16.msra.mxu0 %v227
  %1462 = vmatprep.subr.bf16.mxu0 %v226
  %1463 = vmatpush1.bf16.msra.mxu0 %v225
  %1464 = vmatprep.subr.bf16.mxu0 %v224
  %1465 = vmatpush1.bf16.msra.mxu0 %v223
  %1466 = vmatprep.subr.bf16.mxu0 %v222
  %1467 = vmatpush1.bf16.msra.mxu0 %v221
  %1468 = vmatprep.subr.bf16.mxu0 %v220
  %1469 = vmatpush1.bf16.msra.mxu0 %v219
  %1470 = vmatprep.subr.bf16.mxu0 %v250
  %1471 = vmatpush2.bf16.msra.mxu0 %v249
  %1472 = vmatprep.subr.bf16.mxu0 %v248
  %1473 = vmatpush2.bf16.msra.mxu0 %v247
  %1474 = vmatprep.subr.bf16.mxu0 %v246
  %1475 = vmatpush2.bf16.msra.mxu0 %v245
  %1476 = vmatprep.subr.bf16.mxu0 %v244
  %1477 = vmatpush2.bf16.msra.mxu0 %v243
  %1478 = vmatprep.subr.bf16.mxu0 %v242
  %1479 = vmatpush2.bf16.msra.mxu0 %v241
  %1480 = vmatprep.subr.bf16.mxu0 %v240
  %1481 = vmatpush2.bf16.msra.mxu0 %v239
  %1482 = vmatprep.subr.bf16.mxu0 %v238
  %1483 = vmatpush2.bf16.msra.mxu0 %v237
  %1484 = vmatprep.subr.bf16.mxu0 %v236
  %1485 = vmatpush2.bf16.msra.mxu0 %v235
  %1486 = vmatprep.mubr.bf16.mxu0 %v1327
  %1487 = vmatmul.mubr.bf16.gmra.mxu0 %v1326
  %v1488 = vpop.f32.mrf.mxu0
  %v1489 = vadd.f32 %v1057, %v1488
  %v1490 = vpop.f32.mrf.mxu0
  %v1491 = vadd.f32 %v1057, %v1490
  %v1492 = vpop.f32.mrf.mxu0
  %v1493 = vadd.f32 %v1062, %v1492
  %v1494 = vpop.f32.mrf.mxu0
  %v1495 = vadd.f32 %v1062, %v1494
  %1496 = vmatprep.mubr.bf16.mxu0 %v1335
  %1497 = vmatmul.mubr.bf16.gmra.mxu0 %v1334
  %v1498 = vpop.f32.mrf.mxu0
  %v1499 = vadd.f32 %v1067, %v1498
  %v1500 = vpop.f32.mrf.mxu0
  %v1501 = vadd.f32 %v1067, %v1500
  %v1502 = vpop.f32.mrf.mxu0
  %v1503 = vadd.f32 %v1072, %v1502
  %v1504 = vpop.f32.mrf.mxu0
  %v1505 = vadd.f32 %v1072, %v1504
  %1506 = vmatprep.mubr.bf16.mxu0 %v1343
  %1507 = vmatmul.mubr.bf16.gmra.mxu0 %v1342
  %v1508 = vpop.f32.mrf.mxu0
  %v1509 = vadd.f32 %v1077, %v1508
  %v1510 = vpop.f32.mrf.mxu0
  %v1511 = vadd.f32 %v1077, %v1510
  %v1512 = vpop.f32.mrf.mxu0
  %v1513 = vadd.f32 %v1082, %v1512
  %v1514 = vpop.f32.mrf.mxu0
  %v1515 = vadd.f32 %v1082, %v1514
  %1516 = vmatprep.mubr.bf16.mxu0 %v1351
  %1517 = vmatmul.mubr.bf16.gmra.mxu0 %v1350
  %v1518 = vpop.f32.mrf.mxu0
  %v1519 = vadd.f32 %v1087, %v1518
  %v1520 = vpop.f32.mrf.mxu0
  %v1521 = vadd.f32 %v1087, %v1520
  %v1522 = vpop.f32.mrf.mxu0
  %v1523 = vadd.f32 %v1092, %v1522
  %v1524 = vpop.f32.mrf.mxu0
  %v1525 = vadd.f32 %v1092, %v1524
  %1526 = vmatprep.mubr.bf16.mxu0 %v1359
  %1527 = vmatmul.mubr.bf16.gmra.mxu0 %v1358
  %v1528 = vpop.f32.mrf.mxu0
  %v1529 = vadd.f32 %v1097, %v1528
  %v1530 = vpop.f32.mrf.mxu0
  %v1531 = vadd.f32 %v1097, %v1530
  %v1532 = vpop.f32.mrf.mxu0
  %v1533 = vadd.f32 %v1102, %v1532
  %v1534 = vpop.f32.mrf.mxu0
  %v1535 = vadd.f32 %v1102, %v1534
  %1536 = vmatprep.mubr.bf16.mxu0 %v1367
  %1537 = vmatmul.mubr.bf16.gmra.mxu0 %v1366
  %v1538 = vpop.f32.mrf.mxu0
  %v1539 = vadd.f32 %v1107, %v1538
  %v1540 = vpop.f32.mrf.mxu0
  %v1541 = vadd.f32 %v1107, %v1540
  %v1542 = vpop.f32.mrf.mxu0
  %v1543 = vadd.f32 %v1112, %v1542
  %v1544 = vpop.f32.mrf.mxu0
  %v1545 = vadd.f32 %v1112, %v1544
  %1546 = vmatprep.mubr.bf16.mxu0 %v1375
  %1547 = vmatmul.mubr.bf16.gmra.mxu0 %v1374
  %v1548 = vpop.f32.mrf.mxu0
  %v1549 = vadd.f32 %v1117, %v1548
  %v1550 = vpop.f32.mrf.mxu0
  %v1551 = vadd.f32 %v1117, %v1550
  %v1552 = vpop.f32.mrf.mxu0
  %v1553 = vadd.f32 %v1122, %v1552
  %v1554 = vpop.f32.mrf.mxu0
  %v1555 = vadd.f32 %v1122, %v1554
  %1556 = vmatprep.mubr.bf16.mxu0 %v1383
  %1557 = vmatmul.mubr.bf16.gmra.mxu0 %v1382
  %v1558 = vpop.f32.mrf.mxu0
  %v1559 = vadd.f32 %v1127, %v1558
  %v1560 = vpop.f32.mrf.mxu0
  %v1561 = vadd.f32 %v1127, %v1560
  %v1562 = vpop.f32.mrf.mxu0
  %v1563 = vadd.f32 %v1132, %v1562
  %v1564 = vpop.f32.mrf.mxu0
  %v1565 = vadd.f32 %v1132, %v1564
  %1566 = vdwg.mxu0
  %1567 = vmatprep.subr.bf16.mxu0 %v603
  %1568 = vmatpush1.bf16.msra.mxu0 %v602
  %1569 = vmatprep.subr.bf16.mxu0 %v601
  %1570 = vmatpush1.bf16.msra.mxu0 %v600
  %1571 = vmatprep.subr.bf16.mxu0 %v599
  %1572 = vmatpush1.bf16.msra.mxu0 %v598
  %1573 = vmatprep.subr.bf16.mxu0 %v597
  %1574 = vmatpush1.bf16.msra.mxu0 %v596
  %1575 = vmatprep.subr.bf16.mxu0 %v595
  %1576 = vmatpush1.bf16.msra.mxu0 %v594
  %1577 = vmatprep.subr.bf16.mxu0 %v593
  %1578 = vmatpush1.bf16.msra.mxu0 %v592
  %1579 = vmatprep.subr.bf16.mxu0 %v591
  %1580 = vmatpush1.bf16.msra.mxu0 %v590
  %1581 = vmatprep.subr.bf16.mxu0 %v589
  %1582 = vmatpush1.bf16.msra.mxu0 %v588
  %1583 = vmatprep.subr.bf16.mxu0 %v619
  %1584 = vmatpush2.bf16.msra.mxu0 %v618
  %1585 = vmatprep.subr.bf16.mxu0 %v617
  %1586 = vmatpush2.bf16.msra.mxu0 %v616
  %1587 = vmatprep.subr.bf16.mxu0 %v615
  %1588 = vmatpush2.bf16.msra.mxu0 %v614
  %1589 = vmatprep.subr.bf16.mxu0 %v613
  %1590 = vmatpush2.bf16.msra.mxu0 %v612
  %1591 = vmatprep.subr.bf16.mxu0 %v611
  %1592 = vmatpush2.bf16.msra.mxu0 %v610
  %1593 = vmatprep.subr.bf16.mxu0 %v609
  %1594 = vmatpush2.bf16.msra.mxu0 %v608
  %1595 = vmatprep.subr.bf16.mxu0 %v607
  %1596 = vmatpush2.bf16.msra.mxu0 %v606
  %1597 = vmatprep.subr.bf16.mxu0 %v605
  %1598 = vmatpush2.bf16.msra.mxu0 %v604
  %1599 = vmatprep.mubr.bf16.mxu0 %v1329
  %1600 = vmatmul.mubr.bf16.gmra.mxu0 %v1328
  %v1601 = vpop.f32.mrf.mxu0
  %v1602 = vadd.f32 %v1489, %v1601
  %v1603 = vpop.f32.mrf.mxu0
  %v1604 = vadd.f32 %v1491, %v1603
  %v1605 = vpop.f32.mrf.mxu0
  %v1606 = vadd.f32 %v1493, %v1605
  %v1607 = vpop.f32.mrf.mxu0
  %v1608 = vadd.f32 %v1495, %v1607
  %1609 = vmatprep.mubr.bf16.mxu0 %v1337
  %1610 = vmatmul.mubr.bf16.gmra.mxu0 %v1336
  %v1611 = vpop.f32.mrf.mxu0
  %v1612 = vadd.f32 %v1499, %v1611
  %v1613 = vpop.f32.mrf.mxu0
  %v1614 = vadd.f32 %v1501, %v1613
  %v1615 = vpop.f32.mrf.mxu0
  %v1616 = vadd.f32 %v1503, %v1615
  %v1617 = vpop.f32.mrf.mxu0
  %v1618 = vadd.f32 %v1505, %v1617
  %1619 = vmatprep.mubr.bf16.mxu0 %v1345
  %1620 = vmatmul.mubr.bf16.gmra.mxu0 %v1344
  %v1621 = vpop.f32.mrf.mxu0
  %v1622 = vadd.f32 %v1509, %v1621
  %v1623 = vpop.f32.mrf.mxu0
  %v1624 = vadd.f32 %v1511, %v1623
  %v1625 = vpop.f32.mrf.mxu0
  %v1626 = vadd.f32 %v1513, %v1625
  %v1627 = vpop.f32.mrf.mxu0
  %v1628 = vadd.f32 %v1515, %v1627
  %1629 = vmatprep.mubr.bf16.mxu0 %v1353
  %1630 = vmatmul.mubr.bf16.gmra.mxu0 %v1352
  %v1631 = vpop.f32.mrf.mxu0
  %v1632 = vadd.f32 %v1519, %v1631
  %v1633 = vpop.f32.mrf.mxu0
  %v1634 = vadd.f32 %v1521, %v1633
  %v1635 = vpop.f32.mrf.mxu0
  %v1636 = vadd.f32 %v1523, %v1635
  %v1637 = vpop.f32.mrf.mxu0
  %v1638 = vadd.f32 %v1525, %v1637
  %1639 = vmatprep.mubr.bf16.mxu0 %v1361
  %1640 = vmatmul.mubr.bf16.gmra.mxu0 %v1360
  %v1641 = vpop.f32.mrf.mxu0
  %v1642 = vadd.f32 %v1529, %v1641
  %v1643 = vpop.f32.mrf.mxu0
  %v1644 = vadd.f32 %v1531, %v1643
  %v1645 = vpop.f32.mrf.mxu0
  %v1646 = vadd.f32 %v1533, %v1645
  %v1647 = vpop.f32.mrf.mxu0
  %v1648 = vadd.f32 %v1535, %v1647
  %1649 = vmatprep.mubr.bf16.mxu0 %v1369
  %1650 = vmatmul.mubr.bf16.gmra.mxu0 %v1368
  %v1651 = vpop.f32.mrf.mxu0
  %v1652 = vadd.f32 %v1539, %v1651
  %v1653 = vpop.f32.mrf.mxu0
  %v1654 = vadd.f32 %v1541, %v1653
  %v1655 = vpop.f32.mrf.mxu0
  %v1656 = vadd.f32 %v1543, %v1655
  %v1657 = vpop.f32.mrf.mxu0
  %v1658 = vadd.f32 %v1545, %v1657
  %1659 = vmatprep.mubr.bf16.mxu0 %v1377
  %1660 = vmatmul.mubr.bf16.gmra.mxu0 %v1376
  %v1661 = vpop.f32.mrf.mxu0
  %v1662 = vadd.f32 %v1549, %v1661
  %v1663 = vpop.f32.mrf.mxu0
  %v1664 = vadd.f32 %v1551, %v1663
  %v1665 = vpop.f32.mrf.mxu0
  %v1666 = vadd.f32 %v1553, %v1665
  %v1667 = vpop.f32.mrf.mxu0
  %v1668 = vadd.f32 %v1555, %v1667
  %1669 = vmatprep.mubr.bf16.mxu0 %v1385
  %1670 = vmatmul.mubr.bf16.gmra.mxu0 %v1384
  %v1671 = vpop.f32.mrf.mxu0
  %v1672 = vadd.f32 %v1559, %v1671
  %v1673 = vpop.f32.mrf.mxu0
  %v1674 = vadd.f32 %v1561, %v1673
  %v1675 = vpop.f32.mrf.mxu0
  %v1676 = vadd.f32 %v1563, %v1675
  %v1677 = vpop.f32.mrf.mxu0
  %v1678 = vadd.f32 %v1565, %v1677
  %1679 = vdwg.mxu0
  %1680 = vmatprep.subr.bf16.mxu0 %v764
  %1681 = vmatpush1.bf16.msra.mxu0 %v763
  %1682 = vmatprep.subr.bf16.mxu0 %v762
  %1683 = vmatpush1.bf16.msra.mxu0 %v761
  %1684 = vmatprep.subr.bf16.mxu0 %v760
  %1685 = vmatpush1.bf16.msra.mxu0 %v759
  %1686 = vmatprep.subr.bf16.mxu0 %v758
  %1687 = vmatpush1.bf16.msra.mxu0 %v757
  %1688 = vmatprep.subr.bf16.mxu0 %v756
  %1689 = vmatpush1.bf16.msra.mxu0 %v755
  %1690 = vmatprep.subr.bf16.mxu0 %v754
  %1691 = vmatpush1.bf16.msra.mxu0 %v753
  %1692 = vmatprep.subr.bf16.mxu0 %v752
  %1693 = vmatpush1.bf16.msra.mxu0 %v751
  %1694 = vmatprep.subr.bf16.mxu0 %v750
  %1695 = vmatpush1.bf16.msra.mxu0 %v749
  %1696 = vmatprep.subr.bf16.mxu0 %v780
  %1697 = vmatpush2.bf16.msra.mxu0 %v779
  %1698 = vmatprep.subr.bf16.mxu0 %v778
  %1699 = vmatpush2.bf16.msra.mxu0 %v777
  %1700 = vmatprep.subr.bf16.mxu0 %v776
  %1701 = vmatpush2.bf16.msra.mxu0 %v775
  %1702 = vmatprep.subr.bf16.mxu0 %v774
  %1703 = vmatpush2.bf16.msra.mxu0 %v773
  %1704 = vmatprep.subr.bf16.mxu0 %v772
  %1705 = vmatpush2.bf16.msra.mxu0 %v771
  %1706 = vmatprep.subr.bf16.mxu0 %v770
  %1707 = vmatpush2.bf16.msra.mxu0 %v769
  %1708 = vmatprep.subr.bf16.mxu0 %v768
  %1709 = vmatpush2.bf16.msra.mxu0 %v767
  %1710 = vmatprep.subr.bf16.mxu0 %v766
  %1711 = vmatpush2.bf16.msra.mxu0 %v765
  %1712 = vmatprep.mubr.bf16.mxu0 %v1331
  %1713 = vmatmul.mubr.bf16.gmra.mxu0 %v1330
  %v1714 = vpop.f32.mrf.mxu0
  %v1715 = vadd.f32 %v1602, %v1714
  %v1716 = vpop.f32.mrf.mxu0
  %v1717 = vadd.f32 %v1604, %v1716
  %v1718 = vpop.f32.mrf.mxu0
  %v1719 = vadd.f32 %v1606, %v1718
  %v1720 = vpop.f32.mrf.mxu0
  %v1721 = vadd.f32 %v1608, %v1720
  %1722 = vmatprep.mubr.bf16.mxu0 %v1339
  %1723 = vmatmul.mubr.bf16.gmra.mxu0 %v1338
  %v1724 = vpop.f32.mrf.mxu0
  %v1725 = vadd.f32 %v1612, %v1724
  %v1726 = vpop.f32.mrf.mxu0
  %v1727 = vadd.f32 %v1614, %v1726
  %v1728 = vpop.f32.mrf.mxu0
  %v1729 = vadd.f32 %v1616, %v1728
  %v1730 = vpop.f32.mrf.mxu0
  %v1731 = vadd.f32 %v1618, %v1730
  %1732 = vmatprep.mubr.bf16.mxu0 %v1347
  %1733 = vmatmul.mubr.bf16.gmra.mxu0 %v1346
  %v1734 = vpop.f32.mrf.mxu0
  %v1735 = vadd.f32 %v1622, %v1734
  %v1736 = vpop.f32.mrf.mxu0
  %v1737 = vadd.f32 %v1624, %v1736
  %v1738 = vpop.f32.mrf.mxu0
  %v1739 = vadd.f32 %v1626, %v1738
  %v1740 = vpop.f32.mrf.mxu0
  %v1741 = vadd.f32 %v1628, %v1740
  %1742 = vmatprep.mubr.bf16.mxu0 %v1355
  %1743 = vmatmul.mubr.bf16.gmra.mxu0 %v1354
  %v1744 = vpop.f32.mrf.mxu0
  %v1745 = vadd.f32 %v1632, %v1744
  %v1746 = vpop.f32.mrf.mxu0
  %v1747 = vadd.f32 %v1634, %v1746
  %v1748 = vpop.f32.mrf.mxu0
  %v1749 = vadd.f32 %v1636, %v1748
  %v1750 = vpop.f32.mrf.mxu0
  %v1751 = vadd.f32 %v1638, %v1750
  %1752 = vmatprep.mubr.bf16.mxu0 %v1363
  %1753 = vmatmul.mubr.bf16.gmra.mxu0 %v1362
  %v1754 = vpop.f32.mrf.mxu0
  %v1755 = vadd.f32 %v1642, %v1754
  %v1756 = vpop.f32.mrf.mxu0
  %v1757 = vadd.f32 %v1644, %v1756
  %v1758 = vpop.f32.mrf.mxu0
  %v1759 = vadd.f32 %v1646, %v1758
  %v1760 = vpop.f32.mrf.mxu0
  %v1761 = vadd.f32 %v1648, %v1760
  %1762 = vmatprep.mubr.bf16.mxu0 %v1371
  %1763 = vmatmul.mubr.bf16.gmra.mxu0 %v1370
  %v1764 = vpop.f32.mrf.mxu0
  %v1765 = vadd.f32 %v1652, %v1764
  %v1766 = vpop.f32.mrf.mxu0
  %v1767 = vadd.f32 %v1654, %v1766
  %v1768 = vpop.f32.mrf.mxu0
  %v1769 = vadd.f32 %v1656, %v1768
  %v1770 = vpop.f32.mrf.mxu0
  %v1771 = vadd.f32 %v1658, %v1770
  %1772 = vmatprep.mubr.bf16.mxu0 %v1379
  %1773 = vmatmul.mubr.bf16.gmra.mxu0 %v1378
  %v1774 = vpop.f32.mrf.mxu0
  %v1775 = vadd.f32 %v1662, %v1774
  %v1776 = vpop.f32.mrf.mxu0
  %v1777 = vadd.f32 %v1664, %v1776
  %v1778 = vpop.f32.mrf.mxu0
  %v1779 = vadd.f32 %v1666, %v1778
  %v1780 = vpop.f32.mrf.mxu0
  %v1781 = vadd.f32 %v1668, %v1780
  %1782 = vmatprep.mubr.bf16.mxu0 %v1387
  %1783 = vmatmul.mubr.bf16.gmra.mxu0 %v1386
  %v1784 = vpop.f32.mrf.mxu0
  %v1785 = vadd.f32 %v1672, %v1784
  %v1786 = vpop.f32.mrf.mxu0
  %v1787 = vadd.f32 %v1674, %v1786
  %v1788 = vpop.f32.mrf.mxu0
  %v1789 = vadd.f32 %v1676, %v1788
  %v1790 = vpop.f32.mrf.mxu0
  %v1791 = vadd.f32 %v1678, %v1790
  %1792 = vdwg.mxu0
  %1793 = vmatprep.subr.bf16.mxu0 %v925
  %1794 = vmatpush1.bf16.msra.mxu0 %v924
  %1795 = vmatprep.subr.bf16.mxu0 %v923
  %1796 = vmatpush1.bf16.msra.mxu0 %v922
  %1797 = vmatprep.subr.bf16.mxu0 %v921
  %1798 = vmatpush1.bf16.msra.mxu0 %v920
  %1799 = vmatprep.subr.bf16.mxu0 %v919
  %1800 = vmatpush1.bf16.msra.mxu0 %v918
  %1801 = vmatprep.subr.bf16.mxu0 %v917
  %1802 = vmatpush1.bf16.msra.mxu0 %v916
  %1803 = vmatprep.subr.bf16.mxu0 %v915
  %1804 = vmatpush1.bf16.msra.mxu0 %v914
  %1805 = vmatprep.subr.bf16.mxu0 %v913
  %1806 = vmatpush1.bf16.msra.mxu0 %v912
  %1807 = vmatprep.subr.bf16.mxu0 %v911
  %1808 = vmatpush1.bf16.msra.mxu0 %v910
  %1809 = vmatprep.subr.bf16.mxu0 %v941
  %1810 = vmatpush2.bf16.msra.mxu0 %v940
  %1811 = vmatprep.subr.bf16.mxu0 %v939
  %1812 = vmatpush2.bf16.msra.mxu0 %v938
  %1813 = vmatprep.subr.bf16.mxu0 %v937
  %1814 = vmatpush2.bf16.msra.mxu0 %v936
  %1815 = vmatprep.subr.bf16.mxu0 %v935
  %1816 = vmatpush2.bf16.msra.mxu0 %v934
  %1817 = vmatprep.subr.bf16.mxu0 %v933
  %1818 = vmatpush2.bf16.msra.mxu0 %v932
  %1819 = vmatprep.subr.bf16.mxu0 %v931
  %1820 = vmatpush2.bf16.msra.mxu0 %v930
  %1821 = vmatprep.subr.bf16.mxu0 %v929
  %1822 = vmatpush2.bf16.msra.mxu0 %v928
  %1823 = vmatprep.subr.bf16.mxu0 %v927
  %1824 = vmatpush2.bf16.msra.mxu0 %v926
  %1825 = vmatprep.mubr.bf16.mxu0 %v1333
  %1826 = vmatmul.mubr.bf16.gmra.mxu0 %v1332
  %v1827 = vpop.f32.mrf.mxu0
  %v1828 = vadd.f32 %v1715, %v1827
  %v1829 = vpop.f32.mrf.mxu0
  %v1830 = vadd.f32 %v1717, %v1829
  %v1831 = vpop.f32.mrf.mxu0
  %v1832 = vadd.f32 %v1719, %v1831
  %v1833 = vpop.f32.mrf.mxu0
  %v1834 = vadd.f32 %v1721, %v1833
  %1835 = vmatprep.mubr.bf16.mxu0 %v1341
  %1836 = vmatmul.mubr.bf16.gmra.mxu0 %v1340
  %v1837 = vpop.f32.mrf.mxu0
  %v1838 = vadd.f32 %v1725, %v1837
  %v1839 = vpop.f32.mrf.mxu0
  %v1840 = vadd.f32 %v1727, %v1839
  %v1841 = vpop.f32.mrf.mxu0
  %v1842 = vadd.f32 %v1729, %v1841
  %v1843 = vpop.f32.mrf.mxu0
  %v1844 = vadd.f32 %v1731, %v1843
  %1845 = vmatprep.mubr.bf16.mxu0 %v1349
  %1846 = vmatmul.mubr.bf16.gmra.mxu0 %v1348
  %v1847 = vpop.f32.mrf.mxu0
  %v1848 = vadd.f32 %v1735, %v1847
  %v1849 = vpop.f32.mrf.mxu0
  %v1850 = vadd.f32 %v1737, %v1849
  %v1851 = vpop.f32.mrf.mxu0
  %v1852 = vadd.f32 %v1739, %v1851
  %v1853 = vpop.f32.mrf.mxu0
  %v1854 = vadd.f32 %v1741, %v1853
  %1855 = vmatprep.mubr.bf16.mxu0 %v1357
  %1856 = vmatmul.mubr.bf16.gmra.mxu0 %v1356
  %v1857 = vpop.f32.mrf.mxu0
  %v1858 = vadd.f32 %v1745, %v1857
  %v1859 = vpop.f32.mrf.mxu0
  %v1860 = vadd.f32 %v1747, %v1859
  %v1861 = vpop.f32.mrf.mxu0
  %v1862 = vadd.f32 %v1749, %v1861
  %v1863 = vpop.f32.mrf.mxu0
  %v1864 = vadd.f32 %v1751, %v1863
  %1865 = vmatprep.mubr.bf16.mxu0 %v1365
  %1866 = vmatmul.mubr.bf16.gmra.mxu0 %v1364
  %v1867 = vpop.f32.mrf.mxu0
  %v1868 = vadd.f32 %v1755, %v1867
  %v1869 = vpop.f32.mrf.mxu0
  %v1870 = vadd.f32 %v1757, %v1869
  %v1871 = vpop.f32.mrf.mxu0
  %v1872 = vadd.f32 %v1759, %v1871
  %v1873 = vpop.f32.mrf.mxu0
  %v1874 = vadd.f32 %v1761, %v1873
  %1875 = vmatprep.mubr.bf16.mxu0 %v1373
  %1876 = vmatmul.mubr.bf16.gmra.mxu0 %v1372
  %v1877 = vpop.f32.mrf.mxu0
  %v1878 = vadd.f32 %v1765, %v1877
  %v1879 = vpop.f32.mrf.mxu0
  %v1880 = vadd.f32 %v1767, %v1879
  %v1881 = vpop.f32.mrf.mxu0
  %v1882 = vadd.f32 %v1769, %v1881
  %v1883 = vpop.f32.mrf.mxu0
  %v1884 = vadd.f32 %v1771, %v1883
  %1885 = vmatprep.mubr.bf16.mxu0 %v1381
  %1886 = vmatmul.mubr.bf16.gmra.mxu0 %v1380
  %v1887 = vpop.f32.mrf.mxu0
  %v1888 = vadd.f32 %v1775, %v1887
  %v1889 = vpop.f32.mrf.mxu0
  %v1890 = vadd.f32 %v1777, %v1889
  %v1891 = vpop.f32.mrf.mxu0
  %v1892 = vadd.f32 %v1779, %v1891
  %v1893 = vpop.f32.mrf.mxu0
  %v1894 = vadd.f32 %v1781, %v1893
  %1895 = vmatprep.mubr.bf16.mxu0 %v1389
  %1896 = vmatmul.mubr.bf16.gmra.mxu0 %v1388
  %v1897 = vpop.f32.mrf.mxu0
  %v1898 = vadd.f32 %v1785, %v1897
  %v1899 = vpop.f32.mrf.mxu0
  %v1900 = vadd.f32 %v1787, %v1899
  %v1901 = vpop.f32.mrf.mxu0
  %v1902 = vadd.f32 %v1789, %v1901
  %v1903 = vpop.f32.mrf.mxu0
  %v1904 = vadd.f32 %v1791, %v1903
  %1905 = vdwg.mxu0
  %v1906 = vmax.f32 %v1828, 0.0
  %v1907 = vmax.f32 %v1830, 0.0
  %v1908 = vmax.f32 %v1832, 0.0
  %v1909 = vmax.f32 %v1834, 0.0
  %v1910 = vmax.f32 %v1838, 0.0
  %v1911 = vmax.f32 %v1840, 0.0
  %v1912 = vmax.f32 %v1842, 0.0
  %v1913 = vmax.f32 %v1844, 0.0
  %v1914 = vmax.f32 %v1848, 0.0
  %v1915 = vmax.f32 %v1850, 0.0
  %v1916 = vmax.f32 %v1852, 0.0
  %v1917 = vmax.f32 %v1854, 0.0
  %v1918 = vmax.f32 %v1858, 0.0
  %v1919 = vmax.f32 %v1860, 0.0
  %v1920 = vmax.f32 %v1862, 0.0
  %v1921 = vmax.f32 %v1864, 0.0
  %v1922 = vmax.f32 %v1868, 0.0
  %v1923 = vmax.f32 %v1870, 0.0
  %v1924 = vmax.f32 %v1872, 0.0
  %v1925 = vmax.f32 %v1874, 0.0
  %v1926 = vmax.f32 %v1878, 0.0
  %v1927 = vmax.f32 %v1880, 0.0
  %v1928 = vmax.f32 %v1882, 0.0
  %v1929 = vmax.f32 %v1884, 0.0
  %v1930 = vmax.f32 %v1888, 0.0
  %v1931 = vmax.f32 %v1890, 0.0
  %v1932 = vmax.f32 %v1892, 0.0
  %v1933 = vmax.f32 %v1894, 0.0
  %v1934 = vmax.f32 %v1898, 0.0
  %v1935 = vmax.f32 %v1900, 0.0
  %v1936 = vmax.f32 %v1902, 0.0
  %v1937 = vmax.f32 %v1904, 0.0
  %v1938 = vpack.c.bf16 %v1908, %v1906
  %v1939 = vpack.c.bf16 %v1909, %v1907
  %v1940 = vpack.c.bf16 %v1912, %v1910
  %v1941 = vpack.c.bf16 %v1913, %v1911
  %v1942 = vpack.c.bf16 %v1916, %v1914
  %v1943 = vpack.c.bf16 %v1917, %v1915
  %v1944 = vpack.c.bf16 %v1920, %v1918
  %v1945 = vpack.c.bf16 %v1921, %v1919
  %v1946 = vpack.c.bf16 %v1924, %v1922
  %v1947 = vpack.c.bf16 %v1925, %v1923
  %v1948 = vpack.c.bf16 %v1928, %v1926
  %v1949 = vpack.c.bf16 %v1929, %v1927
  %v1950 = vpack.c.bf16 %v1932, %v1930
  %v1951 = vpack.c.bf16 %v1933, %v1931
  %v1952 = vpack.c.bf16 %v1936, %v1934
  %v1953 = vpack.c.bf16 %v1937, %v1935
  %v1970 = vunpack.c.l.b16 %v1938
  %v1971 = vunpack.c.l.b16 %v1939
  %v1972 = vunpack.c.h.b16 %v1938
  %v1973 = vunpack.c.h.b16 %v1939
  %v1974 = vunpack.c.l.b16 %v1940
  %v1975 = vunpack.c.l.b16 %v1941
  %v1976 = vunpack.c.h.b16 %v1940
  %v1977 = vunpack.c.h.b16 %v1941
  %v1978 = vunpack.c.l.b16 %v1942
  %v1979 = vunpack.c.l.b16 %v1943
  %v1980 = vunpack.c.h.b16 %v1942
  %v1981 = vunpack.c.h.b16 %v1943
  %v1982 = vunpack.c.l.b16 %v1944
  %v1983 = vunpack.c.l.b16 %v1945
  %v1984 = vunpack.c.h.b16 %v1944
  %v1985 = vunpack.c.h.b16 %v1945
  %v1986 = vunpack.c.l.b16 %v1946
  %v1987 = vunpack.c.l.b16 %v1947
  %v1988 = vunpack.c.h.b16 %v1946
  %v1989 = vunpack.c.h.b16 %v1947
  %v1990 = vunpack.c.l.b16 %v1948
  %v1991 = vunpack.c.l.b16 %v1949
  %v1992 = vunpack.c.h.b16 %v1948
  %v1993 = vunpack.c.h.b16 %v1949
  %v1994 = vunpack.c.l.b16 %v1950
  %v1995 = vunpack.c.l.b16 %v1951
  %v1996 = vunpack.c.h.b16 %v1950
  %v1997 = vunpack.c.h.b16 %v1951
  %v1998 = vunpack.c.l.b16 %v1952
  %v1999 = vunpack.c.l.b16 %v1953
  %v2000 = vunpack.c.h.b16 %v1952
  %v2001 = vunpack.c.h.b16 %v1953
  %v2002 = vpack.c.b16 %v1971, %v1970
  %v2003 = vpack.c.b16 %v1973, %v1972
  %v2004 = vpack.c.b16 %v1975, %v1974
  %v2005 = vpack.c.b16 %v1977, %v1976
  %v2006 = vpack.c.b16 %v1979, %v1978
  %v2007 = vpack.c.b16 %v1981, %v1980
  %v2008 = vpack.c.b16 %v1983, %v1982
  %v2009 = vpack.c.b16 %v1985, %v1984
  %v2010 = vpack.c.b16 %v1987, %v1986
  %v2011 = vpack.c.b16 %v1989, %v1988
  %v2012 = vpack.c.b16 %v1991, %v1990
  %v2013 = vpack.c.b16 %v1993, %v1992
  %v2014 = vpack.c.b16 %v1995, %v1994
  %v2015 = vpack.c.b16 %v1997, %v1996
  %v2016 = vpack.c.b16 %v1999, %v1998
  %v2017 = vpack.c.b16 %v2001, %v2000
  %2034 = vst [vmem:[#allocation2] sm:$0xff] %v2002
  %2035 = vst [vmem:[#allocation2 + $0xc] sm:$0xff] %v2003
  %2036 = vst [vmem:[#allocation2 + $0x18] sm:$0xff] %v2004
  %2037 = vst [vmem:[#allocation2 + $0x24] sm:$0xff] %v2005
  %2038 = vst [vmem:[#allocation2 + $0x30] sm:$0xff] %v2006
  %2039 = vst [vmem:[#allocation2 + $0x3c] sm:$0xff] %v2007
  %2040 = vst [vmem:[#allocation2 + $0x48] sm:$0xff] %v2008
  %2041 = vst [vmem:[#allocation2 + $0x54] sm:$0xff] %v2009
  %2042 = vst [vmem:[#allocation2 + $0x60] sm:$0xff] %v2010
  %2043 = vst [vmem:[#allocation2 + $0x6c] sm:$0xff] %v2011
  %2044 = vst [vmem:[#allocation2 + $0x78] sm:$0xff] %v2012
  %2045 = vst [vmem:[#allocation2 + $0x84] sm:$0xff] %v2013
  %2046 = vst [vmem:[#allocation2 + $0x90] sm:$0xff] %v2014
  %2047 = vst [vmem:[#allocation2 + $0x9c] sm:$0xff] %v2015
  %2048 = vst [vmem:[#allocation2 + $0xa8] sm:$0xff] %v2016
  %2049 = vst [vmem:[#allocation2 + $0xb4] sm:$0xff] %v2017
  %2050 = vst [vmem:[#allocation2 + $0x8] sm:$0xf] 0
  %2051 = vst [vmem:[#allocation2 + $0x14] sm:$0xf] 0
  %2052 = vst [vmem:[#allocation2 + $0x20] sm:$0xf] 0
  %2053 = vst [vmem:[#allocation2 + $0x2c] sm:$0xf] 0
  %2054 = vst [vmem:[#allocation2 + $0x38] sm:$0xf] 0
  %2055 = vst [vmem:[#allocation2 + $0x44] sm:$0xf] 0
  %2056 = vst [vmem:[#allocation2 + $0x50] sm:$0xf] 0
  %2057 = vst [vmem:[#allocation2 + $0x5c] sm:$0xf] 0
  %2058 = vst [vmem:[#allocation2 + $0x68] sm:$0xf] 0
  %2059 = vst [vmem:[#allocation2 + $0x74] sm:$0xf] 0
  %2060 = vst [vmem:[#allocation2 + $0x80] sm:$0xf] 0
  %2061 = vst [vmem:[#allocation2 + $0x8c] sm:$0xf] 0
  %2062 = vst [vmem:[#allocation2 + $0x98] sm:$0xf] 0
  %2063 = vst [vmem:[#allocation2 + $0xa4] sm:$0xf] 0
  %2064 = vst [vmem:[#allocation2 + $0xb0] sm:$0xf] 0
  %2065 = vst [vmem:[#allocation2 + $0xbc] sm:$0xf] 0
  %v2066 = vld [vmem:[#allocation2] sm:$0xff]
  %v2067 = vld [vmem:[#allocation2 + $0xc] sm:$0xff]
  %v2068 = vld [vmem:[#allocation2 + $0x18] sm:$0xff]
  %v2069 = vld [vmem:[#allocation2 + $0x24] sm:$0xff]
  %v2070 = vld [vmem:[#allocation2 + $0x30] sm:$0xff]
  %v2071 = vld [vmem:[#allocation2 + $0x3c] sm:$0xff]
  %v2072 = vld [vmem:[#allocation2 + $0x48] sm:$0xff]
  %v2073 = vld [vmem:[#allocation2 + $0x54] sm:$0xff]
  %v2074 = vld [vmem:[#allocation2 + $0x60] sm:$0xff]
  %v2075 = vld [vmem:[#allocation2 + $0x6c] sm:$0xff]
  %v2076 = vld [vmem:[#allocation2 + $0x78] sm:$0xff]
  %v2077 = vld [vmem:[#allocation2 + $0x84] sm:$0xff]
  %v2078 = vld [vmem:[#allocation2 + $0x90] sm:$0xff]
  %v2079 = vld [vmem:[#allocation2 + $0x9c] sm:$0xff]
  %v2080 = vld [vmem:[#allocation2 + $0xa8] sm:$0xff]
  %v2081 = vld [vmem:[#allocation2 + $0xb4] sm:$0xff]
  %v2082 = vld [vmem:[#allocation2] sm:$0xff]
  %v2083 = vld [vmem:[#allocation2 + $0x8] sm:$0xf]
  %v2084 = vld [vmem:[#allocation2 + $0xc] sm:$0xff]
  %v2085 = vld [vmem:[#allocation2 + $0x14] sm:$0xf]
  %v2086 = vld [vmem:[#allocation2 + $0x18] sm:$0xff]
  %v2087 = vld [vmem:[#allocation2 + $0x20] sm:$0xf]
  %v2088 = vld [vmem:[#allocation2 + $0x24] sm:$0xff]
  %v2089 = vld [vmem:[#allocation2 + $0x2c] sm:$0xf]
  %v2090 = vld [vmem:[#allocation2 + $0x30] sm:$0xff]
  %v2091 = vld [vmem:[#allocation2 + $0x38] sm:$0xf]
  %v2092 = vld [vmem:[#allocation2 + $0x3c] sm:$0xff]
  %v2093 = vld [vmem:[#allocation2 + $0x44] sm:$0xf]
  %v2094 = vld [vmem:[#allocation2 + $0x48] sm:$0xff]
  %v2095 = vld [vmem:[#allocation2 + $0x50] sm:$0xf]
  %v2096 = vld [vmem:[#allocation2 + $0x54] sm:$0xff]
  %v2097 = vld [vmem:[#allocation2 + $0x5c] sm:$0xf]
  %v2098 = vld [vmem:[#allocation2 + $0x60] sm:$0xff]
  %v2099 = vld [vmem:[#allocation2 + $0x68] sm:$0xf]
  %v2100 = vld [vmem:[#allocation2 + $0x6c] sm:$0xff]
  %v2101 = vld [vmem:[#allocation2 + $0x74] sm:$0xf]
  %v2102 = vld [vmem:[#allocation2 + $0x78] sm:$0xff]
  %v2103 = vld [vmem:[#allocation2 + $0x80] sm:$0xf]
  %v2104 = vld [vmem:[#allocation2 + $0x84] sm:$0xff]
  %v2105 = vld [vmem:[#allocation2 + $0x8c] sm:$0xf]
  %v2106 = vld [vmem:[#allocation2 + $0x90] sm:$0xff]
  %v2107 = vld [vmem:[#allocation2 + $0x98] sm:$0xf]
  %v2108 = vld [vmem:[#allocation2 + $0x9c] sm:$0xff]
  %v2109 = vld [vmem:[#allocation2 + $0xa4] sm:$0xf]
  %v2110 = vld [vmem:[#allocation2 + $0xa8] sm:$0xff]
  %v2111 = vld [vmem:[#allocation2 + $0xb0] sm:$0xf]
  %v2112 = vld [vmem:[#allocation2 + $0xb4] sm:$0xff]
  %v2113 = vld [vmem:[#allocation2 + $0xbc] sm:$0xf]
  %v2130 = vunpack.c.l.b16 %v2066
  %v2131 = vunpack.c.h.b16 %v2066
  %v2132 = vunpack.c.l.b16 %v2067
  %v2133 = vunpack.c.h.b16 %v2067
  %v2134 = vunpack.c.l.b16 %v2068
  %v2135 = vunpack.c.h.b16 %v2068
  %v2136 = vunpack.c.l.b16 %v2069
  %v2137 = vunpack.c.h.b16 %v2069
  %v2138 = vunpack.c.l.b16 %v2070
  %v2139 = vunpack.c.h.b16 %v2070
  %v2140 = vunpack.c.l.b16 %v2071
  %v2141 = vunpack.c.h.b16 %v2071
  %v2142 = vunpack.c.l.b16 %v2072
  %v2143 = vunpack.c.h.b16 %v2072
  %v2144 = vunpack.c.l.b16 %v2073
  %v2145 = vunpack.c.h.b16 %v2073
  %v2146 = vunpack.c.l.b16 %v2074
  %v2147 = vunpack.c.h.b16 %v2074
  %v2148 = vunpack.c.l.b16 %v2075
  %v2149 = vunpack.c.h.b16 %v2075
  %v2150 = vunpack.c.l.b16 %v2076
  %v2151 = vunpack.c.h.b16 %v2076
  %v2152 = vunpack.c.l.b16 %v2077
  %v2153 = vunpack.c.h.b16 %v2077
  %v2154 = vunpack.c.l.b16 %v2078
  %v2155 = vunpack.c.h.b16 %v2078
  %v2156 = vunpack.c.l.b16 %v2079
  %v2157 = vunpack.c.h.b16 %v2079
  %v2158 = vunpack.c.l.b16 %v2080
  %v2159 = vunpack.c.h.b16 %v2080
  %v2160 = vunpack.c.l.b16 %v2081
  %v2161 = vunpack.c.h.b16 %v2081
  %v2162 = vpack.c.b16 %v2132, %v2130
  %v2163 = vpack.c.b16 %v2133, %v2131
  %v2164 = vpack.c.b16 %v2136, %v2134
  %v2165 = vpack.c.b16 %v2137, %v2135
  %v2166 = vpack.c.b16 %v2140, %v2138
  %v2167 = vpack.c.b16 %v2141, %v2139
  %v2168 = vpack.c.b16 %v2144, %v2142
  %v2169 = vpack.c.b16 %v2145, %v2143
  %v2170 = vpack.c.b16 %v2148, %v2146
  %v2171 = vpack.c.b16 %v2149, %v2147
  %v2172 = vpack.c.b16 %v2152, %v2150
  %v2173 = vpack.c.b16 %v2153, %v2151
  %v2174 = vpack.c.b16 %v2156, %v2154
  %v2175 = vpack.c.b16 %v2157, %v2155
  %v2176 = vpack.c.b16 %v2160, %v2158
  %v2177 = vpack.c.b16 %v2161, %v2159
  %v2226 = vunpack.c.l.b16 %v2082
  %v2227 = vunpack.c.h.b16 %v2082
  %v2228 = vunpack.c.l.b16 %v2083
  %v2229 = vunpack.c.l.b16 %v2084
  %v2230 = vunpack.c.h.b16 %v2084
  %v2231 = vunpack.c.l.b16 %v2085
  %v2232 = vunpack.c.l.b16 %v2086
  %v2233 = vunpack.c.h.b16 %v2086
  %v2234 = vunpack.c.l.b16 %v2087
  %v2235 = vunpack.c.l.b16 %v2088
  %v2236 = vunpack.c.h.b16 %v2088
  %v2237 = vunpack.c.l.b16 %v2089
  %v2238 = vunpack.c.l.b16 %v2090
  %v2239 = vunpack.c.h.b16 %v2090
  %v2240 = vunpack.c.l.b16 %v2091
  %v2241 = vunpack.c.l.b16 %v2092
  %v2242 = vunpack.c.h.b16 %v2092
  %v2243 = vunpack.c.l.b16 %v2093
  %v2244 = vunpack.c.l.b16 %v2094
  %v2245 = vunpack.c.h.b16 %v2094
  %v2246 = vunpack.c.l.b16 %v2095
  %v2247 = vunpack.c.l.b16 %v2096
  %v2248 = vunpack.c.h.b16 %v2096
  %v2249 = vunpack.c.l.b16 %v2097
  %v2250 = vunpack.c.l.b16 %v2098
  %v2251 = vunpack.c.h.b16 %v2098
  %v2252 = vunpack.c.l.b16 %v2099
  %v2253 = vunpack.c.l.b16 %v2100
  %v2254 = vunpack.c.h.b16 %v2100
  %v2255 = vunpack.c.l.b16 %v2101
  %v2256 = vunpack.c.l.b16 %v2102
  %v2257 = vunpack.c.h.b16 %v2102
  %v2258 = vunpack.c.l.b16 %v2103
  %v2259 = vunpack.c.l.b16 %v2104
  %v2260 = vunpack.c.h.b16 %v2104
  %v2261 = vunpack.c.l.b16 %v2105
  %v2262 = vunpack.c.l.b16 %v2106
  %v2263 = vunpack.c.h.b16 %v2106
  %v2264 = vunpack.c.l.b16 %v2107
  %v2265 = vunpack.c.l.b16 %v2108
  %v2266 = vunpack.c.h.b16 %v2108
  %v2267 = vunpack.c.l.b16 %v2109
  %v2268 = vunpack.c.l.b16 %v2110
  %v2269 = vunpack.c.h.b16 %v2110
  %v2270 = vunpack.c.l.b16 %v2111
  %v2271 = vunpack.c.l.b16 %v2112
  %v2272 = vunpack.c.h.b16 %v2112
  %v2273 = vunpack.c.l.b16 %v2113
  %v2274 = vpack.c.b16 %v2229, %v2226
  %v2275 = vpack.c.b16 %v2230, %v2227
  %v2276 = vpack.c.b16 %v2231, %v2228
  %v2277 = vpack.c.b16 %v2235, %v2232
  %v2278 = vpack.c.b16 %v2236, %v2233
  %v2279 = vpack.c.b16 %v2237, %v2234
  %v2280 = vpack.c.b16 %v2241, %v2238
  %v2281 = vpack.c.b16 %v2242, %v2239
  %v2282 = vpack.c.b16 %v2243, %v2240
  %v2283 = vpack.c.b16 %v2247, %v2244
  %v2284 = vpack.c.b16 %v2248, %v2245
  %v2285 = vpack.c.b16 %v2249, %v2246
  %v2286 = vpack.c.b16 %v2253, %v2250
  %v2287 = vpack.c.b16 %v2254, %v2251
  %v2288 = vpack.c.b16 %v2255, %v2252
  %v2289 = vpack.c.b16 %v2259, %v2256
  %v2290 = vpack.c.b16 %v2260, %v2257
  %v2291 = vpack.c.b16 %v2261, %v2258
  %v2292 = vpack.c.b16 %v2265, %v2262
  %v2293 = vpack.c.b16 %v2266, %v2263
  %v2294 = vpack.c.b16 %v2267, %v2264
  %v2295 = vpack.c.b16 %v2271, %v2268
  %v2296 = vpack.c.b16 %v2272, %v2269
  %v2297 = vpack.c.b16 %v2273, %v2270
  %2298 = vrot.lane.b32.xlu0 %v2274, 127
  %v2299 = vpop.permute.xlu0 %2298
  %2300 = vrot.lane.b32.xlu0 %v2275, 127
  %v2301 = vpop.permute.xlu0 %2300
  %2302 = vrot.lane.b32.xlu0 %v2276, 127
  %v2303 = vpop.permute.xlu0 %2302
  %2304 = vrot.lane.b32.xlu0 %v2277, 127
  %v2305 = vpop.permute.xlu0 %2304
  %2306 = vrot.lane.b32.xlu0 %v2278, 127
  %v2307 = vpop.permute.xlu0 %2306
  %2308 = vrot.lane.b32.xlu0 %v2279, 127
  %v2309 = vpop.permute.xlu0 %2308
  %2310 = vrot.lane.b32.xlu0 %v2280, 127
  %v2311 = vpop.permute.xlu0 %2310
  %2312 = vrot.lane.b32.xlu0 %v2281, 127
  %v2313 = vpop.permute.xlu0 %2312
  %2314 = vrot.lane.b32.xlu0 %v2282, 127
  %v2315 = vpop.permute.xlu0 %2314
  %2316 = vrot.lane.b32.xlu0 %v2283, 127
  %v2317 = vpop.permute.xlu0 %2316
  %2318 = vrot.lane.b32.xlu0 %v2284, 127
  %v2319 = vpop.permute.xlu0 %2318
  %2320 = vrot.lane.b32.xlu0 %v2285, 127
  %v2321 = vpop.permute.xlu0 %2320
  %2322 = vrot.lane.b32.xlu0 %v2286, 127
  %v2323 = vpop.permute.xlu0 %2322
  %2324 = vrot.lane.b32.xlu0 %v2287, 127
  %v2325 = vpop.permute.xlu0 %2324
  %2326 = vrot.lane.b32.xlu0 %v2288, 127
  %v2327 = vpop.permute.xlu0 %2326
  %2328 = vrot.lane.b32.xlu0 %v2289, 127
  %v2329 = vpop.permute.xlu0 %2328
  %2330 = vrot.lane.b32.xlu0 %v2290, 127
  %v2331 = vpop.permute.xlu0 %2330
  %2332 = vrot.lane.b32.xlu0 %v2291, 127
  %v2333 = vpop.permute.xlu0 %2332
  %2334 = vrot.lane.b32.xlu0 %v2292, 127
  %v2335 = vpop.permute.xlu0 %2334
  %2336 = vrot.lane.b32.xlu0 %v2293, 127
  %v2337 = vpop.permute.xlu0 %2336
  %2338 = vrot.lane.b32.xlu0 %v2294, 127
  %v2339 = vpop.permute.xlu0 %2338
  %2340 = vrot.lane.b32.xlu0 %v2295, 127
  %v2341 = vpop.permute.xlu0 %2340
  %2342 = vrot.lane.b32.xlu0 %v2296, 127
  %v2343 = vpop.permute.xlu0 %2342
  %2344 = vrot.lane.b32.xlu0 %v2297, 127
  %v2345 = vpop.permute.xlu0 %2344
  %v2346 = vsel %vm587, %v2299, %v2301
  %v2347 = vsel %vm587, %v2301, %v2303
  %v2348 = vsel %vm587, %v2305, %v2307
  %v2349 = vsel %vm587, %v2307, %v2309
  %v2350 = vsel %vm587, %v2311, %v2313
  %v2351 = vsel %vm587, %v2313, %v2315
  %v2352 = vsel %vm587, %v2317, %v2319
  %v2353 = vsel %vm587, %v2319, %v2321
  %v2354 = vsel %vm587, %v2323, %v2325
  %v2355 = vsel %vm587, %v2325, %v2327
  %v2356 = vsel %vm587, %v2329, %v2331
  %v2357 = vsel %vm587, %v2331, %v2333
  %v2358 = vsel %vm587, %v2335, %v2337
  %v2359 = vsel %vm587, %v2337, %v2339
  %v2360 = vsel %vm587, %v2341, %v2343
  %v2361 = vsel %vm587, %v2343, %v2345
  %2378 = vrot.lane.b32.xlu0 %v2274, 117
  %v2379 = vpop.permute.xlu0 %2378
  %2380 = vrot.lane.b32.xlu0 %v2275, 117
  %v2381 = vpop.permute.xlu0 %2380
  %2382 = vrot.lane.b32.xlu0 %v2276, 117
  %v2383 = vpop.permute.xlu0 %2382
  %2384 = vrot.lane.b32.xlu0 %v2277, 117
  %v2385 = vpop.permute.xlu0 %2384
  %2386 = vrot.lane.b32.xlu0 %v2278, 117
  %v2387 = vpop.permute.xlu0 %2386
  %2388 = vrot.lane.b32.xlu0 %v2279, 117
  %v2389 = vpop.permute.xlu0 %2388
  %2390 = vrot.lane.b32.xlu0 %v2280, 117
  %v2391 = vpop.permute.xlu0 %2390
  %2392 = vrot.lane.b32.xlu0 %v2281, 117
  %v2393 = vpop.permute.xlu0 %2392
  %2394 = vrot.lane.b32.xlu0 %v2282, 117
  %v2395 = vpop.permute.xlu0 %2394
  %2396 = vrot.lane.b32.xlu0 %v2283, 117
  %v2397 = vpop.permute.xlu0 %2396
  %2398 = vrot.lane.b32.xlu0 %v2284, 117
  %v2399 = vpop.permute.xlu0 %2398
  %2400 = vrot.lane.b32.xlu0 %v2285, 117
  %v2401 = vpop.permute.xlu0 %2400
  %2402 = vrot.lane.b32.xlu0 %v2286, 117
  %v2403 = vpop.permute.xlu0 %2402
  %2404 = vrot.lane.b32.xlu0 %v2287, 117
  %v2405 = vpop.permute.xlu0 %2404
  %2406 = vrot.lane.b32.xlu0 %v2288, 117
  %v2407 = vpop.permute.xlu0 %2406
  %2408 = vrot.lane.b32.xlu0 %v2289, 117
  %v2409 = vpop.permute.xlu0 %2408
  %2410 = vrot.lane.b32.xlu0 %v2290, 117
  %v2411 = vpop.permute.xlu0 %2410
  %2412 = vrot.lane.b32.xlu0 %v2291, 117
  %v2413 = vpop.permute.xlu0 %2412
  %2414 = vrot.lane.b32.xlu0 %v2292, 117
  %v2415 = vpop.permute.xlu0 %2414
  %2416 = vrot.lane.b32.xlu0 %v2293, 117
  %v2417 = vpop.permute.xlu0 %2416
  %2418 = vrot.lane.b32.xlu0 %v2294, 117
  %v2419 = vpop.permute.xlu0 %2418
  %2420 = vrot.lane.b32.xlu0 %v2295, 117
  %v2421 = vpop.permute.xlu0 %2420
  %2422 = vrot.lane.b32.xlu0 %v2296, 117
  %v2423 = vpop.permute.xlu0 %2422
  %2424 = vrot.lane.b32.xlu0 %v2297, 117
  %v2425 = vpop.permute.xlu0 %2424
  %v2426 = vsel %vm748, %v2379, %v2381
  %v2427 = vsel %vm748, %v2381, %v2383
  %v2428 = vsel %vm748, %v2385, %v2387
  %v2429 = vsel %vm748, %v2387, %v2389
  %v2430 = vsel %vm748, %v2391, %v2393
  %v2431 = vsel %vm748, %v2393, %v2395
  %v2432 = vsel %vm748, %v2397, %v2399
  %v2433 = vsel %vm748, %v2399, %v2401
  %v2434 = vsel %vm748, %v2403, %v2405
  %v2435 = vsel %vm748, %v2405, %v2407
  %v2436 = vsel %vm748, %v2409, %v2411
  %v2437 = vsel %vm748, %v2411, %v2413
  %v2438 = vsel %vm748, %v2415, %v2417
  %v2439 = vsel %vm748, %v2417, %v2419
  %v2440 = vsel %vm748, %v2421, %v2423
  %v2441 = vsel %vm748, %v2423, %v2425
  %2458 = vrot.lane.b32.xlu0 %v2274, 116
  %v2459 = vpop.permute.xlu0 %2458
  %2460 = vrot.lane.b32.xlu0 %v2275, 116
  %v2461 = vpop.permute.xlu0 %2460
  %2462 = vrot.lane.b32.xlu0 %v2276, 116
  %v2463 = vpop.permute.xlu0 %2462
  %2464 = vrot.lane.b32.xlu0 %v2277, 116
  %v2465 = vpop.permute.xlu0 %2464
  %2466 = vrot.lane.b32.xlu0 %v2278, 116
  %v2467 = vpop.permute.xlu0 %2466
  %2468 = vrot.lane.b32.xlu0 %v2279, 116
  %v2469 = vpop.permute.xlu0 %2468
  %2470 = vrot.lane.b32.xlu0 %v2280, 116
  %v2471 = vpop.permute.xlu0 %2470
  %2472 = vrot.lane.b32.xlu0 %v2281, 116
  %v2473 = vpop.permute.xlu0 %2472
  %2474 = vrot.lane.b32.xlu0 %v2282, 116
  %v2475 = vpop.permute.xlu0 %2474
  %2476 = vrot.lane.b32.xlu0 %v2283, 116
  %v2477 = vpop.permute.xlu0 %2476
  %2478 = vrot.lane.b32.xlu0 %v2284, 116
  %v2479 = vpop.permute.xlu0 %2478
  %2480 = vrot.lane.b32.xlu0 %v2285, 116
  %v2481 = vpop.permute.xlu0 %2480
  %2482 = vrot.lane.b32.xlu0 %v2286, 116
  %v2483 = vpop.permute.xlu0 %2482
  %2484 = vrot.lane.b32.xlu0 %v2287, 116
  %v2485 = vpop.permute.xlu0 %2484
  %2486 = vrot.lane.b32.xlu0 %v2288, 116
  %v2487 = vpop.permute.xlu0 %2486
  %2488 = vrot.lane.b32.xlu0 %v2289, 116
  %v2489 = vpop.permute.xlu0 %2488
  %2490 = vrot.lane.b32.xlu0 %v2290, 116
  %v2491 = vpop.permute.xlu0 %2490
  %2492 = vrot.lane.b32.xlu0 %v2291, 116
  %v2493 = vpop.permute.xlu0 %2492
  %2494 = vrot.lane.b32.xlu0 %v2292, 116
  %v2495 = vpop.permute.xlu0 %2494
  %2496 = vrot.lane.b32.xlu0 %v2293, 116
  %v2497 = vpop.permute.xlu0 %2496
  %2498 = vrot.lane.b32.xlu0 %v2294, 116
  %v2499 = vpop.permute.xlu0 %2498
  %2500 = vrot.lane.b32.xlu0 %v2295, 116
  %v2501 = vpop.permute.xlu0 %2500
  %2502 = vrot.lane.b32.xlu0 %v2296, 116
  %v2503 = vpop.permute.xlu0 %2502
  %2504 = vrot.lane.b32.xlu0 %v2297, 116
  %v2505 = vpop.permute.xlu0 %2504
  %v2506 = vsel %vm909, %v2459, %v2461
  %v2507 = vsel %vm909, %v2461, %v2463
  %v2508 = vsel %vm909, %v2465, %v2467
  %v2509 = vsel %vm909, %v2467, %v2469
  %v2510 = vsel %vm909, %v2471, %v2473
  %v2511 = vsel %vm909, %v2473, %v2475
  %v2512 = vsel %vm909, %v2477, %v2479
  %v2513 = vsel %vm909, %v2479, %v2481
  %v2514 = vsel %vm909, %v2483, %v2485
  %v2515 = vsel %vm909, %v2485, %v2487
  %v2516 = vsel %vm909, %v2489, %v2491
  %v2517 = vsel %vm909, %v2491, %v2493
  %v2518 = vsel %vm909, %v2495, %v2497
  %v2519 = vsel %vm909, %v2497, %v2499
  %v2520 = vsel %vm909, %v2501, %v2503
  %v2521 = vsel %vm909, %v2503, %v2505
  %v2538 = vld [vmem:[%s2] sm:$0xff]
  %v2539 = vld [vmem:[%s2 + $0x8] sm:$0xff]
  %v2540 = vld [vmem:[%s2 + $0x10] sm:$0xff]
  %v2541 = vld [vmem:[%s2 + $0x18] sm:$0xff]
  %v2542 = vld [vmem:[%s2 + $0x20] sm:$0xff]
  %v2543 = vld [vmem:[%s2 + $0x28] sm:$0xff]
  %v2544 = vld [vmem:[%s2 + $0x30] sm:$0xff]
  %v2545 = vld [vmem:[%s2 + $0x38] sm:$0xff]
  %v2546 = vld [vmem:[%s2 + $0x40] sm:$0xff]
  %v2547 = vld [vmem:[%s2 + $0x48] sm:$0xff]
  %v2548 = vld [vmem:[%s2 + $0x50] sm:$0xff]
  %v2549 = vld [vmem:[%s2 + $0x58] sm:$0xff]
  %v2550 = vld [vmem:[%s2 + $0x60] sm:$0xff]
  %v2551 = vld [vmem:[%s2 + $0x68] sm:$0xff]
  %v2552 = vld [vmem:[%s2 + $0x70] sm:$0xff]
  %v2553 = vld [vmem:[%s2 + $0x78] sm:$0xff]
  %v2554 = vld [vmem:[%s5] sm:$0xff]
  %v2555 = vld [vmem:[%s5 + $0x8] sm:$0xff]
  %v2556 = vld [vmem:[%s5 + $0x10] sm:$0xff]
  %v2557 = vld [vmem:[%s5 + $0x18] sm:$0xff]
  %v2558 = vld [vmem:[%s5 + $0x20] sm:$0xff]
  %v2559 = vld [vmem:[%s5 + $0x28] sm:$0xff]
  %v2560 = vld [vmem:[%s5 + $0x30] sm:$0xff]
  %v2561 = vld [vmem:[%s5 + $0x38] sm:$0xff]
  %2563 = vset.pattern.permute.xlu0 0
  %2564 = vperm.xlu0 %2563, %v2554
  %v2565 = vpop.permute.xlu0 %2564
  %2568 = vset.pattern.permute.xlu0 0
  %2569 = vperm.xlu0 %2568, %v2555
  %v2570 = vpop.permute.xlu0 %2569
  %2573 = vset.pattern.permute.xlu0 0
  %2574 = vperm.xlu0 %2573, %v2556
  %v2575 = vpop.permute.xlu0 %2574
  %2578 = vset.pattern.permute.xlu0 0
  %2579 = vperm.xlu0 %2578, %v2557
  %v2580 = vpop.permute.xlu0 %2579
  %2583 = vset.pattern.permute.xlu0 0
  %2584 = vperm.xlu0 %2583, %v2558
  %v2585 = vpop.permute.xlu0 %2584
  %2588 = vset.pattern.permute.xlu0 0
  %2589 = vperm.xlu0 %2588, %v2559
  %v2590 = vpop.permute.xlu0 %2589
  %2593 = vset.pattern.permute.xlu0 0
  %2594 = vperm.xlu0 %2593, %v2560
  %v2595 = vpop.permute.xlu0 %2594
  %2598 = vset.pattern.permute.xlu0 0
  %2599 = vperm.xlu0 %2598, %v2561
  %v2600 = vpop.permute.xlu0 %2599
  %v2618 = vunpack.c.l.b16 %v2538
  %v2619 = vunpack.c.h.b16 %v2538
  %v2620 = vunpack.c.l.b16 %v2539
  %v2621 = vunpack.c.h.b16 %v2539
  %v2622 = vunpack.c.l.b16 %v2540
  %v2623 = vunpack.c.h.b16 %v2540
  %v2624 = vunpack.c.l.b16 %v2541
  %v2625 = vunpack.c.h.b16 %v2541
  %v2626 = vunpack.c.l.b16 %v2542
  %v2627 = vunpack.c.h.b16 %v2542
  %v2628 = vunpack.c.l.b16 %v2543
  %v2629 = vunpack.c.h.b16 %v2543
  %v2630 = vunpack.c.l.b16 %v2544
  %v2631 = vunpack.c.h.b16 %v2544
  %v2632 = vunpack.c.l.b16 %v2545
  %v2633 = vunpack.c.h.b16 %v2545
  %v2634 = vunpack.c.l.b16 %v2546
  %v2635 = vunpack.c.h.b16 %v2546
  %v2636 = vunpack.c.l.b16 %v2547
  %v2637 = vunpack.c.h.b16 %v2547
  %v2638 = vunpack.c.l.b16 %v2548
  %v2639 = vunpack.c.h.b16 %v2548
  %v2640 = vunpack.c.l.b16 %v2549
  %v2641 = vunpack.c.h.b16 %v2549
  %v2642 = vunpack.c.l.b16 %v2550
  %v2643 = vunpack.c.h.b16 %v2550
  %v2644 = vunpack.c.l.b16 %v2551
  %v2645 = vunpack.c.h.b16 %v2551
  %v2646 = vunpack.c.l.b16 %v2552
  %v2647 = vunpack.c.h.b16 %v2552
  %v2648 = vunpack.c.l.b16 %v2553
  %v2649 = vunpack.c.h.b16 %v2553
  %v2650 = vpack.c.b16 %v2622, %v2618
  %v2651 = vpack.c.b16 %v2623, %v2619
  %v2652 = vpack.c.b16 %v2624, %v2620
  %v2653 = vpack.c.b16 %v2625, %v2621
  %v2654 = vpack.c.b16 %v2630, %v2626
  %v2655 = vpack.c.b16 %v2631, %v2627
  %v2656 = vpack.c.b16 %v2632, %v2628
  %v2657 = vpack.c.b16 %v2633, %v2629
  %v2658 = vpack.c.b16 %v2638, %v2634
  %v2659 = vpack.c.b16 %v2639, %v2635
  %v2660 = vpack.c.b16 %v2640, %v2636
  %v2661 = vpack.c.b16 %v2641, %v2637
  %v2662 = vpack.c.b16 %v2646, %v2642
  %v2663 = vpack.c.b16 %v2647, %v2643
  %v2664 = vpack.c.b16 %v2648, %v2644
  %v2665 = vpack.c.b16 %v2649, %v2645
  %2682 = vmatprep.subr.bf16.mxu0 %v2177
  %2683 = vmatpush1.bf16.msra.mxu0 %v2176
  %2684 = vmatprep.subr.bf16.mxu0 %v2175
  %2685 = vmatpush1.bf16.msra.mxu0 %v2174
  %2686 = vmatprep.subr.bf16.mxu0 %v2173
  %2687 = vmatpush1.bf16.msra.mxu0 %v2172
  %2688 = vmatprep.subr.bf16.mxu0 %v2171
  %2689 = vmatpush1.bf16.msra.mxu0 %v2170
  %2690 = vmatprep.subr.bf16.mxu0 %v2169
  %2691 = vmatpush1.bf16.msra.mxu0 %v2168
  %2692 = vmatprep.subr.bf16.mxu0 %v2167
  %2693 = vmatpush1.bf16.msra.mxu0 %v2166
  %2694 = vmatprep.subr.bf16.mxu0 %v2165
  %2695 = vmatpush1.bf16.msra.mxu0 %v2164
  %2696 = vmatprep.subr.bf16.mxu0 %v2163
  %2697 = vmatpush1.bf16.msra.mxu0 %v2162
  %2698 = vmatprep.subr.bf16.mxu0 %v2361
  %2699 = vmatpush2.bf16.msra.mxu0 %v2360
  %2700 = vmatprep.subr.bf16.mxu0 %v2359
  %2701 = vmatpush2.bf16.msra.mxu0 %v2358
  %2702 = vmatprep.subr.bf16.mxu0 %v2357
  %2703 = vmatpush2.bf16.msra.mxu0 %v2356
  %2704 = vmatprep.subr.bf16.mxu0 %v2355
  %2705 = vmatpush2.bf16.msra.mxu0 %v2354
  %2706 = vmatprep.subr.bf16.mxu0 %v2353
  %2707 = vmatpush2.bf16.msra.mxu0 %v2352
  %2708 = vmatprep.subr.bf16.mxu0 %v2351
  %2709 = vmatpush2.bf16.msra.mxu0 %v2350
  %2710 = vmatprep.subr.bf16.mxu0 %v2349
  %2711 = vmatpush2.bf16.msra.mxu0 %v2348
  %2712 = vmatprep.subr.bf16.mxu0 %v2347
  %2713 = vmatpush2.bf16.msra.mxu0 %v2346
  %2714 = vmatprep.mubr.bf16.mxu0 %v2651
  %2715 = vmatmul.mubr.bf16.gmra.mxu0 %v2650
  %v2716 = vpop.f32.mrf.mxu0
  %v2717 = vadd.f32 %v2565, %v2716
  %v2718 = vpop.f32.mrf.mxu0
  %v2719 = vadd.f32 %v2565, %v2718
  %v2720 = vpop.f32.mrf.mxu0
  %v2721 = vadd.f32 %v2570, %v2720
  %v2722 = vpop.f32.mrf.mxu0
  %v2723 = vadd.f32 %v2570, %v2722
  %2724 = vmatprep.mubr.bf16.mxu0 %v2655
  %2725 = vmatmul.mubr.bf16.gmra.mxu0 %v2654
  %v2726 = vpop.f32.mrf.mxu0
  %v2727 = vadd.f32 %v2575, %v2726
  %v2728 = vpop.f32.mrf.mxu0
  %v2729 = vadd.f32 %v2575, %v2728
  %v2730 = vpop.f32.mrf.mxu0
  %v2731 = vadd.f32 %v2580, %v2730
  %v2732 = vpop.f32.mrf.mxu0
  %v2733 = vadd.f32 %v2580, %v2732
  %2734 = vmatprep.mubr.bf16.mxu0 %v2659
  %2735 = vmatmul.mubr.bf16.gmra.mxu0 %v2658
  %v2736 = vpop.f32.mrf.mxu0
  %v2737 = vadd.f32 %v2585, %v2736
  %v2738 = vpop.f32.mrf.mxu0
  %v2739 = vadd.f32 %v2585, %v2738
  %v2740 = vpop.f32.mrf.mxu0
  %v2741 = vadd.f32 %v2590, %v2740
  %v2742 = vpop.f32.mrf.mxu0
  %v2743 = vadd.f32 %v2590, %v2742
  %2744 = vmatprep.mubr.bf16.mxu0 %v2663
  %2745 = vmatmul.mubr.bf16.gmra.mxu0 %v2662
  %v2746 = vpop.f32.mrf.mxu0
  %v2747 = vadd.f32 %v2595, %v2746
  %v2748 = vpop.f32.mrf.mxu0
  %v2749 = vadd.f32 %v2595, %v2748
  %v2750 = vpop.f32.mrf.mxu0
  %v2751 = vadd.f32 %v2600, %v2750
  %v2752 = vpop.f32.mrf.mxu0
  %v2753 = vadd.f32 %v2600, %v2752
  %2754 = vdwg.mxu0
  %2755 = vmatprep.subr.bf16.mxu0 %v2441
  %2756 = vmatpush1.bf16.msra.mxu0 %v2440
  %2757 = vmatprep.subr.bf16.mxu0 %v2439
  %2758 = vmatpush1.bf16.msra.mxu0 %v2438
  %2759 = vmatprep.subr.bf16.mxu0 %v2437
  %2760 = vmatpush1.bf16.msra.mxu0 %v2436
  %2761 = vmatprep.subr.bf16.mxu0 %v2435
  %2762 = vmatpush1.bf16.msra.mxu0 %v2434
  %2763 = vmatprep.subr.bf16.mxu0 %v2433
  %2764 = vmatpush1.bf16.msra.mxu0 %v2432
  %2765 = vmatprep.subr.bf16.mxu0 %v2431
  %2766 = vmatpush1.bf16.msra.mxu0 %v2430
  %2767 = vmatprep.subr.bf16.mxu0 %v2429
  %2768 = vmatpush1.bf16.msra.mxu0 %v2428
  %2769 = vmatprep.subr.bf16.mxu0 %v2427
  %2770 = vmatpush1.bf16.msra.mxu0 %v2426
  %2771 = vmatprep.subr.bf16.mxu0 %v2521
  %2772 = vmatpush2.bf16.msra.mxu0 %v2520
  %2773 = vmatprep.subr.bf16.mxu0 %v2519
  %2774 = vmatpush2.bf16.msra.mxu0 %v2518
  %2775 = vmatprep.subr.bf16.mxu0 %v2517
  %2776 = vmatpush2.bf16.msra.mxu0 %v2516
  %2777 = vmatprep.subr.bf16.mxu0 %v2515
  %2778 = vmatpush2.bf16.msra.mxu0 %v2514
  %2779 = vmatprep.subr.bf16.mxu0 %v2513
  %2780 = vmatpush2.bf16.msra.mxu0 %v2512
  %2781 = vmatprep.subr.bf16.mxu0 %v2511
  %2782 = vmatpush2.bf16.msra.mxu0 %v2510
  %2783 = vmatprep.subr.bf16.mxu0 %v2509
  %2784 = vmatpush2.bf16.msra.mxu0 %v2508
  %2785 = vmatprep.subr.bf16.mxu0 %v2507
  %2786 = vmatpush2.bf16.msra.mxu0 %v2506
  %2787 = vmatprep.mubr.bf16.mxu0 %v2653
  %2788 = vmatmul.mubr.bf16.gmra.mxu0 %v2652
  %v2789 = vpop.f32.mrf.mxu0
  %v2790 = vadd.f32 %v2717, %v2789
  %v2791 = vpop.f32.mrf.mxu0
  %v2792 = vadd.f32 %v2719, %v2791
  %v2793 = vpop.f32.mrf.mxu0
  %v2794 = vadd.f32 %v2721, %v2793
  %v2795 = vpop.f32.mrf.mxu0
  %v2796 = vadd.f32 %v2723, %v2795
  %2797 = vmatprep.mubr.bf16.mxu0 %v2657
  %2798 = vmatmul.mubr.bf16.gmra.mxu0 %v2656
  %v2799 = vpop.f32.mrf.mxu0
  %v2800 = vadd.f32 %v2727, %v2799
  %v2801 = vpop.f32.mrf.mxu0
  %v2802 = vadd.f32 %v2729, %v2801
  %v2803 = vpop.f32.mrf.mxu0
  %v2804 = vadd.f32 %v2731, %v2803
  %v2805 = vpop.f32.mrf.mxu0
  %v2806 = vadd.f32 %v2733, %v2805
  %2807 = vmatprep.mubr.bf16.mxu0 %v2661
  %2808 = vmatmul.mubr.bf16.gmra.mxu0 %v2660
  %v2809 = vpop.f32.mrf.mxu0
  %v2810 = vadd.f32 %v2737, %v2809
  %v2811 = vpop.f32.mrf.mxu0
  %v2812 = vadd.f32 %v2739, %v2811
  %v2813 = vpop.f32.mrf.mxu0
  %v2814 = vadd.f32 %v2741, %v2813
  %v2815 = vpop.f32.mrf.mxu0
  %v2816 = vadd.f32 %v2743, %v2815
  %2817 = vmatprep.mubr.bf16.mxu0 %v2665
  %2818 = vmatmul.mubr.bf16.gmra.mxu0 %v2664
  %v2819 = vpop.f32.mrf.mxu0
  %v2820 = vadd.f32 %v2747, %v2819
  %v2821 = vpop.f32.mrf.mxu0
  %v2822 = vadd.f32 %v2749, %v2821
  %v2823 = vpop.f32.mrf.mxu0
  %v2824 = vadd.f32 %v2751, %v2823
  %v2825 = vpop.f32.mrf.mxu0
  %v2826 = vadd.f32 %v2753, %v2825
  %2827 = vdwg.mxu0
  %v2828 = vmax.f32 %v2790, 0.0
  %v2829 = vmax.f32 %v2792, 0.0
  %v2830 = vmax.f32 %v2794, 0.0
  %v2831 = vmax.f32 %v2796, 0.0
  %v2832 = vmax.f32 %v2800, 0.0
  %v2833 = vmax.f32 %v2802, 0.0
  %v2834 = vmax.f32 %v2804, 0.0
  %v2835 = vmax.f32 %v2806, 0.0
  %v2836 = vmax.f32 %v2810, 0.0
  %v2837 = vmax.f32 %v2812, 0.0
  %v2838 = vmax.f32 %v2814, 0.0
  %v2839 = vmax.f32 %v2816, 0.0
  %v2840 = vmax.f32 %v2820, 0.0
  %v2841 = vmax.f32 %v2822, 0.0
  %v2842 = vmax.f32 %v2824, 0.0
  %v2843 = vmax.f32 %v2826, 0.0
  %v2844 = vpack.c.bf16 %v2830, %v2828
  %v2845 = vpack.c.bf16 %v2831, %v2829
  %v2846 = vpack.c.bf16 %v2834, %v2832
  %v2847 = vpack.c.bf16 %v2835, %v2833
  %v2848 = vpack.c.bf16 %v2838, %v2836
  %v2849 = vpack.c.bf16 %v2839, %v2837
  %v2850 = vpack.c.bf16 %v2842, %v2840
  %v2851 = vpack.c.bf16 %v2843, %v2841
  %v2860 = vunpack.c.l.b16 %v2844
  %v2861 = vunpack.c.l.b16 %v2845
  %v2862 = vunpack.c.h.b16 %v2844
  %v2863 = vunpack.c.h.b16 %v2845
  %v2864 = vunpack.c.l.b16 %v2846
  %v2865 = vunpack.c.l.b16 %v2847
  %v2866 = vunpack.c.h.b16 %v2846
  %v2867 = vunpack.c.h.b16 %v2847
  %v2868 = vunpack.c.l.b16 %v2848
  %v2869 = vunpack.c.l.b16 %v2849
  %v2870 = vunpack.c.h.b16 %v2848
  %v2871 = vunpack.c.h.b16 %v2849
  %v2872 = vunpack.c.l.b16 %v2850
  %v2873 = vunpack.c.l.b16 %v2851
  %v2874 = vunpack.c.h.b16 %v2850
  %v2875 = vunpack.c.h.b16 %v2851
  %v2876 = vpack.c.b16 %v2861, %v2860
  %v2877 = vpack.c.b16 %v2863, %v2862
  %v2878 = vpack.c.b16 %v2865, %v2864
  %v2879 = vpack.c.b16 %v2867, %v2866
  %v2880 = vpack.c.b16 %v2869, %v2868
  %v2881 = vpack.c.b16 %v2871, %v2870
  %v2882 = vpack.c.b16 %v2873, %v2872
  %v2883 = vpack.c.b16 %v2875, %v2874
  %2892 = vst [vmem:[#allocation3] sm:$0xff] %v2876
  %2893 = vst [vmem:[#allocation3 + $0xc] sm:$0xff] %v2877
  %2894 = vst [vmem:[#allocation3 + $0x18] sm:$0xff] %v2878
  %2895 = vst [vmem:[#allocation3 + $0x24] sm:$0xff] %v2879
  %2896 = vst [vmem:[#allocation3 + $0x30] sm:$0xff] %v2880
  %2897 = vst [vmem:[#allocation3 + $0x3c] sm:$0xff] %v2881
  %2898 = vst [vmem:[#allocation3 + $0x48] sm:$0xff] %v2882
  %2899 = vst [vmem:[#allocation3 + $0x54] sm:$0xff] %v2883
  %2900 = vst [vmem:[#allocation3 + $0x8] sm:$0xf] 0
  %2901 = vst [vmem:[#allocation3 + $0x14] sm:$0xf] 0
  %2902 = vst [vmem:[#allocation3 + $0x20] sm:$0xf] 0
  %2903 = vst [vmem:[#allocation3 + $0x2c] sm:$0xf] 0
  %2904 = vst [vmem:[#allocation3 + $0x38] sm:$0xf] 0
  %2905 = vst [vmem:[#allocation3 + $0x44] sm:$0xf] 0
  %2906 = vst [vmem:[#allocation3 + $0x50] sm:$0xf] 0
  %2907 = vst [vmem:[#allocation3 + $0x5c] sm:$0xf] 0
  %v2908 = vld [vmem:[#allocation3] sm:$0xff]
  %v2909 = vld [vmem:[#allocation3 + $0xc] sm:$0xff]
  %v2910 = vld [vmem:[#allocation3 + $0x18] sm:$0xff]
  %v2911 = vld [vmem:[#allocation3 + $0x24] sm:$0xff]
  %v2912 = vld [vmem:[#allocation3 + $0x30] sm:$0xff]
  %v2913 = vld [vmem:[#allocation3 + $0x3c] sm:$0xff]
  %v2914 = vld [vmem:[#allocation3 + $0x48] sm:$0xff]
  %v2915 = vld [vmem:[#allocation3 + $0x54] sm:$0xff]
  %v2916 = vld [vmem:[#allocation3] sm:$0xff]
  %v2917 = vld [vmem:[#allocation3 + $0x8] sm:$0xf]
  %v2918 = vld [vmem:[#allocation3 + $0xc] sm:$0xff]
  %v2919 = vld [vmem:[#allocation3 + $0x14] sm:$0xf]
  %v2920 = vld [vmem:[#allocation3 + $0x18] sm:$0xff]
  %v2921 = vld [vmem:[#allocation3 + $0x20] sm:$0xf]
  %v2922 = vld [vmem:[#allocation3 + $0x24] sm:$0xff]
  %v2923 = vld [vmem:[#allocation3 + $0x2c] sm:$0xf]
  %v2924 = vld [vmem:[#allocation3 + $0x30] sm:$0xff]
  %v2925 = vld [vmem:[#allocation3 + $0x38] sm:$0xf]
  %v2926 = vld [vmem:[#allocation3 + $0x3c] sm:$0xff]
  %v2927 = vld [vmem:[#allocation3 + $0x44] sm:$0xf]
  %v2928 = vld [vmem:[#allocation3 + $0x48] sm:$0xff]
  %v2929 = vld [vmem:[#allocation3 + $0x50] sm:$0xf]
  %v2930 = vld [vmem:[#allocation3 + $0x54] sm:$0xff]
  %v2931 = vld [vmem:[#allocation3 + $0x5c] sm:$0xf]
  %v2940 = vunpack.c.l.b16 %v2908
  %v2941 = vunpack.c.h.b16 %v2908
  %v2942 = vunpack.c.l.b16 %v2909
  %v2943 = vunpack.c.h.b16 %v2909
  %v2944 = vunpack.c.l.b16 %v2910
  %v2945 = vunpack.c.h.b16 %v2910
  %v2946 = vunpack.c.l.b16 %v2911
  %v2947 = vunpack.c.h.b16 %v2911
  %v2948 = vunpack.c.l.b16 %v2912
  %v2949 = vunpack.c.h.b16 %v2912
  %v2950 = vunpack.c.l.b16 %v2913
  %v2951 = vunpack.c.h.b16 %v2913
  %v2952 = vunpack.c.l.b16 %v2914
  %v2953 = vunpack.c.h.b16 %v2914
  %v2954 = vunpack.c.l.b16 %v2915
  %v2955 = vunpack.c.h.b16 %v2915
  %v2956 = vpack.c.b16 %v2942, %v2940
  %v2957 = vpack.c.b16 %v2943, %v2941
  %v2958 = vpack.c.b16 %v2946, %v2944
  %v2959 = vpack.c.b16 %v2947, %v2945
  %v2960 = vpack.c.b16 %v2950, %v2948
  %v2961 = vpack.c.b16 %v2951, %v2949
  %v2962 = vpack.c.b16 %v2954, %v2952
  %v2963 = vpack.c.b16 %v2955, %v2953
  %v2988 = vunpack.c.l.b16 %v2916
  %v2989 = vunpack.c.h.b16 %v2916
  %v2990 = vunpack.c.l.b16 %v2917
  %v2991 = vunpack.c.l.b16 %v2918
  %v2992 = vunpack.c.h.b16 %v2918
  %v2993 = vunpack.c.l.b16 %v2919
  %v2994 = vunpack.c.l.b16 %v2920
  %v2995 = vunpack.c.h.b16 %v2920
  %v2996 = vunpack.c.l.b16 %v2921
  %v2997 = vunpack.c.l.b16 %v2922
  %v2998 = vunpack.c.h.b16 %v2922
  %v2999 = vunpack.c.l.b16 %v2923
  %v3000 = vunpack.c.l.b16 %v2924
  %v3001 = vunpack.c.h.b16 %v2924
  %v3002 = vunpack.c.l.b16 %v2925
  %v3003 = vunpack.c.l.b16 %v2926
  %v3004 = vunpack.c.h.b16 %v2926
  %v3005 = vunpack.c.l.b16 %v2927
  %v3006 = vunpack.c.l.b16 %v2928
  %v3007 = vunpack.c.h.b16 %v2928
  %v3008 = vunpack.c.l.b16 %v2929
  %v3009 = vunpack.c.l.b16 %v2930
  %v3010 = vunpack.c.h.b16 %v2930
  %v3011 = vunpack.c.l.b16 %v2931
  %v3012 = vpack.c.b16 %v2991, %v2988
  %v3013 = vpack.c.b16 %v2992, %v2989
  %v3014 = vpack.c.b16 %v2993, %v2990
  %v3015 = vpack.c.b16 %v2997, %v2994
  %v3016 = vpack.c.b16 %v2998, %v2995
  %v3017 = vpack.c.b16 %v2999, %v2996
  %v3018 = vpack.c.b16 %v3003, %v3000
  %v3019 = vpack.c.b16 %v3004, %v3001
  %v3020 = vpack.c.b16 %v3005, %v3002
  %v3021 = vpack.c.b16 %v3009, %v3006
  %v3022 = vpack.c.b16 %v3010, %v3007
  %v3023 = vpack.c.b16 %v3011, %v3008
  %3024 = vrot.lane.b32.xlu0 %v3012, 127
  %v3025 = vpop.permute.xlu0 %3024
  %3026 = vrot.lane.b32.xlu0 %v3013, 127
  %v3027 = vpop.permute.xlu0 %3026
  %3028 = vrot.lane.b32.xlu0 %v3014, 127
  %v3029 = vpop.permute.xlu0 %3028
  %3030 = vrot.lane.b32.xlu0 %v3015, 127
  %v3031 = vpop.permute.xlu0 %3030
  %3032 = vrot.lane.b32.xlu0 %v3016, 127
  %v3033 = vpop.permute.xlu0 %3032
  %3034 = vrot.lane.b32.xlu0 %v3017, 127
  %v3035 = vpop.permute.xlu0 %3034
  %3036 = vrot.lane.b32.xlu0 %v3018, 127
  %v3037 = vpop.permute.xlu0 %3036
  %3038 = vrot.lane.b32.xlu0 %v3019, 127
  %v3039 = vpop.permute.xlu0 %3038
  %3040 = vrot.lane.b32.xlu0 %v3020, 127
  %v3041 = vpop.permute.xlu0 %3040
  %3042 = vrot.lane.b32.xlu0 %v3021, 127
  %v3043 = vpop.permute.xlu0 %3042
  %3044 = vrot.lane.b32.xlu0 %v3022, 127
  %v3045 = vpop.permute.xlu0 %3044
  %3046 = vrot.lane.b32.xlu0 %v3023, 127
  %v3047 = vpop.permute.xlu0 %3046
  %v3048 = vsel %vm587, %v3025, %v3027
  %v3049 = vsel %vm587, %v3027, %v3029
  %v3050 = vsel %vm587, %v3031, %v3033
  %v3051 = vsel %vm587, %v3033, %v3035
  %v3052 = vsel %vm587, %v3037, %v3039
  %v3053 = vsel %vm587, %v3039, %v3041
  %v3054 = vsel %vm587, %v3043, %v3045
  %v3055 = vsel %vm587, %v3045, %v3047
  %3064 = vrot.lane.b32.xlu0 %v3012, 126
  %v3065 = vpop.permute.xlu0 %3064
  %3066 = vrot.lane.b32.xlu0 %v3013, 126
  %v3067 = vpop.permute.xlu0 %3066
  %3068 = vrot.lane.b32.xlu0 %v3014, 126
  %v3069 = vpop.permute.xlu0 %3068
  %3070 = vrot.lane.b32.xlu0 %v3015, 126
  %v3071 = vpop.permute.xlu0 %3070
  %3072 = vrot.lane.b32.xlu0 %v3016, 126
  %v3073 = vpop.permute.xlu0 %3072
  %3074 = vrot.lane.b32.xlu0 %v3017, 126
  %v3075 = vpop.permute.xlu0 %3074
  %3076 = vrot.lane.b32.xlu0 %v3018, 126
  %v3077 = vpop.permute.xlu0 %3076
  %3078 = vrot.lane.b32.xlu0 %v3019, 126
  %v3079 = vpop.permute.xlu0 %3078
  %3080 = vrot.lane.b32.xlu0 %v3020, 126
  %v3081 = vpop.permute.xlu0 %3080
  %3082 = vrot.lane.b32.xlu0 %v3021, 126
  %v3083 = vpop.permute.xlu0 %3082
  %3084 = vrot.lane.b32.xlu0 %v3022, 126
  %v3085 = vpop.permute.xlu0 %3084
  %3086 = vrot.lane.b32.xlu0 %v3023, 126
  %v3087 = vpop.permute.xlu0 %3086
  %vm3088 = vcmask 1031168
  %v3089 = vsel %vm3088, %v3065, %v3067
  %v3090 = vsel %vm3088, %v3067, %v3069
  %v3091 = vsel %vm3088, %v3071, %v3073
  %v3092 = vsel %vm3088, %v3073, %v3075
  %v3093 = vsel %vm3088, %v3077, %v3079
  %v3094 = vsel %vm3088, %v3079, %v3081
  %v3095 = vsel %vm3088, %v3083, %v3085
  %v3096 = vsel %vm3088, %v3085, %v3087
  %3105 = vrot.lane.b32.xlu0 %v3012, 117
  %v3106 = vpop.permute.xlu0 %3105
  %3107 = vrot.lane.b32.xlu0 %v3013, 117
  %v3108 = vpop.permute.xlu0 %3107
  %3109 = vrot.lane.b32.xlu0 %v3014, 117
  %v3110 = vpop.permute.xlu0 %3109
  %3111 = vrot.lane.b32.xlu0 %v3015, 117
  %v3112 = vpop.permute.xlu0 %3111
  %3113 = vrot.lane.b32.xlu0 %v3016, 117
  %v3114 = vpop.permute.xlu0 %3113
  %3115 = vrot.lane.b32.xlu0 %v3017, 117
  %v3116 = vpop.permute.xlu0 %3115
  %3117 = vrot.lane.b32.xlu0 %v3018, 117
  %v3118 = vpop.permute.xlu0 %3117
  %3119 = vrot.lane.b32.xlu0 %v3019, 117
  %v3120 = vpop.permute.xlu0 %3119
  %3121 = vrot.lane.b32.xlu0 %v3020, 117
  %v3122 = vpop.permute.xlu0 %3121
  %3123 = vrot.lane.b32.xlu0 %v3021, 117
  %v3124 = vpop.permute.xlu0 %3123
  %3125 = vrot.lane.b32.xlu0 %v3022, 117
  %v3126 = vpop.permute.xlu0 %3125
  %3127 = vrot.lane.b32.xlu0 %v3023, 117
  %v3128 = vpop.permute.xlu0 %3127
  %v3129 = vsel %vm748, %v3106, %v3108
  %v3130 = vsel %vm748, %v3108, %v3110
  %v3131 = vsel %vm748, %v3112, %v3114
  %v3132 = vsel %vm748, %v3114, %v3116
  %v3133 = vsel %vm748, %v3118, %v3120
  %v3134 = vsel %vm748, %v3120, %v3122
  %v3135 = vsel %vm748, %v3124, %v3126
  %v3136 = vsel %vm748, %v3126, %v3128
  %3145 = vrot.lane.b32.xlu0 %v3012, 116
  %v3146 = vpop.permute.xlu0 %3145
  %3147 = vrot.lane.b32.xlu0 %v3013, 116
  %v3148 = vpop.permute.xlu0 %3147
  %3149 = vrot.lane.b32.xlu0 %v3014, 116
  %v3150 = vpop.permute.xlu0 %3149
  %3151 = vrot.lane.b32.xlu0 %v3015, 116
  %v3152 = vpop.permute.xlu0 %3151
  %3153 = vrot.lane.b32.xlu0 %v3016, 116
  %v3154 = vpop.permute.xlu0 %3153
  %3155 = vrot.lane.b32.xlu0 %v3017, 116
  %v3156 = vpop.permute.xlu0 %3155
  %3157 = vrot.lane.b32.xlu0 %v3018, 116
  %v3158 = vpop.permute.xlu0 %3157
  %3159 = vrot.lane.b32.xlu0 %v3019, 116
  %v3160 = vpop.permute.xlu0 %3159
  %3161 = vrot.lane.b32.xlu0 %v3020, 116
  %v3162 = vpop.permute.xlu0 %3161
  %3163 = vrot.lane.b32.xlu0 %v3021, 116
  %v3164 = vpop.permute.xlu0 %3163
  %3165 = vrot.lane.b32.xlu0 %v3022, 116
  %v3166 = vpop.permute.xlu0 %3165
  %3167 = vrot.lane.b32.xlu0 %v3023, 116
  %v3168 = vpop.permute.xlu0 %3167
  %v3169 = vsel %vm909, %v3146, %v3148
  %v3170 = vsel %vm909, %v3148, %v3150
  %v3171 = vsel %vm909, %v3152, %v3154
  %v3172 = vsel %vm909, %v3154, %v3156
  %v3173 = vsel %vm909, %v3158, %v3160
  %v3174 = vsel %vm909, %v3160, %v3162
  %v3175 = vsel %vm909, %v3164, %v3166
  %v3176 = vsel %vm909, %v3166, %v3168
  %3185 = vrot.lane.b32.xlu0 %v3012, 115
  %v3186 = vpop.permute.xlu0 %3185
  %3187 = vrot.lane.b32.xlu0 %v3013, 115
  %v3188 = vpop.permute.xlu0 %3187
  %3189 = vrot.lane.b32.xlu0 %v3014, 115
  %v3190 = vpop.permute.xlu0 %3189
  %3191 = vrot.lane.b32.xlu0 %v3015, 115
  %v3192 = vpop.permute.xlu0 %3191
  %3193 = vrot.lane.b32.xlu0 %v3016, 115
  %v3194 = vpop.permute.xlu0 %3193
  %3195 = vrot.lane.b32.xlu0 %v3017, 115
  %v3196 = vpop.permute.xlu0 %3195
  %3197 = vrot.lane.b32.xlu0 %v3018, 115
  %v3198 = vpop.permute.xlu0 %3197
  %3199 = vrot.lane.b32.xlu0 %v3019, 115
  %v3200 = vpop.permute.xlu0 %3199
  %3201 = vrot.lane.b32.xlu0 %v3020, 115
  %v3202 = vpop.permute.xlu0 %3201
  %3203 = vrot.lane.b32.xlu0 %v3021, 115
  %v3204 = vpop.permute.xlu0 %3203
  %3205 = vrot.lane.b32.xlu0 %v3022, 115
  %v3206 = vpop.permute.xlu0 %3205
  %3207 = vrot.lane.b32.xlu0 %v3023, 115
  %v3208 = vpop.permute.xlu0 %3207
  %vm3209 = vcmask 941056
  %v3210 = vsel %vm3209, %v3186, %v3188
  %v3211 = vsel %vm3209, %v3188, %v3190
  %v3212 = vsel %vm3209, %v3192, %v3194
  %v3213 = vsel %vm3209, %v3194, %v3196
  %v3214 = vsel %vm3209, %v3198, %v3200
  %v3215 = vsel %vm3209, %v3200, %v3202
  %v3216 = vsel %vm3209, %v3204, %v3206
  %v3217 = vsel %vm3209, %v3206, %v3208
  %3226 = vrot.lane.b32.xlu0 %v3012, 106
  %v3227 = vpop.permute.xlu0 %3226
  %3228 = vrot.lane.b32.xlu0 %v3013, 106
  %v3229 = vpop.permute.xlu0 %3228
  %3230 = vrot.lane.b32.xlu0 %v3014, 106
  %v3231 = vpop.permute.xlu0 %3230
  %3232 = vrot.lane.b32.xlu0 %v3015, 106
  %v3233 = vpop.permute.xlu0 %3232
  %3234 = vrot.lane.b32.xlu0 %v3016, 106
  %v3235 = vpop.permute.xlu0 %3234
  %3236 = vrot.lane.b32.xlu0 %v3017, 106
  %v3237 = vpop.permute.xlu0 %3236
  %3238 = vrot.lane.b32.xlu0 %v3018, 106
  %v3239 = vpop.permute.xlu0 %3238
  %3240 = vrot.lane.b32.xlu0 %v3019, 106
  %v3241 = vpop.permute.xlu0 %3240
  %3242 = vrot.lane.b32.xlu0 %v3020, 106
  %v3243 = vpop.permute.xlu0 %3242
  %3244 = vrot.lane.b32.xlu0 %v3021, 106
  %v3245 = vpop.permute.xlu0 %3244
  %3246 = vrot.lane.b32.xlu0 %v3022, 106
  %v3247 = vpop.permute.xlu0 %3246
  %3248 = vrot.lane.b32.xlu0 %v3023, 106
  %v3249 = vpop.permute.xlu0 %3248
  %vm3250 = vcmask 867328
  %v3251 = vsel %vm3250, %v3227, %v3229
  %v3252 = vsel %vm3250, %v3229, %v3231
  %v3253 = vsel %vm3250, %v3233, %v3235
  %v3254 = vsel %vm3250, %v3235, %v3237
  %v3255 = vsel %vm3250, %v3239, %v3241
  %v3256 = vsel %vm3250, %v3241, %v3243
  %v3257 = vsel %vm3250, %v3245, %v3247
  %v3258 = vsel %vm3250, %v3247, %v3249
  %3267 = vrot.lane.b32.xlu0 %v3012, 105
  %v3268 = vpop.permute.xlu0 %3267
  %3269 = vrot.lane.b32.xlu0 %v3013, 105
  %v3270 = vpop.permute.xlu0 %3269
  %3271 = vrot.lane.b32.xlu0 %v3014, 105
  %v3272 = vpop.permute.xlu0 %3271
  %3273 = vrot.lane.b32.xlu0 %v3015, 105
  %v3274 = vpop.permute.xlu0 %3273
  %3275 = vrot.lane.b32.xlu0 %v3016, 105
  %v3276 = vpop.permute.xlu0 %3275
  %3277 = vrot.lane.b32.xlu0 %v3017, 105
  %v3278 = vpop.permute.xlu0 %3277
  %3279 = vrot.lane.b32.xlu0 %v3018, 105
  %v3280 = vpop.permute.xlu0 %3279
  %3281 = vrot.lane.b32.xlu0 %v3019, 105
  %v3282 = vpop.permute.xlu0 %3281
  %3283 = vrot.lane.b32.xlu0 %v3020, 105
  %v3284 = vpop.permute.xlu0 %3283
  %3285 = vrot.lane.b32.xlu0 %v3021, 105
  %v3286 = vpop.permute.xlu0 %3285
  %3287 = vrot.lane.b32.xlu0 %v3022, 105
  %v3288 = vpop.permute.xlu0 %3287
  %3289 = vrot.lane.b32.xlu0 %v3023, 105
  %v3290 = vpop.permute.xlu0 %3289
  %vm3291 = vcmask 859136
  %v3292 = vsel %vm3291, %v3268, %v3270
  %v3293 = vsel %vm3291, %v3270, %v3272
  %v3294 = vsel %vm3291, %v3274, %v3276
  %v3295 = vsel %vm3291, %v3276, %v3278
  %v3296 = vsel %vm3291, %v3280, %v3282
  %v3297 = vsel %vm3291, %v3282, %v3284
  %v3298 = vsel %vm3291, %v3286, %v3288
  %v3299 = vsel %vm3291, %v3288, %v3290
  %3308 = vrot.lane.b32.xlu0 %v3012, 104
  %v3309 = vpop.permute.xlu0 %3308
  %3310 = vrot.lane.b32.xlu0 %v3013, 104
  %v3311 = vpop.permute.xlu0 %3310
  %3312 = vrot.lane.b32.xlu0 %v3014, 104
  %v3313 = vpop.permute.xlu0 %3312
  %3314 = vrot.lane.b32.xlu0 %v3015, 104
  %v3315 = vpop.permute.xlu0 %3314
  %3316 = vrot.lane.b32.xlu0 %v3016, 104
  %v3317 = vpop.permute.xlu0 %3316
  %3318 = vrot.lane.b32.xlu0 %v3017, 104
  %v3319 = vpop.permute.xlu0 %3318
  %3320 = vrot.lane.b32.xlu0 %v3018, 104
  %v3321 = vpop.permute.xlu0 %3320
  %3322 = vrot.lane.b32.xlu0 %v3019, 104
  %v3323 = vpop.permute.xlu0 %3322
  %3324 = vrot.lane.b32.xlu0 %v3020, 104
  %v3325 = vpop.permute.xlu0 %3324
  %3326 = vrot.lane.b32.xlu0 %v3021, 104
  %v3327 = vpop.permute.xlu0 %3326
  %3328 = vrot.lane.b32.xlu0 %v3022, 104
  %v3329 = vpop.permute.xlu0 %3328
  %3330 = vrot.lane.b32.xlu0 %v3023, 104
  %v3331 = vpop.permute.xlu0 %3330
  %vm3332 = vcmask 850944
  %v3333 = vsel %vm3332, %v3309, %v3311
  %v3334 = vsel %vm3332, %v3311, %v3313
  %v3335 = vsel %vm3332, %v3315, %v3317
  %v3336 = vsel %vm3332, %v3317, %v3319
  %v3337 = vsel %vm3332, %v3321, %v3323
  %v3338 = vsel %vm3332, %v3323, %v3325
  %v3339 = vsel %vm3332, %v3327, %v3329
  %v3340 = vsel %vm3332, %v3329, %v3331
  %v3349 = vld [vmem:[%s3] sm:$0xff]
  %v3350 = vld [vmem:[%s3 + $0x8] sm:$0xff]
  %v3351 = vld [vmem:[%s3 + $0x10] sm:$0xf]
  %v3352 = vld [vmem:[%s3 + $0x14] sm:$0xff]
  %v3353 = vld [vmem:[%s3 + $0x1c] sm:$0xff]
  %v3354 = vld [vmem:[%s3 + $0x24] sm:$0xf]
  %v3355 = vld [vmem:[%s3 + $0x28] sm:$0xff]
  %v3356 = vld [vmem:[%s3 + $0x30] sm:$0xff]
  %v3357 = vld [vmem:[%s3 + $0x38] sm:$0xf]
  %v3358 = vld [vmem:[%s3 + $0x3c] sm:$0xff]
  %v3359 = vld [vmem:[%s3 + $0x44] sm:$0xff]
  %v3360 = vld [vmem:[%s3 + $0x4c] sm:$0xf]
  %v3361 = vld [vmem:[%s3 + $0x50] sm:$0xff]
  %v3362 = vld [vmem:[%s3 + $0x58] sm:$0xff]
  %v3363 = vld [vmem:[%s3 + $0x60] sm:$0xf]
  %v3364 = vld [vmem:[%s3 + $0x64] sm:$0xff]
  %v3365 = vld [vmem:[%s3 + $0x6c] sm:$0xff]
  %v3366 = vld [vmem:[%s3 + $0x74] sm:$0xf]
  %v3367 = vld [vmem:[%s3 + $0x78] sm:$0xff]
  %v3368 = vld [vmem:[%s3 + $0x80] sm:$0xff]
  %v3369 = vld [vmem:[%s3 + $0x88] sm:$0xf]
  %v3370 = vld [vmem:[%s3 + $0x8c] sm:$0xff]
  %v3371 = vld [vmem:[%s3 + $0x94] sm:$0xff]
  %v3372 = vld [vmem:[%s3 + $0x9c] sm:$0xf]
  %v3373 = vld [vmem:[%s6] sm:$0xff]
  %v3374 = vld [vmem:[%s6 + $0x8] sm:$0xff]
  %v3375 = vld [vmem:[%s6 + $0x10] sm:$0xff]
  %v3376 = vld [vmem:[%s6 + $0x18] sm:$0xff]
  %v3377 = vld [vmem:[%s6 + $0x20] sm:$0xff]
  %v3378 = vld [vmem:[%s6 + $0x28] sm:$0xff]
  %v3379 = vld [vmem:[%s6 + $0x30] sm:$0xff]
  %v3380 = vld [vmem:[%s6 + $0x38] sm:$0xff]
  %3382 = vset.pattern.permute.xlu0 0
  %3383 = vperm.xlu0 %3382, %v3373
  %v3384 = vpop.permute.xlu0 %3383
  %3387 = vset.pattern.permute.xlu0 0
  %3388 = vperm.xlu0 %3387, %v3374
  %v3389 = vpop.permute.xlu0 %3388
  %3392 = vset.pattern.permute.xlu0 0
  %3393 = vperm.xlu0 %3392, %v3375
  %v3394 = vpop.permute.xlu0 %3393
  %3397 = vset.pattern.permute.xlu0 0
  %3398 = vperm.xlu0 %3397, %v3376
  %v3399 = vpop.permute.xlu0 %3398
  %3402 = vset.pattern.permute.xlu0 0
  %3403 = vperm.xlu0 %3402, %v3377
  %v3404 = vpop.permute.xlu0 %3403
  %3407 = vset.pattern.permute.xlu0 0
  %3408 = vperm.xlu0 %3407, %v3378
  %v3409 = vpop.permute.xlu0 %3408
  %3412 = vset.pattern.permute.xlu0 0
  %3413 = vperm.xlu0 %3412, %v3379
  %v3414 = vpop.permute.xlu0 %3413
  %3417 = vset.pattern.permute.xlu0 0
  %3418 = vperm.xlu0 %3417, %v3380
  %v3419 = vpop.permute.xlu0 %3418
  %v3445 = vunpack.c.l.b16 %v3349
  %v3446 = vunpack.c.h.b16 %v3349
  %v3447 = vunpack.c.l.b16 %v3350
  %v3448 = vunpack.c.h.b16 %v3350
  %v3449 = vunpack.c.l.b16 %v3351
  %v3450 = vunpack.c.l.b16 %v3352
  %v3451 = vunpack.c.h.b16 %v3352
  %v3452 = vunpack.c.l.b16 %v3353
  %v3453 = vunpack.c.h.b16 %v3353
  %v3454 = vunpack.c.l.b16 %v3354
  %v3455 = vunpack.c.l.b16 %v3355
  %v3456 = vunpack.c.h.b16 %v3355
  %v3457 = vunpack.c.l.b16 %v3356
  %v3458 = vunpack.c.h.b16 %v3356
  %v3459 = vunpack.c.l.b16 %v3357
  %v3460 = vunpack.c.l.b16 %v3358
  %v3461 = vunpack.c.h.b16 %v3358
  %v3462 = vunpack.c.l.b16 %v3359
  %v3463 = vunpack.c.h.b16 %v3359
  %v3464 = vunpack.c.l.b16 %v3360
  %v3465 = vunpack.c.l.b16 %v3361
  %v3466 = vunpack.c.h.b16 %v3361
  %v3467 = vunpack.c.l.b16 %v3362
  %v3468 = vunpack.c.h.b16 %v3362
  %v3469 = vunpack.c.l.b16 %v3363
  %v3470 = vunpack.c.l.b16 %v3364
  %v3471 = vunpack.c.h.b16 %v3364
  %v3472 = vunpack.c.l.b16 %v3365
  %v3473 = vunpack.c.h.b16 %v3365
  %v3474 = vunpack.c.l.b16 %v3366
  %v3475 = vunpack.c.l.b16 %v3367
  %v3476 = vunpack.c.h.b16 %v3367
  %v3477 = vunpack.c.l.b16 %v3368
  %v3478 = vunpack.c.h.b16 %v3368
  %v3479 = vunpack.c.l.b16 %v3369
  %v3480 = vunpack.c.l.b16 %v3370
  %v3481 = vunpack.c.h.b16 %v3370
  %v3482 = vunpack.c.l.b16 %v3371
  %v3483 = vunpack.c.h.b16 %v3371
  %v3484 = vunpack.c.l.b16 %v3372
  %v3485 = vpack.c.b16 %v3450, %v3445
  %v3486 = vpack.c.b16 %v3451, %v3446
  %v3487 = vpack.c.b16 %v3452, %v3447
  %v3488 = vpack.c.b16 %v3453, %v3448
  %v3489 = vpack.c.b16 %v3454, %v3449
  %v3490 = vpack.c.b16 %v3460, %v3455
  %v3491 = vpack.c.b16 %v3461, %v3456
  %v3492 = vpack.c.b16 %v3462, %v3457
  %v3493 = vpack.c.b16 %v3463, %v3458
  %v3494 = vpack.c.b16 %v3464, %v3459
  %v3495 = vpack.c.b16 %v3470, %v3465
  %v3496 = vpack.c.b16 %v3471, %v3466
  %v3497 = vpack.c.b16 %v3472, %v3467
  %v3498 = vpack.c.b16 %v3473, %v3468
  %v3499 = vpack.c.b16 %v3474, %v3469
  %v3500 = vpack.c.b16 %v3480, %v3475
  %v3501 = vpack.c.b16 %v3481, %v3476
  %v3502 = vpack.c.b16 %v3482, %v3477
  %v3503 = vpack.c.b16 %v3483, %v3478
  %v3504 = vpack.c.b16 %v3484, %v3479
  %vm3521 = vcmask 523264
  %v3523 = vsel %vm3521, %v3489, 0
  %v3526 = vsel %vm3521, %v3494, 0
  %v3529 = vsel %vm3521, %v3499, 0
  %v3532 = vsel %vm3521, %v3504, 0
  %3534 = vmatprep.subr.bf16.mxu0 %v3055
  %3535 = vmatpush1.bf16.msra.mxu0 %v3054
  %3536 = vmatprep.subr.bf16.mxu0 %v3053
  %3537 = vmatpush1.bf16.msra.mxu0 %v3052
  %3538 = vmatprep.subr.bf16.mxu0 %v3051
  %3539 = vmatpush1.bf16.msra.mxu0 %v3050
  %3540 = vmatprep.subr.bf16.mxu0 %v3049
  %3541 = vmatpush1.bf16.msra.mxu0 %v3048
  %3542 = vmatprep.subr.bf16.mxu0 %v2963
  %3543 = vmatpush1.bf16.msra.mxu0 %v2962
  %3544 = vmatprep.subr.bf16.mxu0 %v2961
  %3545 = vmatpush1.bf16.msra.mxu0 %v2960
  %3546 = vmatprep.subr.bf16.mxu0 %v2959
  %3547 = vmatpush1.bf16.msra.mxu0 %v2958
  %3548 = vmatprep.subr.bf16.mxu0 %v2957
  %3549 = vmatpush1.bf16.msra.mxu0 %v2956
  %3550 = vmatprep.subr.bf16.mxu0 %v3136
  %3551 = vmatpush2.bf16.msra.mxu0 %v3135
  %3552 = vmatprep.subr.bf16.mxu0 %v3134
  %3553 = vmatpush2.bf16.msra.mxu0 %v3133
  %3554 = vmatprep.subr.bf16.mxu0 %v3132
  %3555 = vmatpush2.bf16.msra.mxu0 %v3131
  %3556 = vmatprep.subr.bf16.mxu0 %v3130
  %3557 = vmatpush2.bf16.msra.mxu0 %v3129
  %3558 = vmatprep.subr.bf16.mxu0 %v3096
  %3559 = vmatpush2.bf16.msra.mxu0 %v3095
  %3560 = vmatprep.subr.bf16.mxu0 %v3094
  %3561 = vmatpush2.bf16.msra.mxu0 %v3093
  %3562 = vmatprep.subr.bf16.mxu0 %v3092
  %3563 = vmatpush2.bf16.msra.mxu0 %v3091
  %3564 = vmatprep.subr.bf16.mxu0 %v3090
  %3565 = vmatpush2.bf16.msra.mxu0 %v3089
  %3566 = vmatprep.mubr.bf16.mxu0 %v3486
  %3567 = vmatmul.mubr.bf16.gmra.mxu0 %v3485
  %v3568 = vpop.f32.mrf.mxu0
  %v3569 = vadd.f32 %v3384, %v3568
  %v3570 = vpop.f32.mrf.mxu0
  %v3571 = vadd.f32 %v3384, %v3570
  %v3572 = vpop.f32.mrf.mxu0
  %v3573 = vadd.f32 %v3389, %v3572
  %v3574 = vpop.f32.mrf.mxu0
  %v3575 = vadd.f32 %v3389, %v3574
  %3576 = vmatprep.mubr.bf16.mxu0 %v3491
  %3577 = vmatmul.mubr.bf16.gmra.mxu0 %v3490
  %v3578 = vpop.f32.mrf.mxu0
  %v3579 = vadd.f32 %v3394, %v3578
  %v3580 = vpop.f32.mrf.mxu0
  %v3581 = vadd.f32 %v3394, %v3580
  %v3582 = vpop.f32.mrf.mxu0
  %v3583 = vadd.f32 %v3399, %v3582
  %v3584 = vpop.f32.mrf.mxu0
  %v3585 = vadd.f32 %v3399, %v3584
  %3586 = vmatprep.mubr.bf16.mxu0 %v3496
  %3587 = vmatmul.mubr.bf16.gmra.mxu0 %v3495
  %v3588 = vpop.f32.mrf.mxu0
  %v3589 = vadd.f32 %v3404, %v3588
  %v3590 = vpop.f32.mrf.mxu0
  %v3591 = vadd.f32 %v3404, %v3590
  %v3592 = vpop.f32.mrf.mxu0
  %v3593 = vadd.f32 %v3409, %v3592
  %v3594 = vpop.f32.mrf.mxu0
  %v3595 = vadd.f32 %v3409, %v3594
  %3596 = vmatprep.mubr.bf16.mxu0 %v3501
  %3597 = vmatmul.mubr.bf16.gmra.mxu0 %v3500
  %v3598 = vpop.f32.mrf.mxu0
  %v3599 = vadd.f32 %v3414, %v3598
  %v3600 = vpop.f32.mrf.mxu0
  %v3601 = vadd.f32 %v3414, %v3600
  %v3602 = vpop.f32.mrf.mxu0
  %v3603 = vadd.f32 %v3419, %v3602
  %v3604 = vpop.f32.mrf.mxu0
  %v3605 = vadd.f32 %v3419, %v3604
  %3606 = vdwg.mxu0
  %3607 = vmatprep.subr.bf16.mxu0 %v3217
  %3608 = vmatpush1.bf16.msra.mxu0 %v3216
  %3609 = vmatprep.subr.bf16.mxu0 %v3215
  %3610 = vmatpush1.bf16.msra.mxu0 %v3214
  %3611 = vmatprep.subr.bf16.mxu0 %v3213
  %3612 = vmatpush1.bf16.msra.mxu0 %v3212
  %3613 = vmatprep.subr.bf16.mxu0 %v3211
  %3614 = vmatpush1.bf16.msra.mxu0 %v3210
  %3615 = vmatprep.subr.bf16.mxu0 %v3176
  %3616 = vmatpush1.bf16.msra.mxu0 %v3175
  %3617 = vmatprep.subr.bf16.mxu0 %v3174
  %3618 = vmatpush1.bf16.msra.mxu0 %v3173
  %3619 = vmatprep.subr.bf16.mxu0 %v3172
  %3620 = vmatpush1.bf16.msra.mxu0 %v3171
  %3621 = vmatprep.subr.bf16.mxu0 %v3170
  %3622 = vmatpush1.bf16.msra.mxu0 %v3169
  %3623 = vmatprep.subr.bf16.mxu0 %v3299
  %3624 = vmatpush2.bf16.msra.mxu0 %v3298
  %3625 = vmatprep.subr.bf16.mxu0 %v3297
  %3626 = vmatpush2.bf16.msra.mxu0 %v3296
  %3627 = vmatprep.subr.bf16.mxu0 %v3295
  %3628 = vmatpush2.bf16.msra.mxu0 %v3294
  %3629 = vmatprep.subr.bf16.mxu0 %v3293
  %3630 = vmatpush2.bf16.msra.mxu0 %v3292
  %3631 = vmatprep.subr.bf16.mxu0 %v3258
  %3632 = vmatpush2.bf16.msra.mxu0 %v3257
  %3633 = vmatprep.subr.bf16.mxu0 %v3256
  %3634 = vmatpush2.bf16.msra.mxu0 %v3255
  %3635 = vmatprep.subr.bf16.mxu0 %v3254
  %3636 = vmatpush2.bf16.msra.mxu0 %v3253
  %3637 = vmatprep.subr.bf16.mxu0 %v3252
  %3638 = vmatpush2.bf16.msra.mxu0 %v3251
  %3639 = vmatprep.mubr.bf16.mxu0 %v3488
  %3640 = vmatmul.mubr.bf16.gmra.mxu0 %v3487
  %v3641 = vpop.f32.mrf.mxu0
  %v3642 = vadd.f32 %v3569, %v3641
  %v3643 = vpop.f32.mrf.mxu0
  %v3644 = vadd.f32 %v3571, %v3643
  %v3645 = vpop.f32.mrf.mxu0
  %v3646 = vadd.f32 %v3573, %v3645
  %v3647 = vpop.f32.mrf.mxu0
  %v3648 = vadd.f32 %v3575, %v3647
  %3649 = vmatprep.mubr.bf16.mxu0 %v3493
  %3650 = vmatmul.mubr.bf16.gmra.mxu0 %v3492
  %v3651 = vpop.f32.mrf.mxu0
  %v3652 = vadd.f32 %v3579, %v3651
  %v3653 = vpop.f32.mrf.mxu0
  %v3654 = vadd.f32 %v3581, %v3653
  %v3655 = vpop.f32.mrf.mxu0
  %v3656 = vadd.f32 %v3583, %v3655
  %v3657 = vpop.f32.mrf.mxu0
  %v3658 = vadd.f32 %v3585, %v3657
  %3659 = vmatprep.mubr.bf16.mxu0 %v3498
  %3660 = vmatmul.mubr.bf16.gmra.mxu0 %v3497
  %v3661 = vpop.f32.mrf.mxu0
  %v3662 = vadd.f32 %v3589, %v3661
  %v3663 = vpop.f32.mrf.mxu0
  %v3664 = vadd.f32 %v3591, %v3663
  %v3665 = vpop.f32.mrf.mxu0
  %v3666 = vadd.f32 %v3593, %v3665
  %v3667 = vpop.f32.mrf.mxu0
  %v3668 = vadd.f32 %v3595, %v3667
  %3669 = vmatprep.mubr.bf16.mxu0 %v3503
  %3670 = vmatmul.mubr.bf16.gmra.mxu0 %v3502
  %v3671 = vpop.f32.mrf.mxu0
  %v3672 = vadd.f32 %v3599, %v3671
  %v3673 = vpop.f32.mrf.mxu0
  %v3674 = vadd.f32 %v3601, %v3673
  %v3675 = vpop.f32.mrf.mxu0
  %v3676 = vadd.f32 %v3603, %v3675
  %v3677 = vpop.f32.mrf.mxu0
  %v3678 = vadd.f32 %v3605, %v3677
  %3679 = vdwg.mxu0
  %3680 = vmatprep.subr.bf16.mxu0 0
  %3681 = vmatpush1.bf16.msra.mxu0 0
  %3682 = vmatprep.subr.bf16.mxu0 0
  %3683 = vmatpush1.bf16.msra.mxu0 0
  %3684 = vmatprep.subr.bf16.mxu0 0
  %3685 = vmatpush1.bf16.msra.mxu0 0
  %3686 = vmatprep.subr.bf16.mxu0 0
  %3687 = vmatpush1.bf16.msra.mxu0 0
  %3688 = vmatprep.subr.bf16.mxu0 %v3340
  %3689 = vmatpush1.bf16.msra.mxu0 %v3339
  %3690 = vmatprep.subr.bf16.mxu0 %v3338
  %3691 = vmatpush1.bf16.msra.mxu0 %v3337
  %3692 = vmatprep.subr.bf16.mxu0 %v3336
  %3693 = vmatpush1.bf16.msra.mxu0 %v3335
  %3694 = vmatprep.subr.bf16.mxu0 %v3334
  %3695 = vmatpush1.bf16.msra.mxu0 %v3333
  %3696 = vmatprep.subr.bf16.mxu0 0
  %3697 = vmatpush2.bf16.msra.mxu0 0
  %3698 = vmatprep.subr.bf16.mxu0 0
  %3699 = vmatpush2.bf16.msra.mxu0 0
  %3700 = vmatprep.subr.bf16.mxu0 0
  %3701 = vmatpush2.bf16.msra.mxu0 0
  %3702 = vmatprep.subr.bf16.mxu0 0
  %3703 = vmatpush2.bf16.msra.mxu0 0
  %3704 = vmatprep.subr.bf16.mxu0 0
  %3705 = vmatpush2.bf16.msra.mxu0 0
  %3706 = vmatprep.subr.bf16.mxu0 0
  %3707 = vmatpush2.bf16.msra.mxu0 0
  %3708 = vmatprep.subr.bf16.mxu0 0
  %3709 = vmatpush2.bf16.msra.mxu0 0
  %3710 = vmatprep.subr.bf16.mxu0 0
  %3711 = vmatpush2.bf16.msra.mxu0 0
  %3712 = vmatprep.mubr.bf16.mxu0 0
  %3713 = vmatmul.mubr.bf16.gmra.mxu0 %v3523
  %v3714 = vpop.f32.mrf.mxu0
  %v3715 = vadd.f32 %v3642, %v3714
  %v3716 = vpop.f32.mrf.mxu0
  %v3717 = vadd.f32 %v3644, %v3716
  %v3718 = vpop.f32.mrf.mxu0
  %v3719 = vadd.f32 %v3646, %v3718
  %v3720 = vpop.f32.mrf.mxu0
  %v3721 = vadd.f32 %v3648, %v3720
  %3722 = vmatprep.mubr.bf16.mxu0 0
  %3723 = vmatmul.mubr.bf16.gmra.mxu0 %v3526
  %v3724 = vpop.f32.mrf.mxu0
  %v3725 = vadd.f32 %v3652, %v3724
  %v3726 = vpop.f32.mrf.mxu0
  %v3727 = vadd.f32 %v3654, %v3726
  %v3728 = vpop.f32.mrf.mxu0
  %v3729 = vadd.f32 %v3656, %v3728
  %v3730 = vpop.f32.mrf.mxu0
  %v3731 = vadd.f32 %v3658, %v3730
  %3732 = vmatprep.mubr.bf16.mxu0 0
  %3733 = vmatmul.mubr.bf16.gmra.mxu0 %v3529
  %v3734 = vpop.f32.mrf.mxu0
  %v3735 = vadd.f32 %v3662, %v3734
  %v3736 = vpop.f32.mrf.mxu0
  %v3737 = vadd.f32 %v3664, %v3736
  %v3738 = vpop.f32.mrf.mxu0
  %v3739 = vadd.f32 %v3666, %v3738
  %v3740 = vpop.f32.mrf.mxu0
  %v3741 = vadd.f32 %v3668, %v3740
  %3742 = vmatprep.mubr.bf16.mxu0 0
  %3743 = vmatmul.mubr.bf16.gmra.mxu0 %v3532
  %v3744 = vpop.f32.mrf.mxu0
  %v3745 = vadd.f32 %v3672, %v3744
  %v3746 = vpop.f32.mrf.mxu0
  %v3747 = vadd.f32 %v3674, %v3746
  %v3748 = vpop.f32.mrf.mxu0
  %v3749 = vadd.f32 %v3676, %v3748
  %v3750 = vpop.f32.mrf.mxu0
  %v3751 = vadd.f32 %v3678, %v3750
  %3752 = vdwg.mxu0
  %v3753 = vmax.f32 %v3715, 0.0
  %v3754 = vmax.f32 %v3717, 0.0
  %v3755 = vmax.f32 %v3719, 0.0
  %v3756 = vmax.f32 %v3721, 0.0
  %v3757 = vmax.f32 %v3725, 0.0
  %v3758 = vmax.f32 %v3727, 0.0
  %v3759 = vmax.f32 %v3729, 0.0
  %v3760 = vmax.f32 %v3731, 0.0
  %v3761 = vmax.f32 %v3735, 0.0
  %v3762 = vmax.f32 %v3737, 0.0
  %v3763 = vmax.f32 %v3739, 0.0
  %v3764 = vmax.f32 %v3741, 0.0
  %v3765 = vmax.f32 %v3745, 0.0
  %v3766 = vmax.f32 %v3747, 0.0
  %v3767 = vmax.f32 %v3749, 0.0
  %v3768 = vmax.f32 %v3751, 0.0
  %3769 = vst [vmem:[%s7] sm:$0xff] %v3753
  %3770 = vst [vmem:[%s7 + $0x8] sm:$0xff] %v3754
  %3771 = vst [vmem:[%s7 + $0x10] sm:$0xff] %v3755
  %3772 = vst [vmem:[%s7 + $0x18] sm:$0xff] %v3756
  %3773 = vst [vmem:[%s7 + $0x20] sm:$0xff] %v3757
  %3774 = vst [vmem:[%s7 + $0x28] sm:$0xff] %v3758
  %3775 = vst [vmem:[%s7 + $0x30] sm:$0xff] %v3759
  %3776 = vst [vmem:[%s7 + $0x38] sm:$0xff] %v3760
  %3777 = vst [vmem:[%s7 + $0x40] sm:$0xff] %v3761
  %3778 = vst [vmem:[%s7 + $0x48] sm:$0xff] %v3762
  %3779 = vst [vmem:[%s7 + $0x50] sm:$0xff] %v3763
  %3780 = vst [vmem:[%s7 + $0x58] sm:$0xff] %v3764
  %3781 = vst [vmem:[%s7 + $0x60] sm:$0xff] %v3765
  %3782 = vst [vmem:[%s7 + $0x68] sm:$0xff] %v3766
  %3783 = vst [vmem:[%s7 + $0x70] sm:$0xff] %v3767
  %3784 = vst [vmem:[%s7 + $0x78] sm:$0xff] %v3768
  // Predicated region
  $region30: #{nature_cnn_forward.1} parent=0 // pred_check
    _
  $region31: #{nature_cnn_forward.1} parent=0 // pred_check_branch
    %3786 = sbr.rel (0) target = $region33
  $region32: #{nature_cnn_forward.1} parent=0 // pred_region
    _
  $region33: #{nature_cnn_forward.1} parent=0 // pred_fallthru
    _
  // Predicated region
  $region34: #{nature_cnn_forward.1} parent=0 // pred_check
    _
  $region35: #{nature_cnn_forward.1} parent=0 // pred_check_branch
    %3788 = sbr.rel (0) target = $region37
  $region36: #{nature_cnn_forward.1} parent=0 // pred_region
    _
  $region37: #{nature_cnn_forward.1} parent=0 // pred_fallthru
    _

</llo_original>
